<compile_context>
chip_gen: v6e
topology: v6e:2x2x1
jax: 0.10.0
libtpu: 0.0.40
codegen_flags: <defaults>
</compile_context>

<pallas_src>
import numpy as np
import jax
import jax.numpy as jnp
from jax.experimental import pallas as pl
from jax.experimental.pallas import tpu as pltpu

# ---------------- small synthetic ViT config ----------------
B = 2            # batch
C = 3            # input channels
H = W = 16       # spatial
PATCH = 8        # patch size -> 2x2 grid
NP = (H // PATCH) * (W // PATCH)     # 4 patches
N1 = NP + 1                          # + cls token = 5 tokens
D = 128          # embed dim
HEADS = 4
HD = D // HEADS                      # 32
DM = 256         # MLP hidden dim
DEPTH = 2        # transformer blocks
P = C * PATCH * PATCH                # raw patch vector length = 192
PPAD = 256                           # padded patch vector (lane-dense MXU K)
EPS = 1e-6

# ---- packed "small parameter" slab layout (f32, width = 3*D lanes) ----
SLAB_W = 3 * D
ROW_CLS = 0
ROW_POS = 1                      # N1 rows
ROW_PATCH_B = ROW_POS + N1       # 6
ROW_LNF_W = ROW_PATCH_B + 1      # 7
ROW_LNF_B = ROW_LNF_W + 1        # 8
ROW_BLK0 = ROW_LNF_B + 1         # 9
ROWS_PER_BLK = 8                 # ln1w, ln1b, ln2w, ln2b, qkvb, projb, fc1b, fc2b
SLAB_ROWS = ROW_BLK0 + DEPTH * ROWS_PER_BLK   # 25


def _ln(x, w, b):
    mu = jnp.mean(x, axis=-1, keepdims=True)
    var = jnp.mean((x - mu) ** 2, axis=-1, keepdims=True)
    return (x - mu) * jax.lax.rsqrt(var + EPS) * w + b


# ------------------------------ kernel ---------------------------------
def _make_vit_kernel(bb):
    """Build a kernel that processes `bb` samples per grid step."""
    nt = bb * N1                      # tokens handled per step

    def kernel(x_ref, pw_ref, qkvw_ref, projw_ref, fc1w_ref, fc2w_ref,
               slab_ref, out_ref, buf_ref):
        f32 = jnp.float32
        bf16 = jnp.bfloat16

        # ---- patch embedding: (bb*NP, PPAD) @ (PPAD, D), bf16 on the MXU ----
        patches = x_ref[0].astype(bf16)
        tok = jnp.dot(patches, pw_ref[...], preferred_element_type=f32)
        tok = tok + slab_ref[ROW_PATCH_B:ROW_PATCH_B + 1, 0:D]

        # ---- assemble [cls; tok] + pos via ref-slice writes (no concat) ----
        cls_row = slab_ref[ROW_CLS:ROW_CLS + 1, 0:D]
        pos = slab_ref[ROW_POS:ROW_POS + N1, 0:D]
        for s in range(bb):
            buf_ref[s * N1:s * N1 + 1, :] = cls_row + pos[0:1, :]
            buf_ref[s * N1 + 1:(s + 1) * N1, :] = (
                tok[s * NP:(s + 1) * NP, :] + pos[1:N1, :])
        x = buf_ref[...]                                       # (nt, D) f32

        for d in range(DEPTH):
            base = ROW_BLK0 + d * ROWS_PER_BLK
            ln1w = slab_ref[base + 0:base + 1, 0:D]
            ln1b = slab_ref[base + 1:base + 2, 0:D]
            ln2w = slab_ref[base + 2:base + 3, 0:D]
            ln2b = slab_ref[base + 3:base + 4, 0:D]
            qkvb = slab_ref[base + 4:base + 5, 0:3 * D]
            projb = slab_ref[base + 5:base + 6, 0:D]
            fc1b = slab_ref[base + 6:base + 7, 0:DM]
            fc2b = slab_ref[base + 7:base + 8, 0:D]

            # ---- multi-head self-attention (pre-norm) ----
            # Attention scale HD**-0.5 is folded into qkv_w/qkv_b (prep time).
            h = _ln(x, ln1w, ln1b)
            qkv = jnp.dot(h.astype(bf16), qkvw_ref[d],
                          preferred_element_type=f32) + qkvb    # (nt, 3D) f32
            q = qkv[:, 0:D]
            k = qkv[:, D:2 * D]
            v = qkv[:, 2 * D:3 * D]

            # Head-batched (G, N1, HD) tensors, G = bb*HEADS; one batched
            # score matmul + one batched att@v matmul (no per-head concat).
            q3 = jnp.stack([q[s * N1:(s + 1) * N1, hh * HD:(hh + 1) * HD]
                            for s in range(bb) for hh in range(HEADS)])
            k3 = jnp.stack([k[s * N1:(s + 1) * N1, hh * HD:(hh + 1) * HD]
                            for s in range(bb) for hh in range(HEADS)])
            v3 = jnp.stack([v[s * N1:(s + 1) * N1, hh * HD:(hh + 1) * HD]
                            for s in range(bb) for hh in range(HEADS)])

            att = jnp.einsum("gqd,gkd->gqk", q3.astype(bf16), k3.astype(bf16),
                             preferred_element_type=f32)        # (G, N1, N1)
            att = att - jnp.max(att, axis=-1, keepdims=True)
            att = jnp.exp(att)
            # Exact normalization (matches the reference; the approximate
            # EUP reciprocal previously exceeded the output tolerance).
            att = att / jnp.sum(att, axis=-1, keepdims=True)
            ctx = jnp.einsum("gqk,gkd->gqd", att.astype(bf16), v3.astype(bf16),
                             preferred_element_type=f32)        # (G, N1, HD)

            # Scatter heads back into (nt, D) via cheap ref-slice writes.
            for s in range(bb):
                for hh in range(HEADS):
                    buf_ref[s * N1:(s + 1) * N1,
                            hh * HD:(hh + 1) * HD] = ctx[s * HEADS + hh]
            attn = jnp.dot(buf_ref[...].astype(bf16), projw_ref[d],
                           preferred_element_type=f32) + projb
            x = x + attn

            # ---- MLP (pre-norm) ----
            h2 = _ln(x, ln2w, ln2b)
            h2 = jnp.dot(h2.astype(bf16), fc1w_ref[d],
                         preferred_element_type=f32) + fc1b
            # TODO(synk): timm uses exact erf-GELU; tanh-approx GELU used here.
            h2 = jax.nn.gelu(h2, approximate=True)
            h2 = jnp.dot(h2.astype(bf16), fc2w_ref[d],
                         preferred_element_type=f32) + fc2b
            x = x + h2

        # final norm (timm forward_features applies self.norm)
        lnf_w = slab_ref[ROW_LNF_W:ROW_LNF_W + 1, 0:D]
        lnf_b = slab_ref[ROW_LNF_B:ROW_LNF_B + 1, 0:D]
        out_ref[0] = _ln(x, lnf_w, lnf_b)

    return kernel


# ----------------------------- parameters ------------------------------
def init_params(key):
    ks = jax.random.split(key, 12)
    s = 0.02
    f32 = jnp.float32
    return {
        "patch_w": jax.random.normal(ks[0], (P, D), f32) * s,
        "patch_b": jax.random.normal(ks[1], (1, D), f32) * s,
        "cls":     jax.random.normal(ks[2], (1, D), f32) * s,
        "pos":     jax.random.normal(ks[3], (N1, D), f32) * s,
        "ln1_w":   jnp.ones((DEPTH, 1, D), f32),
        "ln1_b":   jnp.zeros((DEPTH, 1, D), f32),
        "qkv_w":   jax.random.normal(ks[4], (DEPTH, D, 3 * D), f32) * s,
        "qkv_b":   jax.random.normal(ks[5], (DEPTH, 1, 3 * D), f32) * s,
        "proj_w":  jax.random.normal(ks[6], (DEPTH, D, D), f32) * s,
        "proj_b":  jax.random.normal(ks[7], (DEPTH, 1, D), f32) * s,
        "ln2_w":   jnp.ones((DEPTH, 1, D), f32),
        "ln2_b":   jnp.zeros((DEPTH, 1, D), f32),
        "fc1_w":   jax.random.normal(ks[8], (DEPTH, D, DM), f32) * s,
        "fc1_b":   jax.random.normal(ks[9], (DEPTH, 1, DM), f32) * s,
        "fc2_w":   jax.random.normal(ks[10], (DEPTH, DM, D), f32) * s,
        "fc2_b":   jax.random.normal(ks[11], (DEPTH, 1, D), f32) * s,
        "lnf_w":   jnp.ones((1, D), f32),
        "lnf_b":   jnp.zeros((1, D), f32),
    }


def prepare_params(p):
    """Pad/scale/cast weights and pack the small params into one f32 slab."""
    bf16 = jnp.bfloat16
    scale = HD ** -0.5
    # Fold the attention scale into the Q columns of qkv_w / qkv_b.
    qscale = jnp.concatenate([jnp.full((D,), scale, jnp.float32),
                              jnp.ones((2 * D,), jnp.float32)])
    qkv_w = (p["qkv_w"] * qscale[None, None, :]).astype(bf16)
    qkv_b = p["qkv_b"] * qscale[None, None, :]                  # stays f32

    patch_w = jnp.pad(p["patch_w"], ((0, PPAD - P), (0, 0))).astype(bf16)

    def pad_row(v):
        return jnp.pad(v, ((0, 0), (0, SLAB_W - v.shape[-1])))

    rows = [pad_row(p["cls"]), pad_row(p["pos"]), pad_row(p["patch_b"]),
            pad_row(p["lnf_w"]), pad_row(p["lnf_b"])]
    for d in range(DEPTH):
        rows += [pad_row(p["ln1_w"][d]), pad_row(p["ln1_b"][d]),
                 pad_row(p["ln2_w"][d]), pad_row(p["ln2_b"][d]),
                 pad_row(qkv_b[d]), pad_row(p["proj_b"][d]),
                 pad_row(p["fc1_b"][d]), pad_row(p["fc2_b"][d])]
    slab = jnp.concatenate(rows, axis=0)
    assert slab.shape == (SLAB_ROWS, SLAB_W)

    return {"patch_w": patch_w, "qkv_w": qkv_w,
            "proj_w": p["proj_w"].astype(bf16),
            "fc1_w": p["fc1_w"].astype(bf16),
            "fc2_w": p["fc2_w"].astype(bf16),
            "slab": slab}


# ------------------------------ wrapper ---------------------------------
def _patchify_pad(x_nchw):
    # (B, C, H, W) -> (B*NP, PPAD); patch vector flattened (c, ph, pw), zero-
    # padded 192 -> 256 (Conv2d(kernel=stride=PATCH) is pure data movement).
    xb = x_nchw.astype(jnp.float32).reshape(
        B, C, H // PATCH, PATCH, W // PATCH, PATCH)
    xb = xb.transpose(0, 2, 4, 1, 3, 5).reshape(B * NP, P)
    return jnp.pad(xb, ((0, 0), (0, PPAD - P)))


def _default_samples_per_step():
    # v7x has 2 TensorCores: keep one sample per (parallel) grid step.
    # v5e/v6e have 1 TensorCore: fold the whole batch into a single step.
    try:
        kind = jax.devices()[0].device_kind.lower()
    except Exception:
        kind = ""
    return 1 if "v7" in kind else B


def _full_spec(arr):
    return pl.BlockSpec(arr.shape, lambda b, nd=arr.ndim: (0,) * nd)


def vit_feature_extractor(x_nchw, prep, samples_per_step=None):
    bb = samples_per_step if samples_per_step is not None \
        else _default_samples_per_step()
    assert B % bb == 0
    nsteps = B // bb

    xp = _patchify_pad(x_nchw).reshape(nsteps, bb * NP, PPAD)
    weights = (prep["patch_w"], prep["qkv_w"], prep["proj_w"],
               prep["fc1_w"], prep["fc2_w"], prep["slab"])

    in_specs = [pl.BlockSpec((1, bb * NP, PPAD), lambda b: (b, 0, 0))]
    in_specs += [_full_spec(w) for w in weights]

    out = pl.pallas_call(
        _make_vit_kernel(bb),
        out_shape=jax.ShapeDtypeStruct((nsteps, bb * N1, D), jnp.float32),
        grid=(nsteps,),
        in_specs=in_specs,
        out_specs=pl.BlockSpec((1, bb * N1, D), lambda b: (b, 0, 0)),
        scratch_shapes=[pltpu.VMEM((bb * N1, D), jnp.float32)],
        compiler_params=pltpu.CompilerParams(
            dimension_semantics=("parallel",)),
    )(xp, *weights)

    # features.dim() == 3 -> features.flatten(start_dim=1); the reshape below
    # is a free row-major relabel of (nsteps, bb*N1, D).
    return out.reshape(B, N1 * D)


# -------------- pure-JAX reference (mirrors kernel math) -----------------
def vit_reference(x_nchw, prep):
    f32, bf16 = jnp.float32, jnp.bfloat16
    slab = prep["slab"]
    patches = _patchify_pad(x_nchw)
    tok = jnp.dot(patches.astype(bf16), prep["patch_w"],
                  preferred_element_type=f32)
    tok = (tok + slab[ROW_PATCH_B:ROW_PATCH_B + 1, :D]).reshape(B, NP, D)
    cls = slab[ROW_CLS:ROW_CLS + 1, :D]
    pos = slab[ROW_POS:ROW_POS + N1, :D]
    x = jnp.concatenate([jnp.broadcast_to(cls[None], (B, 1, D)), tok], axis=1)
    x = x + pos[None]
    for d in range(DEPTH):
        base = ROW_BLK0 + d * ROWS_PER_BLK
        h = _ln(x, slab[base + 0, :D], slab[base + 1, :D])
        qkv = jnp.einsum("bnd,de->bne", h.astype(bf16), prep["qkv_w"][d],
                         preferred_element_type=f32) + slab[base + 4, :3 * D]
        q = qkv[..., :D].reshape(B, N1, HEADS, HD).transpose(0, 2, 1, 3)
        k = qkv[..., D:2 * D].reshape(B, N1, HEADS, HD).transpose(0, 2, 1, 3)
        v = qkv[..., 2 * D:].reshape(B, N1, HEADS, HD).transpose(0, 2, 1, 3)
        att = jnp.einsum("bhqd,bhkd->bhqk", q.astype(bf16), k.astype(bf16),
                         preferred_element_type=f32)
        att = att - jnp.max(att, axis=-1, keepdims=True)
        att = jnp.exp(att)
        att = att / jnp.sum(att, axis=-1, keepdims=True)
        ctx = jnp.einsum("bhqk,bhkd->bhqd", att.astype(bf16), v.astype(bf16),
                         preferred_element_type=f32)
        ctx = ctx.transpose(0, 2, 1, 3).reshape(B, N1, D)
        attn = jnp.einsum("bnd,de->bne", ctx.astype(bf16), prep["proj_w"][d],
                          preferred_element_type=f32) + slab[base + 5, :D]
        x = x + attn
        h2 = _ln(x, slab[base + 2, :D], slab[base + 3, :D])
        h2 = jnp.einsum("bnd,de->bne", h2.astype(bf16), prep["fc1_w"][d],
                        preferred_element_type=f32) + slab[base + 6, :DM]
        h2 = jax.nn.gelu(h2, approximate=True)
        h2 = jnp.einsum("bnd,de->bne", h2.astype(bf16), prep["fc2_w"][d],
                        preferred_element_type=f32) + slab[base + 7, :D]
        x = x + h2
    x = _ln(x, slab[ROW_LNF_W, :D], slab[ROW_LNF_B, :D])
    return x.reshape(B, N1 * D)


if __name__ == "__main__":
    key = jax.random.PRNGKey(0)
    k_x, k_p = jax.random.split(key)
    x = jax.random.normal(k_x, (B, C, H, W), jnp.float32)        # NCHW input
    prep = prepare_params(init_params(k_p))

    ref = jax.block_until_ready(vit_reference(x, prep))

    # Exercise both grid layouts: batch folded into one step (single-TC
    # v5e/v6e) and one sample per parallel step (v7x, 2 TensorCores).
    # Tolerance covers bf16 matmuls and transcendental-lowering differences
    # between Mosaic and XLA; the softmax math itself now matches exactly.
    for bb in (B, 1):
        feats = jax.block_until_ready(
            vit_feature_extractor(x, prep, samples_per_step=bb))
        assert feats.shape == (B, N1 * D), feats.shape
        np.testing.assert_allclose(np.asarray(feats), np.asarray(ref),
                                   rtol=1e-2, atol=1e-2)

    # Default path (device-generation dependent choice).
    feats = jax.block_until_ready(vit_feature_extractor(x, prep))
    assert feats.shape == (B, N1 * D), feats.shape
    print("KERNEL_OK")
</pallas_src>

<mosaic_0001>
module attributes {stable_mosaic.version = 11 : i64} {
  func.func @kernel(%arg0: i32, %arg1: memref<1x8x256xf32, #tpu.memory_space<vmem>>, %arg2: memref<256x128xbf16, #tpu.memory_space<vmem>>, %arg3: memref<2x128x384xbf16, #tpu.memory_space<vmem>>, %arg4: memref<2x128x128xbf16, #tpu.memory_space<vmem>>, %arg5: memref<2x128x256xbf16, #tpu.memory_space<vmem>>, %arg6: memref<2x256x128xbf16, #tpu.memory_space<vmem>>, %arg7: memref<25x384xf32, #tpu.memory_space<vmem>>, %arg8: memref<1x10x128xf32, #tpu.memory_space<vmem>>, %arg9: memref<10x128xf32, #tpu.memory_space<vmem>>) attributes {dimension_semantics = [#tpu.dimension_semantics<parallel>], iteration_bounds = array<i64: 1>, scalar_prefetch = 0 : i64, scratch_operands = 1 : i64, tpu.core_type = #tpu.core_type<tc>, window_params = [{transform_indices = @transform_0, window_bounds = array<i64: 1, 8, 256>}, {pipeline_mode = #tpu.pipeline_mode<synchronous>, transform_indices = @transform_1, window_bounds = array<i64: 256, 128>}, {pipeline_mode = #tpu.pipeline_mode<synchronous>, transform_indices = @transform_2, window_bounds = array<i64: 2, 128, 384>}, {pipeline_mode = #tpu.pipeline_mode<synchronous>, transform_indices = @transform_3, window_bounds = array<i64: 2, 128, 128>}, {pipeline_mode = #tpu.pipeline_mode<synchronous>, transform_indices = @transform_4, window_bounds = array<i64: 2, 128, 256>}, {pipeline_mode = #tpu.pipeline_mode<synchronous>, transform_indices = @transform_5, window_bounds = array<i64: 2, 256, 128>}, {pipeline_mode = #tpu.pipeline_mode<synchronous>, transform_indices = @transform_6, window_bounds = array<i64: 25, 384>}, {transform_indices = @transform_7, window_bounds = array<i64: 1, 10, 128>}]} {
    %c0 = arith.constant 0 : index
    %c0_0 = arith.constant 0 : index
    %c0_1 = arith.constant 0 : index
    %0 = vector.load %arg1[%c0, %c0_0, %c0_1] : memref<1x8x256xf32, #tpu.memory_space<vmem>>, vector<1x8x256xf32>
    %1 = vector.shape_cast %0 : vector<1x8x256xf32> to vector<8x256xf32>
    %2 = arith.truncf %1 : vector<8x256xf32> to vector<8x256xbf16>
    %c0_2 = arith.constant 0 : index
    %c0_3 = arith.constant 0 : index
    %3 = vector.load %arg2[%c0_2, %c0_3] : memref<256x128xbf16, #tpu.memory_space<vmem>>, vector<256x128xbf16>
    %cst = arith.constant dense<0.000000e+00> : vector<8x128xf32>
    %4 = tpu.matmul %2, %3, %cst {dimension_numbers = #tpu.dot_dimension_numbers<[1], [0], [0], [1], [0, 0, 1, 1], [], []>} : vector<8x256xbf16>, vector<256x128xbf16>, vector<8x128xf32> -> vector<8x128xf32>
    %c6 = arith.constant 6 : index
    %c0_4 = arith.constant 0 : index
    %5 = vector.load %arg7[%c6, %c0_4] : memref<25x384xf32, #tpu.memory_space<vmem>>, vector<1x128xf32>
    %6 = vector.broadcast %5 : vector<1x128xf32> to vector<8x128xf32>
    %7 = arith.addf %4, %6 : vector<8x128xf32>
    %c0_5 = arith.constant 0 : index
    %c0_6 = arith.constant 0 : index
    %8 = vector.load %arg7[%c0_5, %c0_6] : memref<25x384xf32, #tpu.memory_space<vmem>>, vector<1x128xf32>
    %c1 = arith.constant 1 : index
    %c0_7 = arith.constant 0 : index
    %9 = vector.load %arg7[%c1, %c0_7] : memref<25x384xf32, #tpu.memory_space<vmem>>, vector<5x128xf32>
    %10 = vector.extract_strided_slice %9 {offsets = [0, 0], sizes = [1, 128], strides = [1, 1]} : vector<5x128xf32> to vector<1x128xf32>
    %11 = arith.addf %8, %10 : vector<1x128xf32>
    %c0_8 = arith.constant 0 : index
    %c0_9 = arith.constant 0 : index
    %12 = vector.load %arg9[%c0_8, %c0_9] : memref<10x128xf32, #tpu.memory_space<vmem>>, vector<1x128xf32>
    tpu.vector_store %arg9[%c0_8, %c0_9], %11 {strides = array<i32>} : memref<10x128xf32, #tpu.memory_space<vmem>>, vector<1x128xf32>,
    %13 = vector.extract_strided_slice %7 {offsets = [0, 0], sizes = [4, 128], strides = [1, 1]} : vector<8x128xf32> to vector<4x128xf32>
    %14 = vector.extract_strided_slice %9 {offsets = [1, 0], sizes = [4, 128], strides = [1, 1]} : vector<5x128xf32> to vector<4x128xf32>
    %15 = arith.addf %13, %14 : vector<4x128xf32>
    %c1_10 = arith.constant 1 : index
    %c0_11 = arith.constant 0 : index
    %16 = vector.load %arg9[%c1_10, %c0_11] : memref<10x128xf32, #tpu.memory_space<vmem>>, vector<4x128xf32>
    tpu.vector_store %arg9[%c1_10, %c0_11], %15 {strides = array<i32>} : memref<10x128xf32, #tpu.memory_space<vmem>>, vector<4x128xf32>,
    %17 = vector.extract_strided_slice %9 {offsets = [0, 0], sizes = [1, 128], strides = [1, 1]} : vector<5x128xf32> to vector<1x128xf32>
    %18 = arith.addf %8, %17 : vector<1x128xf32>
    %c5 = arith.constant 5 : index
    %c0_12 = arith.constant 0 : index
    %19 = vector.load %arg9[%c5, %c0_12] : memref<10x128xf32, #tpu.memory_space<vmem>>, vector<1x128xf32>
    tpu.vector_store %arg9[%c5, %c0_12], %18 {strides = array<i32>} : memref<10x128xf32, #tpu.memory_space<vmem>>, vector<1x128xf32>,
    %20 = vector.extract_strided_slice %7 {offsets = [4, 0], sizes = [4, 128], strides = [1, 1]} : vector<8x128xf32> to vector<4x128xf32>
    %21 = vector.extract_strided_slice %9 {offsets = [1, 0], sizes = [4, 128], strides = [1, 1]} : vector<5x128xf32> to vector<4x128xf32>
    %22 = arith.addf %20, %21 : vector<4x128xf32>
    %c6_13 = arith.constant 6 : index
    %c0_14 = arith.constant 0 : index
    %23 = vector.load %arg9[%c6_13, %c0_14] : memref<10x128xf32, #tpu.memory_space<vmem>>, vector<4x128xf32>
    tpu.vector_store %arg9[%c6_13, %c0_14], %22 {strides = array<i32>} : memref<10x128xf32, #tpu.memory_space<vmem>>, vector<4x128xf32>,
    %c0_15 = arith.constant 0 : index
    %c0_16 = arith.constant 0 : index
    %24 = vector.load %arg9[%c0_15, %c0_16] : memref<10x128xf32, #tpu.memory_space<vmem>>, vector<10x128xf32>
    %c9 = arith.constant 9 : index
    %c0_17 = arith.constant 0 : index
    %25 = vector.load %arg7[%c9, %c0_17] : memref<25x384xf32, #tpu.memory_space<vmem>>, vector<1x128xf32>
    %c10 = arith.constant 10 : index
    %c0_18 = arith.constant 0 : index
    %26 = vector.load %arg7[%c10, %c0_18] : memref<25x384xf32, #tpu.memory_space<vmem>>, vector<1x128xf32>
    %c11 = arith.constant 11 : index
    %c0_19 = arith.constant 0 : index
    %27 = vector.load %arg7[%c11, %c0_19] : memref<25x384xf32, #tpu.memory_space<vmem>>, vector<1x128xf32>
    %c12 = arith.constant 12 : index
    %c0_20 = arith.constant 0 : index
    %28 = vector.load %arg7[%c12, %c0_20] : memref<25x384xf32, #tpu.memory_space<vmem>>, vector<1x128xf32>
    %c13 = arith.constant 13 : index
    %c0_21 = arith.constant 0 : index
    %29 = vector.load %arg7[%c13, %c0_21] : memref<25x384xf32, #tpu.memory_space<vmem>>, vector<1x384xf32>
    %c14 = arith.constant 14 : index
    %c0_22 = arith.constant 0 : index
    %30 = vector.load %arg7[%c14, %c0_22] : memref<25x384xf32, #tpu.memory_space<vmem>>, vector<1x128xf32>
    %c15 = arith.constant 15 : index
    %c0_23 = arith.constant 0 : index
    %31 = vector.load %arg7[%c15, %c0_23] : memref<25x384xf32, #tpu.memory_space<vmem>>, vector<1x256xf32>
    %c16 = arith.constant 16 : index
    %c0_24 = arith.constant 0 : index
    %32 = vector.load %arg7[%c16, %c0_24] : memref<25x384xf32, #tpu.memory_space<vmem>>, vector<1x128xf32>
    %cst_25 = arith.constant dense<0.000000e+00> : vector<10xf32>
    %33 = vector.multi_reduction <add>, %24, %cst_25 [1] : vector<10x128xf32> to vector<10xf32>
    %34 = vector.shape_cast %33 : vector<10xf32> to vector<10x1xf32>
    %cst_26 = arith.constant 1.280000e+02 : f32
    %35 = vector.broadcast %cst_26 : f32 to vector<10x1xf32>
    %36 = arith.divf %34, %35 : vector<10x1xf32>
    %37 = vector.broadcast %36 : vector<10x1xf32> to vector<10x128xf32>
    %38 = arith.subf %24, %37 : vector<10x128xf32>
    %39 = arith.mulf %38, %38 : vector<10x128xf32>
    %cst_27 = arith.constant dense<0.000000e+00> : vector<10xf32>
    %40 = vector.multi_reduction <add>, %39, %cst_27 [1] : vector<10x128xf32> to vector<10xf32>
    %41 = vector.shape_cast %40 : vector<10xf32> to vector<10x1xf32>
    %cst_28 = arith.constant 1.280000e+02 : f32
    %42 = vector.broadcast %cst_28 : f32 to vector<10x1xf32>
    %43 = arith.divf %41, %42 : vector<10x1xf32>
    %44 = vector.broadcast %36 : vector<10x1xf32> to vector<10x128xf32>
    %45 = arith.subf %24, %44 : vector<10x128xf32>
    %cst_29 = arith.constant 9.99999997E-7 : f32
    %46 = vector.broadcast %cst_29 : f32 to vector<10x1xf32>
    %47 = arith.addf %43, %46 : vector<10x1xf32>
    %48 = math.rsqrt %47 : vector<10x1xf32>
    %49 = vector.broadcast %48 : vector<10x1xf32> to vector<10x128xf32>
    %50 = arith.mulf %45, %49 : vector<10x128xf32>
    %51 = vector.broadcast %25 : vector<1x128xf32> to vector<10x128xf32>
    %52 = arith.mulf %50, %51 : vector<10x128xf32>
    %53 = vector.broadcast %26 : vector<1x128xf32> to vector<10x128xf32>
    %54 = arith.addf %52, %53 : vector<10x128xf32>
    %55 = arith.truncf %54 : vector<10x128xf32> to vector<10x128xbf16>
    %c0_30 = arith.constant 0 : index
    %c0_31 = arith.constant 0 : index
    %c0_32 = arith.constant 0 : index
    %56 = vector.load %arg3[%c0_30, %c0_31, %c0_32] : memref<2x128x384xbf16, #tpu.memory_space<vmem>>, vector<1x128x384xbf16>
    %57 = vector.shape_cast %56 : vector<1x128x384xbf16> to vector<128x384xbf16>
    %cst_33 = arith.constant dense<0.000000e+00> : vector<10x384xf32>
    %58 = tpu.matmul %55, %57, %cst_33 {dimension_numbers = #tpu.dot_dimension_numbers<[1], [0], [0], [1], [0, 0, 1, 1], [], []>} : vector<10x128xbf16>, vector<128x384xbf16>, vector<10x384xf32> -> vector<10x384xf32>
    %59 = vector.broadcast %29 : vector<1x384xf32> to vector<10x384xf32>
    %60 = arith.addf %58, %59 : vector<10x384xf32>
    %61 = vector.extract_strided_slice %60 {offsets = [0, 0], sizes = [10, 128], strides = [1, 1]} : vector<10x384xf32> to vector<10x128xf32>
    %62 = vector.extract_strided_slice %60 {offsets = [0, 128], sizes = [10, 128], strides = [1, 1]} : vector<10x384xf32> to vector<10x128xf32>
    %63 = vector.extract_strided_slice %60 {offsets = [0, 256], sizes = [10, 128], strides = [1, 1]} : vector<10x384xf32> to vector<10x128xf32>
    %64 = vector.extract_strided_slice %61 {offsets = [0, 0], sizes = [5, 32], strides = [1, 1]} : vector<10x128xf32> to vector<5x32xf32>
    %65 = vector.extract_strided_slice %61 {offsets = [0, 32], sizes = [5, 32], strides = [1, 1]} : vector<10x128xf32> to vector<5x32xf32>
    %66 = vector.extract_strided_slice %61 {offsets = [0, 64], sizes = [5, 32], strides = [1, 1]} : vector<10x128xf32> to vector<5x32xf32>
    %67 = vector.extract_strided_slice %61 {offsets = [0, 96], sizes = [5, 32], strides = [1, 1]} : vector<10x128xf32> to vector<5x32xf32>
    %68 = vector.extract_strided_slice %61 {offsets = [5, 0], sizes = [5, 32], strides = [1, 1]} : vector<10x128xf32> to vector<5x32xf32>
    %69 = vector.extract_strided_slice %61 {offsets = [5, 32], sizes = [5, 32], strides = [1, 1]} : vector<10x128xf32> to vector<5x32xf32>
    %70 = vector.extract_strided_slice %61 {offsets = [5, 64], sizes = [5, 32], strides = [1, 1]} : vector<10x128xf32> to vector<5x32xf32>
    %71 = vector.extract_strided_slice %61 {offsets = [5, 96], sizes = [5, 32], strides = [1, 1]} : vector<10x128xf32> to vector<5x32xf32>
    %72 = vector.shape_cast %64 : vector<5x32xf32> to vector<1x5x32xf32>
    %73 = vector.shape_cast %65 : vector<5x32xf32> to vector<1x5x32xf32>
    %74 = vector.shape_cast %66 : vector<5x32xf32> to vector<1x5x32xf32>
    %75 = vector.shape_cast %67 : vector<5x32xf32> to vector<1x5x32xf32>
    %76 = vector.shape_cast %68 : vector<5x32xf32> to vector<1x5x32xf32>
    %77 = vector.shape_cast %69 : vector<5x32xf32> to vector<1x5x32xf32>
    %78 = vector.shape_cast %70 : vector<5x32xf32> to vector<1x5x32xf32>
    %79 = vector.shape_cast %71 : vector<5x32xf32> to vector<1x5x32xf32>
    %80 = tpu.concatenate %72, %73, %74, %75, %76, %77, %78, %79 in 0 : vector<1x5x32xf32>, vector<1x5x32xf32>, vector<1x5x32xf32>, vector<1x5x32xf32>, vector<1x5x32xf32>, vector<1x5x32xf32>, vector<1x5x32xf32>, vector<1x5x32xf32> -> vector<8x5x32xf32>
    %81 = vector.extract_strided_slice %62 {offsets = [0, 0], sizes = [5, 32], strides = [1, 1]} : vector<10x128xf32> to vector<5x32xf32>
    %82 = vector.extract_strided_slice %62 {offsets = [0, 32], sizes = [5, 32], strides = [1, 1]} : vector<10x128xf32> to vector<5x32xf32>
    %83 = vector.extract_strided_slice %62 {offsets = [0, 64], sizes = [5, 32], strides = [1, 1]} : vector<10x128xf32> to vector<5x32xf32>
    %84 = vector.extract_strided_slice %62 {offsets = [0, 96], sizes = [5, 32], strides = [1, 1]} : vector<10x128xf32> to vector<5x32xf32>
    %85 = vector.extract_strided_slice %62 {offsets = [5, 0], sizes = [5, 32], strides = [1, 1]} : vector<10x128xf32> to vector<5x32xf32>
    %86 = vector.extract_strided_slice %62 {offsets = [5, 32], sizes = [5, 32], strides = [1, 1]} : vector<10x128xf32> to vector<5x32xf32>
    %87 = vector.extract_strided_slice %62 {offsets = [5, 64], sizes = [5, 32], strides = [1, 1]} : vector<10x128xf32> to vector<5x32xf32>
    %88 = vector.extract_strided_slice %62 {offsets = [5, 96], sizes = [5, 32], strides = [1, 1]} : vector<10x128xf32> to vector<5x32xf32>
    %89 = vector.shape_cast %81 : vector<5x32xf32> to vector<1x5x32xf32>
    %90 = vector.shape_cast %82 : vector<5x32xf32> to vector<1x5x32xf32>
    %91 = vector.shape_cast %83 : vector<5x32xf32> to vector<1x5x32xf32>
    %92 = vector.shape_cast %84 : vector<5x32xf32> to vector<1x5x32xf32>
    %93 = vector.shape_cast %85 : vector<5x32xf32> to vector<1x5x32xf32>
    %94 = vector.shape_cast %86 : vector<5x32xf32> to vector<1x5x32xf32>
    %95 = vector.shape_cast %87 : vector<5x32xf32> to vector<1x5x32xf32>
    %96 = vector.shape_cast %88 : vector<5x32xf32> to vector<1x5x32xf32>
    %97 = tpu.concatenate %89, %90, %91, %92, %93, %94, %95, %96 in 0 : vector<1x5x32xf32>, vector<1x5x32xf32>, vector<1x5x32xf32>, vector<1x5x32xf32>, vector<1x5x32xf32>, vector<1x5x32xf32>, vector<1x5x32xf32>, vector<1x5x32xf32> -> vector<8x5x32xf32>
    %98 = vector.extract_strided_slice %63 {offsets = [0, 0], sizes = [5, 32], strides = [1, 1]} : vector<10x128xf32> to vector<5x32xf32>
    %99 = vector.extract_strided_slice %63 {offsets = [0, 32], sizes = [5, 32], strides = [1, 1]} : vector<10x128xf32> to vector<5x32xf32>
    %100 = vector.extract_strided_slice %63 {offsets = [0, 64], sizes = [5, 32], strides = [1, 1]} : vector<10x128xf32> to vector<5x32xf32>
    %101 = vector.extract_strided_slice %63 {offsets = [0, 96], sizes = [5, 32], strides = [1, 1]} : vector<10x128xf32> to vector<5x32xf32>
    %102 = vector.extract_strided_slice %63 {offsets = [5, 0], sizes = [5, 32], strides = [1, 1]} : vector<10x128xf32> to vector<5x32xf32>
    %103 = vector.extract_strided_slice %63 {offsets = [5, 32], sizes = [5, 32], strides = [1, 1]} : vector<10x128xf32> to vector<5x32xf32>
    %104 = vector.extract_strided_slice %63 {offsets = [5, 64], sizes = [5, 32], strides = [1, 1]} : vector<10x128xf32> to vector<5x32xf32>
    %105 = vector.extract_strided_slice %63 {offsets = [5, 96], sizes = [5, 32], strides = [1, 1]} : vector<10x128xf32> to vector<5x32xf32>
    %106 = vector.shape_cast %98 : vector<5x32xf32> to vector<1x5x32xf32>
    %107 = vector.shape_cast %99 : vector<5x32xf32> to vector<1x5x32xf32>
    %108 = vector.shape_cast %100 : vector<5x32xf32> to vector<1x5x32xf32>
    %109 = vector.shape_cast %101 : vector<5x32xf32> to vector<1x5x32xf32>
    %110 = vector.shape_cast %102 : vector<5x32xf32> to vector<1x5x32xf32>
    %111 = vector.shape_cast %103 : vector<5x32xf32> to vector<1x5x32xf32>
    %112 = vector.shape_cast %104 : vector<5x32xf32> to vector<1x5x32xf32>
    %113 = vector.shape_cast %105 : vector<5x32xf32> to vector<1x5x32xf32>
    %114 = tpu.concatenate %106, %107, %108, %109, %110, %111, %112, %113 in 0 : vector<1x5x32xf32>, vector<1x5x32xf32>, vector<1x5x32xf32>, vector<1x5x32xf32>, vector<1x5x32xf32>, vector<1x5x32xf32>, vector<1x5x32xf32>, vector<1x5x32xf32> -> vector<8x5x32xf32>
    %115 = arith.truncf %80 : vector<8x5x32xf32> to vector<8x5x32xbf16>
    %116 = arith.truncf %97 : vector<8x5x32xf32> to vector<8x5x32xbf16>
    "tpu.trace_start"() <{level = 10 : i32, message = "gqd,gkd->gqk"}> : () -> ()
    %cst_34 = arith.constant dense<0.000000e+00> : vector<8x5x5xf32>
    %117 = tpu.matmul %115, %116, %cst_34 {dimension_numbers = #tpu.dot_dimension_numbers<[2], [2], [1], [1], [0, 0, 0, 1, 1, 1], [0], [0]>} : vector<8x5x32xbf16>, vector<8x5x32xbf16>, vector<8x5x5xf32> -> vector<8x5x5xf32>
    "tpu.trace_stop"() : () -> ()
    %cst_35 = arith.constant dense<0xFF800000> : vector<8x5xf32>
    %118 = vector.multi_reduction <maximumf>, %117, %cst_35 [2] : vector<8x5x5xf32> to vector<8x5xf32>
    %119 = vector.shape_cast %118 : vector<8x5xf32> to vector<8x5x1xf32>
    %120 = vector.broadcast %119 : vector<8x5x1xf32> to vector<8x5x5xf32>
    %121 = arith.subf %117, %120 : vector<8x5x5xf32>
    %122 = math.exp %121 : vector<8x5x5xf32>
    %cst_36 = arith.constant dense<0.000000e+00> : vector<8x5xf32>
    %123 = vector.multi_reduction <add>, %122, %cst_36 [2] : vector<8x5x5xf32> to vector<8x5xf32>
    %124 = vector.shape_cast %123 : vector<8x5xf32> to vector<8x5x1xf32>
    %125 = vector.broadcast %124 : vector<8x5x1xf32> to vector<8x5x5xf32>
    %126 = arith.divf %122, %125 : vector<8x5x5xf32>
    %127 = arith.truncf %126 : vector<8x5x5xf32> to vector<8x5x5xbf16>
    %128 = arith.truncf %114 : vector<8x5x32xf32> to vector<8x5x32xbf16>
    "tpu.trace_start"() <{level = 10 : i32, message = "gqk,gkd->gqd"}> : () -> ()
    %cst_37 = arith.constant dense<0.000000e+00> : vector<8x5x32xf32>
    %129 = tpu.matmul %127, %128, %cst_37 {dimension_numbers = #tpu.dot_dimension_numbers<[2], [1], [1], [2], [0, 0, 0, 1, 1, 2], [0], [0]>} : vector<8x5x5xbf16>, vector<8x5x32xbf16>, vector<8x5x32xf32> -> vector<8x5x32xf32>
    "tpu.trace_stop"() : () -> ()
    %130 = vector.extract_strided_slice %129 {offsets = [0, 0, 0], sizes = [1, 5, 32], strides = [1, 1, 1]} : vector<8x5x32xf32> to vector<1x5x32xf32>
    %131 = vector.shape_cast %130 : vector<1x5x32xf32> to vector<5x32xf32>
    %c0_38 = arith.constant 0 : index
    %c0_39 = arith.constant 0 : index
    %132 = vector.load %arg9[%c0_38, %c0_39] : memref<10x128xf32, #tpu.memory_space<vmem>>, vector<5x32xf32>
    tpu.vector_store %arg9[%c0_38, %c0_39], %131 {strides = array<i32>} : memref<10x128xf32, #tpu.memory_space<vmem>>, vector<5x32xf32>,
    %133 = vector.extract_strided_slice %129 {offsets = [1, 0, 0], sizes = [1, 5, 32], strides = [1, 1, 1]} : vector<8x5x32xf32> to vector<1x5x32xf32>
    %134 = vector.shape_cast %133 : vector<1x5x32xf32> to vector<5x32xf32>
    %c0_40 = arith.constant 0 : index
    %c32 = arith.constant 32 : index
    %135 = vector.load %arg9[%c0_40, %c32] : memref<10x128xf32, #tpu.memory_space<vmem>>, vector<5x32xf32>
    tpu.vector_store %arg9[%c0_40, %c32], %134 {strides = array<i32>} : memref<10x128xf32, #tpu.memory_space<vmem>>, vector<5x32xf32>,
    %136 = vector.extract_strided_slice %129 {offsets = [2, 0, 0], sizes = [1, 5, 32], strides = [1, 1, 1]} : vector<8x5x32xf32> to vector<1x5x32xf32>
    %137 = vector.shape_cast %136 : vector<1x5x32xf32> to vector<5x32xf32>
    %c0_41 = arith.constant 0 : index
    %c64 = arith.constant 64 : index
    %138 = vector.load %arg9[%c0_41, %c64] : memref<10x128xf32, #tpu.memory_space<vmem>>, vector<5x32xf32>
    tpu.vector_store %arg9[%c0_41, %c64], %137 {strides = array<i32>} : memref<10x128xf32, #tpu.memory_space<vmem>>, vector<5x32xf32>,
    %139 = vector.extract_strided_slice %129 {offsets = [3, 0, 0], sizes = [1, 5, 32], strides = [1, 1, 1]} : vector<8x5x32xf32> to vector<1x5x32xf32>
    %140 = vector.shape_cast %139 : vector<1x5x32xf32> to vector<5x32xf32>
    %c0_42 = arith.constant 0 : index
    %c96 = arith.constant 96 : index
    %141 = vector.load %arg9[%c0_42, %c96] : memref<10x128xf32, #tpu.memory_space<vmem>>, vector<5x32xf32>
    tpu.vector_store %arg9[%c0_42, %c96], %140 {strides = array<i32>} : memref<10x128xf32, #tpu.memory_space<vmem>>, vector<5x32xf32>,
    %142 = vector.extract_strided_slice %129 {offsets = [4, 0, 0], sizes = [1, 5, 32], strides = [1, 1, 1]} : vector<8x5x32xf32> to vector<1x5x32xf32>
    %143 = vector.shape_cast %142 : vector<1x5x32xf32> to vector<5x32xf32>
    %c5_43 = arith.constant 5 : index
    %c0_44 = arith.constant 0 : index
    %144 = vector.load %arg9[%c5_43, %c0_44] : memref<10x128xf32, #tpu.memory_space<vmem>>, vector<5x32xf32>
    tpu.vector_store %arg9[%c5_43, %c0_44], %143 {strides = array<i32>} : memref<10x128xf32, #tpu.memory_space<vmem>>, vector<5x32xf32>,
    %145 = vector.extract_strided_slice %129 {offsets = [5, 0, 0], sizes = [1, 5, 32], strides = [1, 1, 1]} : vector<8x5x32xf32> to vector<1x5x32xf32>
    %146 = vector.shape_cast %145 : vector<1x5x32xf32> to vector<5x32xf32>
    %c5_45 = arith.constant 5 : index
    %c32_46 = arith.constant 32 : index
    %147 = vector.load %arg9[%c5_45, %c32_46] : memref<10x128xf32, #tpu.memory_space<vmem>>, vector<5x32xf32>
    tpu.vector_store %arg9[%c5_45, %c32_46], %146 {strides = array<i32>} : memref<10x128xf32, #tpu.memory_space<vmem>>, vector<5x32xf32>,
    %148 = vector.extract_strided_slice %129 {offsets = [6, 0, 0], sizes = [1, 5, 32], strides = [1, 1, 1]} : vector<8x5x32xf32> to vector<1x5x32xf32>
    %149 = vector.shape_cast %148 : vector<1x5x32xf32> to vector<5x32xf32>
    %c5_47 = arith.constant 5 : index
    %c64_48 = arith.constant 64 : index
    %150 = vector.load %arg9[%c5_47, %c64_48] : memref<10x128xf32, #tpu.memory_space<vmem>>, vector<5x32xf32>
    tpu.vector_store %arg9[%c5_47, %c64_48], %149 {strides = array<i32>} : memref<10x128xf32, #tpu.memory_space<vmem>>, vector<5x32xf32>,
    %151 = vector.extract_strided_slice %129 {offsets = [7, 0, 0], sizes = [1, 5, 32], strides = [1, 1, 1]} : vector<8x5x32xf32> to vector<1x5x32xf32>
    %152 = vector.shape_cast %151 : vector<1x5x32xf32> to vector<5x32xf32>
    %c5_49 = arith.constant 5 : index
    %c96_50 = arith.constant 96 : index
    %153 = vector.load %arg9[%c5_49, %c96_50] : memref<10x128xf32, #tpu.memory_space<vmem>>, vector<5x32xf32>
    tpu.vector_store %arg9[%c5_49, %c96_50], %152 {strides = array<i32>} : memref<10x128xf32, #tpu.memory_space<vmem>>, vector<5x32xf32>,
    %c0_51 = arith.constant 0 : index
    %c0_52 = arith.constant 0 : index
    %154 = vector.load %arg9[%c0_51, %c0_52] : memref<10x128xf32, #tpu.memory_space<vmem>>, vector<10x128xf32>
    %155 = arith.truncf %154 : vector<10x128xf32> to vector<10x128xbf16>
    %c0_53 = arith.constant 0 : index
    %c0_54 = arith.constant 0 : index
    %c0_55 = arith.constant 0 : index
    %156 = vector.load %arg4[%c0_53, %c0_54, %c0_55] : memref<2x128x128xbf16, #tpu.memory_space<vmem>>, vector<1x128x128xbf16>
    %157 = vector.shape_cast %156 : vector<1x128x128xbf16> to vector<128x128xbf16>
    %cst_56 = arith.constant dense<0.000000e+00> : vector<10x128xf32>
    %158 = tpu.matmul %155, %157, %cst_56 {dimension_numbers = #tpu.dot_dimension_numbers<[1], [0], [0], [1], [0, 0, 1, 1], [], []>} : vector<10x128xbf16>, vector<128x128xbf16>, vector<10x128xf32> -> vector<10x128xf32>
    %159 = vector.broadcast %30 : vector<1x128xf32> to vector<10x128xf32>
    %160 = arith.addf %158, %159 : vector<10x128xf32>
    %161 = arith.addf %24, %160 : vector<10x128xf32>
    %cst_57 = arith.constant dense<0.000000e+00> : vector<10xf32>
    %162 = vector.multi_reduction <add>, %161, %cst_57 [1] : vector<10x128xf32> to vector<10xf32>
    %163 = vector.shape_cast %162 : vector<10xf32> to vector<10x1xf32>
    %cst_58 = arith.constant 1.280000e+02 : f32
    %164 = vector.broadcast %cst_58 : f32 to vector<10x1xf32>
    %165 = arith.divf %163, %164 : vector<10x1xf32>
    %166 = vector.broadcast %165 : vector<10x1xf32> to vector<10x128xf32>
    %167 = arith.subf %161, %166 : vector<10x128xf32>
    %168 = arith.mulf %167, %167 : vector<10x128xf32>
    %cst_59 = arith.constant dense<0.000000e+00> : vector<10xf32>
    %169 = vector.multi_reduction <add>, %168, %cst_59 [1] : vector<10x128xf32> to vector<10xf32>
    %170 = vector.shape_cast %169 : vector<10xf32> to vector<10x1xf32>
    %cst_60 = arith.constant 1.280000e+02 : f32
    %171 = vector.broadcast %cst_60 : f32 to vector<10x1xf32>
    %172 = arith.divf %170, %171 : vector<10x1xf32>
    %173 = vector.broadcast %165 : vector<10x1xf32> to vector<10x128xf32>
    %174 = arith.subf %161, %173 : vector<10x128xf32>
    %cst_61 = arith.constant 9.99999997E-7 : f32
    %175 = vector.broadcast %cst_61 : f32 to vector<10x1xf32>
    %176 = arith.addf %172, %175 : vector<10x1xf32>
    %177 = math.rsqrt %176 : vector<10x1xf32>
    %178 = vector.broadcast %177 : vector<10x1xf32> to vector<10x128xf32>
    %179 = arith.mulf %174, %178 : vector<10x128xf32>
    %180 = vector.broadcast %27 : vector<1x128xf32> to vector<10x128xf32>
    %181 = arith.mulf %179, %180 : vector<10x128xf32>
    %182 = vector.broadcast %28 : vector<1x128xf32> to vector<10x128xf32>
    %183 = arith.addf %181, %182 : vector<10x128xf32>
    %184 = arith.truncf %183 : vector<10x128xf32> to vector<10x128xbf16>
    %c0_62 = arith.constant 0 : index
    %c0_63 = arith.constant 0 : index
    %c0_64 = arith.constant 0 : index
    %185 = vector.load %arg5[%c0_62, %c0_63, %c0_64] : memref<2x128x256xbf16, #tpu.memory_space<vmem>>, vector<1x128x256xbf16>
    %186 = vector.shape_cast %185 : vector<1x128x256xbf16> to vector<128x256xbf16>
    %cst_65 = arith.constant dense<0.000000e+00> : vector<10x256xf32>
    %187 = tpu.matmul %184, %186, %cst_65 {dimension_numbers = #tpu.dot_dimension_numbers<[1], [0], [0], [1], [0, 0, 1, 1], [], []>} : vector<10x128xbf16>, vector<128x256xbf16>, vector<10x256xf32> -> vector<10x256xf32>
    %188 = vector.broadcast %31 : vector<1x256xf32> to vector<10x256xf32>
    %189 = arith.addf %187, %188 : vector<10x256xf32>
    %190 = arith.mulf %189, %189 : vector<10x256xf32>
    %191 = arith.mulf %189, %190 : vector<10x256xf32>
    %cst_66 = arith.constant 4.471500e-02 : f32
    %192 = vector.broadcast %cst_66 : f32 to vector<10x256xf32>
    %193 = arith.mulf %192, %191 : vector<10x256xf32>
    %194 = arith.addf %189, %193 : vector<10x256xf32>
    %cst_67 = arith.constant 0.797884583 : f32
    %195 = vector.broadcast %cst_67 : f32 to vector<10x256xf32>
    %196 = arith.mulf %195, %194 : vector<10x256xf32>
    %197 = math.tanh %196 : vector<10x256xf32>
    %cst_68 = arith.constant 1.000000e+00 : f32
    %198 = vector.broadcast %cst_68 : f32 to vector<10x256xf32>
    %199 = arith.addf %198, %197 : vector<10x256xf32>
    %cst_69 = arith.constant 5.000000e-01 : f32
    %200 = vector.broadcast %cst_69 : f32 to vector<10x256xf32>
    %201 = arith.mulf %200, %199 : vector<10x256xf32>
    %202 = arith.mulf %189, %201 : vector<10x256xf32>
    %203 = arith.truncf %202 : vector<10x256xf32> to vector<10x256xbf16>
    %c0_70 = arith.constant 0 : index
    %c0_71 = arith.constant 0 : index
    %c0_72 = arith.constant 0 : index
    %204 = vector.load %arg6[%c0_70, %c0_71, %c0_72] : memref<2x256x128xbf16, #tpu.memory_space<vmem>>, vector<1x256x128xbf16>
    %205 = vector.shape_cast %204 : vector<1x256x128xbf16> to vector<256x128xbf16>
    %cst_73 = arith.constant dense<0.000000e+00> : vector<10x128xf32>
    %206 = tpu.matmul %203, %205, %cst_73 {dimension_numbers = #tpu.dot_dimension_numbers<[1], [0], [0], [1], [0, 0, 1, 1], [], []>} : vector<10x256xbf16>, vector<256x128xbf16>, vector<10x128xf32> -> vector<10x128xf32>
    %207 = vector.broadcast %32 : vector<1x128xf32> to vector<10x128xf32>
    %208 = arith.addf %206, %207 : vector<10x128xf32>
    %209 = arith.addf %161, %208 : vector<10x128xf32>
    %c17 = arith.constant 17 : index
    %c0_74 = arith.constant 0 : index
    %210 = vector.load %arg7[%c17, %c0_74] : memref<25x384xf32, #tpu.memory_space<vmem>>, vector<1x128xf32>
    %c18 = arith.constant 18 : index
    %c0_75 = arith.constant 0 : index
    %211 = vector.load %arg7[%c18, %c0_75] : memref<25x384xf32, #tpu.memory_space<vmem>>, vector<1x128xf32>
    %c19 = arith.constant 19 : index
    %c0_76 = arith.constant 0 : index
    %212 = vector.load %arg7[%c19, %c0_76] : memref<25x384xf32, #tpu.memory_space<vmem>>, vector<1x128xf32>
    %c20 = arith.constant 20 : index
    %c0_77 = arith.constant 0 : index
    %213 = vector.load %arg7[%c20, %c0_77] : memref<25x384xf32, #tpu.memory_space<vmem>>, vector<1x128xf32>
    %c21 = arith.constant 21 : index
    %c0_78 = arith.constant 0 : index
    %214 = vector.load %arg7[%c21, %c0_78] : memref<25x384xf32, #tpu.memory_space<vmem>>, vector<1x384xf32>
    %c22 = arith.constant 22 : index
    %c0_79 = arith.constant 0 : index
    %215 = vector.load %arg7[%c22, %c0_79] : memref<25x384xf32, #tpu.memory_space<vmem>>, vector<1x128xf32>
    %c23 = arith.constant 23 : index
    %c0_80 = arith.constant 0 : index
    %216 = vector.load %arg7[%c23, %c0_80] : memref<25x384xf32, #tpu.memory_space<vmem>>, vector<1x256xf32>
    %c24 = arith.constant 24 : index
    %c0_81 = arith.constant 0 : index
    %217 = vector.load %arg7[%c24, %c0_81] : memref<25x384xf32, #tpu.memory_space<vmem>>, vector<1x128xf32>
    %cst_82 = arith.constant dense<0.000000e+00> : vector<10xf32>
    %218 = vector.multi_reduction <add>, %209, %cst_82 [1] : vector<10x128xf32> to vector<10xf32>
    %219 = vector.shape_cast %218 : vector<10xf32> to vector<10x1xf32>
    %cst_83 = arith.constant 1.280000e+02 : f32
    %220 = vector.broadcast %cst_83 : f32 to vector<10x1xf32>
    %221 = arith.divf %219, %220 : vector<10x1xf32>
    %222 = vector.broadcast %221 : vector<10x1xf32> to vector<10x128xf32>
    %223 = arith.subf %209, %222 : vector<10x128xf32>
    %224 = arith.mulf %223, %223 : vector<10x128xf32>
    %cst_84 = arith.constant dense<0.000000e+00> : vector<10xf32>
    %225 = vector.multi_reduction <add>, %224, %cst_84 [1] : vector<10x128xf32> to vector<10xf32>
    %226 = vector.shape_cast %225 : vector<10xf32> to vector<10x1xf32>
    %cst_85 = arith.constant 1.280000e+02 : f32
    %227 = vector.broadcast %cst_85 : f32 to vector<10x1xf32>
    %228 = arith.divf %226, %227 : vector<10x1xf32>
    %229 = vector.broadcast %221 : vector<10x1xf32> to vector<10x128xf32>
    %230 = arith.subf %209, %229 : vector<10x128xf32>
    %cst_86 = arith.constant 9.99999997E-7 : f32
    %231 = vector.broadcast %cst_86 : f32 to vector<10x1xf32>
    %232 = arith.addf %228, %231 : vector<10x1xf32>
    %233 = math.rsqrt %232 : vector<10x1xf32>
    %234 = vector.broadcast %233 : vector<10x1xf32> to vector<10x128xf32>
    %235 = arith.mulf %230, %234 : vector<10x128xf32>
    %236 = vector.broadcast %210 : vector<1x128xf32> to vector<10x128xf32>
    %237 = arith.mulf %235, %236 : vector<10x128xf32>
    %238 = vector.broadcast %211 : vector<1x128xf32> to vector<10x128xf32>
    %239 = arith.addf %237, %238 : vector<10x128xf32>
    %240 = arith.truncf %239 : vector<10x128xf32> to vector<10x128xbf16>
    %c1_87 = arith.constant 1 : index
    %c0_88 = arith.constant 0 : index
    %c0_89 = arith.constant 0 : index
    %241 = vector.load %arg3[%c1_87, %c0_88, %c0_89] : memref<2x128x384xbf16, #tpu.memory_space<vmem>>, vector<1x128x384xbf16>
    %242 = vector.shape_cast %241 : vector<1x128x384xbf16> to vector<128x384xbf16>
    %cst_90 = arith.constant dense<0.000000e+00> : vector<10x384xf32>
    %243 = tpu.matmul %240, %242, %cst_90 {dimension_numbers = #tpu.dot_dimension_numbers<[1], [0], [0], [1], [0, 0, 1, 1], [], []>} : vector<10x128xbf16>, vector<128x384xbf16>, vector<10x384xf32> -> vector<10x384xf32>
    %244 = vector.broadcast %214 : vector<1x384xf32> to vector<10x384xf32>
    %245 = arith.addf %243, %244 : vector<10x384xf32>
    %246 = vector.extract_strided_slice %245 {offsets = [0, 0], sizes = [10, 128], strides = [1, 1]} : vector<10x384xf32> to vector<10x128xf32>
    %247 = vector.extract_strided_slice %245 {offsets = [0, 128], sizes = [10, 128], strides = [1, 1]} : vector<10x384xf32> to vector<10x128xf32>
    %248 = vector.extract_strided_slice %245 {offsets = [0, 256], sizes = [10, 128], strides = [1, 1]} : vector<10x384xf32> to vector<10x128xf32>
    %249 = vector.extract_strided_slice %246 {offsets = [0, 0], sizes = [5, 32], strides = [1, 1]} : vector<10x128xf32> to vector<5x32xf32>
    %250 = vector.extract_strided_slice %246 {offsets = [0, 32], sizes = [5, 32], strides = [1, 1]} : vector<10x128xf32> to vector<5x32xf32>
    %251 = vector.extract_strided_slice %246 {offsets = [0, 64], sizes = [5, 32], strides = [1, 1]} : vector<10x128xf32> to vector<5x32xf32>
    %252 = vector.extract_strided_slice %246 {offsets = [0, 96], sizes = [5, 32], strides = [1, 1]} : vector<10x128xf32> to vector<5x32xf32>
    %253 = vector.extract_strided_slice %246 {offsets = [5, 0], sizes = [5, 32], strides = [1, 1]} : vector<10x128xf32> to vector<5x32xf32>
    %254 = vector.extract_strided_slice %246 {offsets = [5, 32], sizes = [5, 32], strides = [1, 1]} : vector<10x128xf32> to vector<5x32xf32>
    %255 = vector.extract_strided_slice %246 {offsets = [5, 64], sizes = [5, 32], strides = [1, 1]} : vector<10x128xf32> to vector<5x32xf32>
    %256 = vector.extract_strided_slice %246 {offsets = [5, 96], sizes = [5, 32], strides = [1, 1]} : vector<10x128xf32> to vector<5x32xf32>
    %257 = vector.shape_cast %249 : vector<5x32xf32> to vector<1x5x32xf32>
    %258 = vector.shape_cast %250 : vector<5x32xf32> to vector<1x5x32xf32>
    %259 = vector.shape_cast %251 : vector<5x32xf32> to vector<1x5x32xf32>
    %260 = vector.shape_cast %252 : vector<5x32xf32> to vector<1x5x32xf32>
    %261 = vector.shape_cast %253 : vector<5x32xf32> to vector<1x5x32xf32>
    %262 = vector.shape_cast %254 : vector<5x32xf32> to vector<1x5x32xf32>
    %263 = vector.shape_cast %255 : vector<5x32xf32> to vector<1x5x32xf32>
    %264 = vector.shape_cast %256 : vector<5x32xf32> to vector<1x5x32xf32>
    %265 = tpu.concatenate %257, %258, %259, %260, %261, %262, %263, %264 in 0 : vector<1x5x32xf32>, vector<1x5x32xf32>, vector<1x5x32xf32>, vector<1x5x32xf32>, vector<1x5x32xf32>, vector<1x5x32xf32>, vector<1x5x32xf32>, vector<1x5x32xf32> -> vector<8x5x32xf32>
    %266 = vector.extract_strided_slice %247 {offsets = [0, 0], sizes = [5, 32], strides = [1, 1]} : vector<10x128xf32> to vector<5x32xf32>
    %267 = vector.extract_strided_slice %247 {offsets = [0, 32], sizes = [5, 32], strides = [1, 1]} : vector<10x128xf32> to vector<5x32xf32>
    %268 = vector.extract_strided_slice %247 {offsets = [0, 64], sizes = [5, 32], strides = [1, 1]} : vector<10x128xf32> to vector<5x32xf32>
    %269 = vector.extract_strided_slice %247 {offsets = [0, 96], sizes = [5, 32], strides = [1, 1]} : vector<10x128xf32> to vector<5x32xf32>
    %270 = vector.extract_strided_slice %247 {offsets = [5, 0], sizes = [5, 32], strides = [1, 1]} : vector<10x128xf32> to vector<5x32xf32>
    %271 = vector.extract_strided_slice %247 {offsets = [5, 32], sizes = [5, 32], strides = [1, 1]} : vector<10x128xf32> to vector<5x32xf32>
    %272 = vector.extract_strided_slice %247 {offsets = [5, 64], sizes = [5, 32], strides = [1, 1]} : vector<10x128xf32> to vector<5x32xf32>
    %273 = vector.extract_strided_slice %247 {offsets = [5, 96], sizes = [5, 32], strides = [1, 1]} : vector<10x128xf32> to vector<5x32xf32>
    %274 = vector.shape_cast %266 : vector<5x32xf32> to vector<1x5x32xf32>
    %275 = vector.shape_cast %267 : vector<5x32xf32> to vector<1x5x32xf32>
    %276 = vector.shape_cast %268 : vector<5x32xf32> to vector<1x5x32xf32>
    %277 = vector.shape_cast %269 : vector<5x32xf32> to vector<1x5x32xf32>
    %278 = vector.shape_cast %270 : vector<5x32xf32> to vector<1x5x32xf32>
    %279 = vector.shape_cast %271 : vector<5x32xf32> to vector<1x5x32xf32>
    %280 = vector.shape_cast %272 : vector<5x32xf32> to vector<1x5x32xf32>
    %281 = vector.shape_cast %273 : vector<5x32xf32> to vector<1x5x32xf32>
    %282 = tpu.concatenate %274, %275, %276, %277, %278, %279, %280, %281 in 0 : vector<1x5x32xf32>, vector<1x5x32xf32>, vector<1x5x32xf32>, vector<1x5x32xf32>, vector<1x5x32xf32>, vector<1x5x32xf32>, vector<1x5x32xf32>, vector<1x5x32xf32> -> vector<8x5x32xf32>
    %283 = vector.extract_strided_slice %248 {offsets = [0, 0], sizes = [5, 32], strides = [1, 1]} : vector<10x128xf32> to vector<5x32xf32>
    %284 = vector.extract_strided_slice %248 {offsets = [0, 32], sizes = [5, 32], strides = [1, 1]} : vector<10x128xf32> to vector<5x32xf32>
    %285 = vector.extract_strided_slice %248 {offsets = [0, 64], sizes = [5, 32], strides = [1, 1]} : vector<10x128xf32> to vector<5x32xf32>
    %286 = vector.extract_strided_slice %248 {offsets = [0, 96], sizes = [5, 32], strides = [1, 1]} : vector<10x128xf32> to vector<5x32xf32>
    %287 = vector.extract_strided_slice %248 {offsets = [5, 0], sizes = [5, 32], strides = [1, 1]} : vector<10x128xf32> to vector<5x32xf32>
    %288 = vector.extract_strided_slice %248 {offsets = [5, 32], sizes = [5, 32], strides = [1, 1]} : vector<10x128xf32> to vector<5x32xf32>
    %289 = vector.extract_strided_slice %248 {offsets = [5, 64], sizes = [5, 32], strides = [1, 1]} : vector<10x128xf32> to vector<5x32xf32>
    %290 = vector.extract_strided_slice %248 {offsets = [5, 96], sizes = [5, 32], strides = [1, 1]} : vector<10x128xf32> to vector<5x32xf32>
    %291 = vector.shape_cast %283 : vector<5x32xf32> to vector<1x5x32xf32>
    %292 = vector.shape_cast %284 : vector<5x32xf32> to vector<1x5x32xf32>
    %293 = vector.shape_cast %285 : vector<5x32xf32> to vector<1x5x32xf32>
    %294 = vector.shape_cast %286 : vector<5x32xf32> to vector<1x5x32xf32>
    %295 = vector.shape_cast %287 : vector<5x32xf32> to vector<1x5x32xf32>
    %296 = vector.shape_cast %288 : vector<5x32xf32> to vector<1x5x32xf32>
    %297 = vector.shape_cast %289 : vector<5x32xf32> to vector<1x5x32xf32>
    %298 = vector.shape_cast %290 : vector<5x32xf32> to vector<1x5x32xf32>
    %299 = tpu.concatenate %291, %292, %293, %294, %295, %296, %297, %298 in 0 : vector<1x5x32xf32>, vector<1x5x32xf32>, vector<1x5x32xf32>, vector<1x5x32xf32>, vector<1x5x32xf32>, vector<1x5x32xf32>, vector<1x5x32xf32>, vector<1x5x32xf32> -> vector<8x5x32xf32>
    %300 = arith.truncf %265 : vector<8x5x32xf32> to vector<8x5x32xbf16>
    %301 = arith.truncf %282 : vector<8x5x32xf32> to vector<8x5x32xbf16>
    "tpu.trace_start"() <{level = 10 : i32, message = "gqd,gkd->gqk"}> : () -> ()
    %cst_91 = arith.constant dense<0.000000e+00> : vector<8x5x5xf32>
    %302 = tpu.matmul %300, %301, %cst_91 {dimension_numbers = #tpu.dot_dimension_numbers<[2], [2], [1], [1], [0, 0, 0, 1, 1, 1], [0], [0]>} : vector<8x5x32xbf16>, vector<8x5x32xbf16>, vector<8x5x5xf32> -> vector<8x5x5xf32>
    "tpu.trace_stop"() : () -> ()
    %cst_92 = arith.constant dense<0xFF800000> : vector<8x5xf32>
    %303 = vector.multi_reduction <maximumf>, %302, %cst_92 [2] : vector<8x5x5xf32> to vector<8x5xf32>
    %304 = vector.shape_cast %303 : vector<8x5xf32> to vector<8x5x1xf32>
    %305 = vector.broadcast %304 : vector<8x5x1xf32> to vector<8x5x5xf32>
    %306 = arith.subf %302, %305 : vector<8x5x5xf32>
    %307 = math.exp %306 : vector<8x5x5xf32>
    %cst_93 = arith.constant dense<0.000000e+00> : vector<8x5xf32>
    %308 = vector.multi_reduction <add>, %307, %cst_93 [2] : vector<8x5x5xf32> to vector<8x5xf32>
    %309 = vector.shape_cast %308 : vector<8x5xf32> to vector<8x5x1xf32>
    %310 = vector.broadcast %309 : vector<8x5x1xf32> to vector<8x5x5xf32>
    %311 = arith.divf %307, %310 : vector<8x5x5xf32>
    %312 = arith.truncf %311 : vector<8x5x5xf32> to vector<8x5x5xbf16>
    %313 = arith.truncf %299 : vector<8x5x32xf32> to vector<8x5x32xbf16>
    "tpu.trace_start"() <{level = 10 : i32, message = "gqk,gkd->gqd"}> : () -> ()
    %cst_94 = arith.constant dense<0.000000e+00> : vector<8x5x32xf32>
    %314 = tpu.matmul %312, %313, %cst_94 {dimension_numbers = #tpu.dot_dimension_numbers<[2], [1], [1], [2], [0, 0, 0, 1, 1, 2], [0], [0]>} : vector<8x5x5xbf16>, vector<8x5x32xbf16>, vector<8x5x32xf32> -> vector<8x5x32xf32>
    "tpu.trace_stop"() : () -> ()
    %315 = vector.extract_strided_slice %314 {offsets = [0, 0, 0], sizes = [1, 5, 32], strides = [1, 1, 1]} : vector<8x5x32xf32> to vector<1x5x32xf32>
    %316 = vector.shape_cast %315 : vector<1x5x32xf32> to vector<5x32xf32>
    %c0_95 = arith.constant 0 : index
    %c0_96 = arith.constant 0 : index
    %317 = vector.load %arg9[%c0_95, %c0_96] : memref<10x128xf32, #tpu.memory_space<vmem>>, vector<5x32xf32>
    tpu.vector_store %arg9[%c0_95, %c0_96], %316 {strides = array<i32>} : memref<10x128xf32, #tpu.memory_space<vmem>>, vector<5x32xf32>,
    %318 = vector.extract_strided_slice %314 {offsets = [1, 0, 0], sizes = [1, 5, 32], strides = [1, 1, 1]} : vector<8x5x32xf32> to vector<1x5x32xf32>
    %319 = vector.shape_cast %318 : vector<1x5x32xf32> to vector<5x32xf32>
    %c0_97 = arith.constant 0 : index
    %c32_98 = arith.constant 32 : index
    %320 = vector.load %arg9[%c0_97, %c32_98] : memref<10x128xf32, #tpu.memory_space<vmem>>, vector<5x32xf32>
    tpu.vector_store %arg9[%c0_97, %c32_98], %319 {strides = array<i32>} : memref<10x128xf32, #tpu.memory_space<vmem>>, vector<5x32xf32>,
    %321 = vector.extract_strided_slice %314 {offsets = [2, 0, 0], sizes = [1, 5, 32], strides = [1, 1, 1]} : vector<8x5x32xf32> to vector<1x5x32xf32>
    %322 = vector.shape_cast %321 : vector<1x5x32xf32> to vector<5x32xf32>
    %c0_99 = arith.constant 0 : index
    %c64_100 = arith.constant 64 : index
    %323 = vector.load %arg9[%c0_99, %c64_100] : memref<10x128xf32, #tpu.memory_space<vmem>>, vector<5x32xf32>
    tpu.vector_store %arg9[%c0_99, %c64_100], %322 {strides = array<i32>} : memref<10x128xf32, #tpu.memory_space<vmem>>, vector<5x32xf32>,
    %324 = vector.extract_strided_slice %314 {offsets = [3, 0, 0], sizes = [1, 5, 32], strides = [1, 1, 1]} : vector<8x5x32xf32> to vector<1x5x32xf32>
    %325 = vector.shape_cast %324 : vector<1x5x32xf32> to vector<5x32xf32>
    %c0_101 = arith.constant 0 : index
    %c96_102 = arith.constant 96 : index
    %326 = vector.load %arg9[%c0_101, %c96_102] : memref<10x128xf32, #tpu.memory_space<vmem>>, vector<5x32xf32>
    tpu.vector_store %arg9[%c0_101, %c96_102], %325 {strides = array<i32>} : memref<10x128xf32, #tpu.memory_space<vmem>>, vector<5x32xf32>,
    %327 = vector.extract_strided_slice %314 {offsets = [4, 0, 0], sizes = [1, 5, 32], strides = [1, 1, 1]} : vector<8x5x32xf32> to vector<1x5x32xf32>
    %328 = vector.shape_cast %327 : vector<1x5x32xf32> to vector<5x32xf32>
    %c5_103 = arith.constant 5 : index
    %c0_104 = arith.constant 0 : index
    %329 = vector.load %arg9[%c5_103, %c0_104] : memref<10x128xf32, #tpu.memory_space<vmem>>, vector<5x32xf32>
    tpu.vector_store %arg9[%c5_103, %c0_104], %328 {strides = array<i32>} : memref<10x128xf32, #tpu.memory_space<vmem>>, vector<5x32xf32>,
    %330 = vector.extract_strided_slice %314 {offsets = [5, 0, 0], sizes = [1, 5, 32], strides = [1, 1, 1]} : vector<8x5x32xf32> to vector<1x5x32xf32>
    %331 = vector.shape_cast %330 : vector<1x5x32xf32> to vector<5x32xf32>
    %c5_105 = arith.constant 5 : index
    %c32_106 = arith.constant 32 : index
    %332 = vector.load %arg9[%c5_105, %c32_106] : memref<10x128xf32, #tpu.memory_space<vmem>>, vector<5x32xf32>
    tpu.vector_store %arg9[%c5_105, %c32_106], %331 {strides = array<i32>} : memref<10x128xf32, #tpu.memory_space<vmem>>, vector<5x32xf32>,
    %333 = vector.extract_strided_slice %314 {offsets = [6, 0, 0], sizes = [1, 5, 32], strides = [1, 1, 1]} : vector<8x5x32xf32> to vector<1x5x32xf32>
    %334 = vector.shape_cast %333 : vector<1x5x32xf32> to vector<5x32xf32>
    %c5_107 = arith.constant 5 : index
    %c64_108 = arith.constant 64 : index
    %335 = vector.load %arg9[%c5_107, %c64_108] : memref<10x128xf32, #tpu.memory_space<vmem>>, vector<5x32xf32>
    tpu.vector_store %arg9[%c5_107, %c64_108], %334 {strides = array<i32>} : memref<10x128xf32, #tpu.memory_space<vmem>>, vector<5x32xf32>,
    %336 = vector.extract_strided_slice %314 {offsets = [7, 0, 0], sizes = [1, 5, 32], strides = [1, 1, 1]} : vector<8x5x32xf32> to vector<1x5x32xf32>
    %337 = vector.shape_cast %336 : vector<1x5x32xf32> to vector<5x32xf32>
    %c5_109 = arith.constant 5 : index
    %c96_110 = arith.constant 96 : index
    %338 = vector.load %arg9[%c5_109, %c96_110] : memref<10x128xf32, #tpu.memory_space<vmem>>, vector<5x32xf32>
    tpu.vector_store %arg9[%c5_109, %c96_110], %337 {strides = array<i32>} : memref<10x128xf32, #tpu.memory_space<vmem>>, vector<5x32xf32>,
    %c0_111 = arith.constant 0 : index
    %c0_112 = arith.constant 0 : index
    %339 = vector.load %arg9[%c0_111, %c0_112] : memref<10x128xf32, #tpu.memory_space<vmem>>, vector<10x128xf32>
    %340 = arith.truncf %339 : vector<10x128xf32> to vector<10x128xbf16>
    %c1_113 = arith.constant 1 : index
    %c0_114 = arith.constant 0 : index
    %c0_115 = arith.constant 0 : index
    %341 = vector.load %arg4[%c1_113, %c0_114, %c0_115] : memref<2x128x128xbf16, #tpu.memory_space<vmem>>, vector<1x128x128xbf16>
    %342 = vector.shape_cast %341 : vector<1x128x128xbf16> to vector<128x128xbf16>
    %cst_116 = arith.constant dense<0.000000e+00> : vector<10x128xf32>
    %343 = tpu.matmul %340, %342, %cst_116 {dimension_numbers = #tpu.dot_dimension_numbers<[1], [0], [0], [1], [0, 0, 1, 1], [], []>} : vector<10x128xbf16>, vector<128x128xbf16>, vector<10x128xf32> -> vector<10x128xf32>
    %344 = vector.broadcast %215 : vector<1x128xf32> to vector<10x128xf32>
    %345 = arith.addf %343, %344 : vector<10x128xf32>
    %346 = arith.addf %209, %345 : vector<10x128xf32>
    %cst_117 = arith.constant dense<0.000000e+00> : vector<10xf32>
    %347 = vector.multi_reduction <add>, %346, %cst_117 [1] : vector<10x128xf32> to vector<10xf32>
    %348 = vector.shape_cast %347 : vector<10xf32> to vector<10x1xf32>
    %cst_118 = arith.constant 1.280000e+02 : f32
    %349 = vector.broadcast %cst_118 : f32 to vector<10x1xf32>
    %350 = arith.divf %348, %349 : vector<10x1xf32>
    %351 = vector.broadcast %350 : vector<10x1xf32> to vector<10x128xf32>
    %352 = arith.subf %346, %351 : vector<10x128xf32>
    %353 = arith.mulf %352, %352 : vector<10x128xf32>
    %cst_119 = arith.constant dense<0.000000e+00> : vector<10xf32>
    %354 = vector.multi_reduction <add>, %353, %cst_119 [1] : vector<10x128xf32> to vector<10xf32>
    %355 = vector.shape_cast %354 : vector<10xf32> to vector<10x1xf32>
    %cst_120 = arith.constant 1.280000e+02 : f32
    %356 = vector.broadcast %cst_120 : f32 to vector<10x1xf32>
    %357 = arith.divf %355, %356 : vector<10x1xf32>
    %358 = vector.broadcast %350 : vector<10x1xf32> to vector<10x128xf32>
    %359 = arith.subf %346, %358 : vector<10x128xf32>
    %cst_121 = arith.constant 9.99999997E-7 : f32
    %360 = vector.broadcast %cst_121 : f32 to vector<10x1xf32>
    %361 = arith.addf %357, %360 : vector<10x1xf32>
    %362 = math.rsqrt %361 : vector<10x1xf32>
    %363 = vector.broadcast %362 : vector<10x1xf32> to vector<10x128xf32>
    %364 = arith.mulf %359, %363 : vector<10x128xf32>
    %365 = vector.broadcast %212 : vector<1x128xf32> to vector<10x128xf32>
    %366 = arith.mulf %364, %365 : vector<10x128xf32>
    %367 = vector.broadcast %213 : vector<1x128xf32> to vector<10x128xf32>
    %368 = arith.addf %366, %367 : vector<10x128xf32>
    %369 = arith.truncf %368 : vector<10x128xf32> to vector<10x128xbf16>
    %c1_122 = arith.constant 1 : index
    %c0_123 = arith.constant 0 : index
    %c0_124 = arith.constant 0 : index
    %370 = vector.load %arg5[%c1_122, %c0_123, %c0_124] : memref<2x128x256xbf16, #tpu.memory_space<vmem>>, vector<1x128x256xbf16>
    %371 = vector.shape_cast %370 : vector<1x128x256xbf16> to vector<128x256xbf16>
    %cst_125 = arith.constant dense<0.000000e+00> : vector<10x256xf32>
    %372 = tpu.matmul %369, %371, %cst_125 {dimension_numbers = #tpu.dot_dimension_numbers<[1], [0], [0], [1], [0, 0, 1, 1], [], []>} : vector<10x128xbf16>, vector<128x256xbf16>, vector<10x256xf32> -> vector<10x256xf32>
    %373 = vector.broadcast %216 : vector<1x256xf32> to vector<10x256xf32>
    %374 = arith.addf %372, %373 : vector<10x256xf32>
    %375 = arith.mulf %374, %374 : vector<10x256xf32>
    %376 = arith.mulf %374, %375 : vector<10x256xf32>
    %cst_126 = arith.constant 4.471500e-02 : f32
    %377 = vector.broadcast %cst_126 : f32 to vector<10x256xf32>
    %378 = arith.mulf %377, %376 : vector<10x256xf32>
    %379 = arith.addf %374, %378 : vector<10x256xf32>
    %cst_127 = arith.constant 0.797884583 : f32
    %380 = vector.broadcast %cst_127 : f32 to vector<10x256xf32>
    %381 = arith.mulf %380, %379 : vector<10x256xf32>
    %382 = math.tanh %381 : vector<10x256xf32>
    %cst_128 = arith.constant 1.000000e+00 : f32
    %383 = vector.broadcast %cst_128 : f32 to vector<10x256xf32>
    %384 = arith.addf %383, %382 : vector<10x256xf32>
    %cst_129 = arith.constant 5.000000e-01 : f32
    %385 = vector.broadcast %cst_129 : f32 to vector<10x256xf32>
    %386 = arith.mulf %385, %384 : vector<10x256xf32>
    %387 = arith.mulf %374, %386 : vector<10x256xf32>
    %388 = arith.truncf %387 : vector<10x256xf32> to vector<10x256xbf16>
    %c1_130 = arith.constant 1 : index
    %c0_131 = arith.constant 0 : index
    %c0_132 = arith.constant 0 : index
    %389 = vector.load %arg6[%c1_130, %c0_131, %c0_132] : memref<2x256x128xbf16, #tpu.memory_space<vmem>>, vector<1x256x128xbf16>
    %390 = vector.shape_cast %389 : vector<1x256x128xbf16> to vector<256x128xbf16>
    %cst_133 = arith.constant dense<0.000000e+00> : vector<10x128xf32>
    %391 = tpu.matmul %388, %390, %cst_133 {dimension_numbers = #tpu.dot_dimension_numbers<[1], [0], [0], [1], [0, 0, 1, 1], [], []>} : vector<10x256xbf16>, vector<256x128xbf16>, vector<10x128xf32> -> vector<10x128xf32>
    %392 = vector.broadcast %217 : vector<1x128xf32> to vector<10x128xf32>
    %393 = arith.addf %391, %392 : vector<10x128xf32>
    %394 = arith.addf %346, %393 : vector<10x128xf32>
    %c7 = arith.constant 7 : index
    %c0_134 = arith.constant 0 : index
    %395 = vector.load %arg7[%c7, %c0_134] : memref<25x384xf32, #tpu.memory_space<vmem>>, vector<1x128xf32>
    %c8 = arith.constant 8 : index
    %c0_135 = arith.constant 0 : index
    %396 = vector.load %arg7[%c8, %c0_135] : memref<25x384xf32, #tpu.memory_space<vmem>>, vector<1x128xf32>
    %cst_136 = arith.constant dense<0.000000e+00> : vector<10xf32>
    %397 = vector.multi_reduction <add>, %394, %cst_136 [1] : vector<10x128xf32> to vector<10xf32>
    %398 = vector.shape_cast %397 : vector<10xf32> to vector<10x1xf32>
    %cst_137 = arith.constant 1.280000e+02 : f32
    %399 = vector.broadcast %cst_137 : f32 to vector<10x1xf32>
    %400 = arith.divf %398, %399 : vector<10x1xf32>
    %401 = vector.broadcast %400 : vector<10x1xf32> to vector<10x128xf32>
    %402 = arith.subf %394, %401 : vector<10x128xf32>
    %403 = arith.mulf %402, %402 : vector<10x128xf32>
    %cst_138 = arith.constant dense<0.000000e+00> : vector<10xf32>
    %404 = vector.multi_reduction <add>, %403, %cst_138 [1] : vector<10x128xf32> to vector<10xf32>
    %405 = vector.shape_cast %404 : vector<10xf32> to vector<10x1xf32>
    %cst_139 = arith.constant 1.280000e+02 : f32
    %406 = vector.broadcast %cst_139 : f32 to vector<10x1xf32>
    %407 = arith.divf %405, %406 : vector<10x1xf32>
    %408 = vector.broadcast %400 : vector<10x1xf32> to vector<10x128xf32>
    %409 = arith.subf %394, %408 : vector<10x128xf32>
    %cst_140 = arith.constant 9.99999997E-7 : f32
    %410 = vector.broadcast %cst_140 : f32 to vector<10x1xf32>
    %411 = arith.addf %407, %410 : vector<10x1xf32>
    %412 = math.rsqrt %411 : vector<10x1xf32>
    %413 = vector.broadcast %412 : vector<10x1xf32> to vector<10x128xf32>
    %414 = arith.mulf %409, %413 : vector<10x128xf32>
    %415 = vector.broadcast %395 : vector<1x128xf32> to vector<10x128xf32>
    %416 = arith.mulf %414, %415 : vector<10x128xf32>
    %417 = vector.broadcast %396 : vector<1x128xf32> to vector<10x128xf32>
    %418 = arith.addf %416, %417 : vector<10x128xf32>
    %c0_141 = arith.constant 0 : index
    %c0_142 = arith.constant 0 : index
    %c0_143 = arith.constant 0 : index
    %419 = vector.load %arg8[%c0_141, %c0_142, %c0_143] : memref<1x10x128xf32, #tpu.memory_space<vmem>>, vector<1x10x128xf32>
    %420 = vector.shape_cast %419 : vector<1x10x128xf32> to vector<10x128xf32>
    %421 = vector.shape_cast %418 : vector<10x128xf32> to vector<1x10x128xf32>
    tpu.vector_store %arg8[%c0_141, %c0_142, %c0_143], %421 {strides = array<i32>} : memref<1x10x128xf32, #tpu.memory_space<vmem>>, vector<1x10x128xf32>,
    return
  }
  func.func @transform_0(%arg0: i32) -> (i32, i32, i32) {
    %c0_i32 = arith.constant 0 : i32
    %c0_i32_0 = arith.constant 0 : i32
    %c0_i32_1 = arith.constant 0 : i32
    return %arg0, %c0_i32, %c0_i32_0 : i32, i32, i32
  }
  func.func @transform_1(%arg0: i32) -> (i32, i32) {
    %c0_i32 = arith.constant 0 : i32
    %c0_i32_0 = arith.constant 0 : i32
    %c0_i32_1 = arith.constant 0 : i32
    return %c0_i32, %c0_i32_0 : i32, i32
  }
  func.func @transform_2(%arg0: i32) -> (i32, i32, i32) {
    %c0_i32 = arith.constant 0 : i32
    %c0_i32_0 = arith.constant 0 : i32
    %c0_i32_1 = arith.constant 0 : i32
    %c0_i32_2 = arith.constant 0 : i32
    return %c0_i32, %c0_i32_0, %c0_i32_1 : i32, i32, i32
  }
  func.func @transform_3(%arg0: i32) -> (i32, i32, i32) {
    %c0_i32 = arith.constant 0 : i32
    %c0_i32_0 = arith.constant 0 : i32
    %c0_i32_1 = arith.constant 0 : i32
    %c0_i32_2 = arith.constant 0 : i32
    return %c0_i32, %c0_i32_0, %c0_i32_1 : i32, i32, i32
  }
  func.func @transform_4(%arg0: i32) -> (i32, i32, i32) {
    %c0_i32 = arith.constant 0 : i32
    %c0_i32_0 = arith.constant 0 : i32
    %c0_i32_1 = arith.constant 0 : i32
    %c0_i32_2 = arith.constant 0 : i32
    return %c0_i32, %c0_i32_0, %c0_i32_1 : i32, i32, i32
  }
  func.func @transform_5(%arg0: i32) -> (i32, i32, i32) {
    %c0_i32 = arith.constant 0 : i32
    %c0_i32_0 = arith.constant 0 : i32
    %c0_i32_1 = arith.constant 0 : i32
    %c0_i32_2 = arith.constant 0 : i32
    return %c0_i32, %c0_i32_0, %c0_i32_1 : i32, i32, i32
  }
  func.func @transform_6(%arg0: i32) -> (i32, i32) {
    %c0_i32 = arith.constant 0 : i32
    %c0_i32_0 = arith.constant 0 : i32
    %c0_i32_1 = arith.constant 0 : i32
    return %c0_i32, %c0_i32_0 : i32, i32
  }
  func.func @transform_7(%arg0: i32) -> (i32, i32, i32) {
    %c0_i32 = arith.constant 0 : i32
    %c0_i32_0 = arith.constant 0 : i32
    %c0_i32_1 = arith.constant 0 : i32
    return %arg0, %c0_i32, %c0_i32_0 : i32, i32, i32
  }
}

</mosaic_0001>

<llo_original>
// kernel: tpu_custom_call.1
$region0: #{tpu_custom_call.1}
  #allocation0 [shape = 'u32[]', space=smem, size = 0x4, offset = 0x4, fixed_abs, tag = 'smem constant byte address 0x4 - core index']
  #allocation1 [shape = 'u32[144,128]{1,0:T(1,128)}', space=vmem, size = 0x12000, scoped, tag = 'internal scratch']
  #allocation2 [shape = 'f32[10,128]{1,0:T(8,128)}', space=vmem, size = 0x2000, scoped, tag = 'scratch operand']
  %s0 = inlined_call_operand.hbm [shape: f32[1,8,256], index: 0, kind: input, shape index: {}]
  %s1 = inlined_call_operand.hbm [shape: bf16[256,128], index: 1, kind: input, shape index: {}]
  %s2 = inlined_call_operand.hbm [shape: bf16[2,128,384], index: 2, kind: input, shape index: {}]
  %s3 = inlined_call_operand.hbm [shape: bf16[2,128,128], index: 3, kind: input, shape index: {}]
  %s4 = inlined_call_operand.hbm [shape: bf16[2,128,256], index: 4, kind: input, shape index: {}]
  %s5 = inlined_call_operand.hbm [shape: bf16[2,256,128], index: 5, kind: input, shape index: {}]
  %s6 = inlined_call_operand.hbm [shape: f32[25,384], index: 6, kind: input, shape index: {}]
  %s7 = inlined_call_operand.vmem [shape: f32[1,10,128], index: 7, kind: output, shape index: {}]
  %s8 = sld [smem:[#allocation0]]
  $region66: #{tpu_custom_call.1} parent=0
    _
  %s10 = ssub.s32 1, %s8
  %s11 = scalar_select 0, %s10, %s8
  $region1: #{tpu_custom_call.1} parent=0
    #allocation3 [shape = 'u8[8192]{0}', space=vmem, size = 0x2000, scoped, tag = 'input window, operand 0, single buffered']
    #allocation4 [shape = 's32[1]{0}', space=sflag, size = 0x4, scoped, tag = 'scoped memory for tpu_custom_call.1']
    #allocation5 [shape = 'u8[65536]{0}', space=vmem, size = 0x10000, scoped, tag = 'input window, operand 1, single buffered']
    #allocation6 [shape = 's32[1]{0}', space=sflag, size = 0x4, scoped, tag = 'scoped memory for tpu_custom_call.1']
    #allocation7 [shape = 'u8[196608]{0}', space=vmem, size = 0x30000, scoped, tag = 'input window, operand 2, single buffered']
    #allocation8 [shape = 'u8[65536]{0}', space=vmem, size = 0x10000, scoped, tag = 'input window, operand 3, single buffered']
    #allocation9 [shape = 's32[1]{0}', space=sflag, size = 0x4, scoped, tag = 'scoped memory for tpu_custom_call.1']
    #allocation10 [shape = 'u8[131072]{0}', space=vmem, size = 0x20000, scoped, tag = 'input window, operand 4, single buffered']
    #allocation11 [shape = 'u8[131072]{0}', space=vmem, size = 0x20000, scoped, tag = 'input window, operand 5, single buffered']
    #allocation12 [shape = 's32[1]{0}', space=sflag, size = 0x4, scoped, tag = 'scoped memory for tpu_custom_call.1']
    #allocation13 [shape = 'u8[49152]{0}', space=vmem, size = 0xc000, scoped, tag = 'input window, operand 6, single buffered']
    %12 = vsyncpa [#allocation4], 0
    %13 = vsyncpa [#allocation6], 0
    %14 = vsyncpa [#allocation9], 0
    %15 = vsyncpa [#allocation12], 0
    // Predicated region
    $region2: #{tpu_custom_call.1} parent=1 // pred_check
      _
    $region3: #{tpu_custom_call.1} parent=1 // pred_check_branch
      %17 = sbr.rel (0) target = $region5
    $region4: #{tpu_custom_call.1} parent=1 // pred_region
      %s19 = ssub.s32 256, 256
      %20 = vsyncadd [#allocation4], %s19
      %s22 = sshll.u32 [#allocation3], 4
      %s23 = int_to_ptr.vmem [resolvable:$true] %s22
      %25 = dma.hbm_to_vmem [thread:$0]  %s0, 256, %s23, [#allocation4]
    $region5: #{tpu_custom_call.1} parent=1 // pred_fallthru
      _
    // Predicated region
    $region6: #{tpu_custom_call.1} parent=1 // pred_check
      _
    $region7: #{tpu_custom_call.1} parent=1 // pred_check_branch
      %27 = sbr.rel (0) target = $region9
    $region8: #{tpu_custom_call.1} parent=1 // pred_region
      %s29 = ssub.s32 2048, 2048
      %30 = vsyncadd [#allocation6], %s29
      %s31 = sshll.u32 [#allocation5], 4
      %s32 = int_to_ptr.vmem [resolvable:$true] %s31
      %37 = dma.hbm_to_vmem [thread:$0]  %s1, 2048, %s32, [#allocation6], 64, 64, 4
    $region9: #{tpu_custom_call.1} parent=1 // pred_fallthru
      _
    // Predicated region
    $region10: #{tpu_custom_call.1} parent=1 // pred_check
      _
    $region11: #{tpu_custom_call.1} parent=1 // pred_check_branch
      %39 = sbr.rel (0) target = $region13
    $region12: #{tpu_custom_call.1} parent=1 // pred_region
      %s41 = ssub.s32 6144, 6144
      %42 = vsyncadd [#allocation6], %s41
      %s43 = sshll.u32 [#allocation7], 4
      %s44 = int_to_ptr.vmem [resolvable:$true] %s43
      %49 = dma.hbm_to_vmem [thread:$0]  %s2, 6144, %s44, [#allocation6], 192, 192, 12
    $region13: #{tpu_custom_call.1} parent=1 // pred_fallthru
      _
    // Predicated region
    $region14: #{tpu_custom_call.1} parent=1 // pred_check
      _
    $region15: #{tpu_custom_call.1} parent=1 // pred_check_branch
      %51 = sbr.rel (0) target = $region17
    $region16: #{tpu_custom_call.1} parent=1 // pred_region
      %s53 = ssub.s32 2048, 2048
      %54 = vsyncadd [#allocation9], %s53
      %s55 = sshll.u32 [#allocation8], 4
      %s56 = int_to_ptr.vmem [resolvable:$true] %s55
      %61 = dma.hbm_to_vmem [thread:$0]  %s3, 2048, %s56, [#allocation9], 64, 64, 4
    $region17: #{tpu_custom_call.1} parent=1 // pred_fallthru
      _
    // Predicated region
    $region18: #{tpu_custom_call.1} parent=1 // pred_check
      _
    $region19: #{tpu_custom_call.1} parent=1 // pred_check_branch
      %63 = sbr.rel (0) target = $region21
    $region20: #{tpu_custom_call.1} parent=1 // pred_region
      %s65 = ssub.s32 4096, 4096
      %66 = vsyncadd [#allocation9], %s65
      %s67 = sshll.u32 [#allocation10], 4
      %s68 = int_to_ptr.vmem [resolvable:$true] %s67
      %73 = dma.hbm_to_vmem [thread:$0]  %s4, 4096, %s68, [#allocation9], 128, 128, 8
    $region21: #{tpu_custom_call.1} parent=1 // pred_fallthru
      _
    // Predicated region
    $region22: #{tpu_custom_call.1} parent=1 // pred_check
      _
    $region23: #{tpu_custom_call.1} parent=1 // pred_check_branch
      %75 = sbr.rel (0) target = $region25
    $region24: #{tpu_custom_call.1} parent=1 // pred_region
      %s77 = ssub.s32 4096, 4096
      %78 = vsyncadd [#allocation12], %s77
      %s79 = sshll.u32 [#allocation11], 4
      %s80 = int_to_ptr.vmem [resolvable:$true] %s79
      %85 = dma.hbm_to_vmem [thread:$0]  %s5, 4096, %s80, [#allocation12], 64, 64, 4
    $region25: #{tpu_custom_call.1} parent=1 // pred_fallthru
      _
    // Predicated region
    $region26: #{tpu_custom_call.1} parent=1 // pred_check
      _
    $region27: #{tpu_custom_call.1} parent=1 // pred_check_branch
      %87 = sbr.rel (0) target = $region29
    $region28: #{tpu_custom_call.1} parent=1 // pred_region
      %s89 = ssub.s32 1536, 1536
      %90 = vsyncadd [#allocation12], %s89
      %s91 = sshll.u32 [#allocation13], 4
      %s92 = int_to_ptr.vmem [resolvable:$true] %s91
      %97 = dma.hbm_to_vmem [thread:$0]  %s6, 1536, %s92, [#allocation12], 384, 384, 24
    $region29: #{tpu_custom_call.1} parent=1 // pred_fallthru
      _
    // Predicated region
    $region30: #{tpu_custom_call.1} parent=1 // pred_check
      _
    $region31: #{tpu_custom_call.1} parent=1 // pred_check_branch
      %99 = sbr.rel (0) target = $region33
    $region32: #{tpu_custom_call.1} parent=1 // pred_region
      %100 = dma.done [#allocation4], 256
    $region33: #{tpu_custom_call.1} parent=1 // pred_fallthru
      _
    // Predicated region
    $region34: #{tpu_custom_call.1} parent=1 // pred_check
      _
    $region35: #{tpu_custom_call.1} parent=1 // pred_check_branch
      %102 = sbr.rel (0) target = $region37
    $region36: #{tpu_custom_call.1} parent=1 // pred_region
      %103 = dma.done [#allocation6], 2048
    $region37: #{tpu_custom_call.1} parent=1 // pred_fallthru
      _
    // Predicated region
    $region38: #{tpu_custom_call.1} parent=1 // pred_check
      _
    $region39: #{tpu_custom_call.1} parent=1 // pred_check_branch
      %105 = sbr.rel (0) target = $region41
    $region40: #{tpu_custom_call.1} parent=1 // pred_region
      %106 = dma.done [#allocation6], 6144
    $region41: #{tpu_custom_call.1} parent=1 // pred_fallthru
      _
    // Predicated region
    $region42: #{tpu_custom_call.1} parent=1 // pred_check
      _
    $region43: #{tpu_custom_call.1} parent=1 // pred_check_branch
      %108 = sbr.rel (0) target = $region45
    $region44: #{tpu_custom_call.1} parent=1 // pred_region
      %109 = dma.done [#allocation9], 2048
    $region45: #{tpu_custom_call.1} parent=1 // pred_fallthru
      _
    // Predicated region
    $region46: #{tpu_custom_call.1} parent=1 // pred_check
      _
    $region47: #{tpu_custom_call.1} parent=1 // pred_check_branch
      %111 = sbr.rel (0) target = $region49
    $region48: #{tpu_custom_call.1} parent=1 // pred_region
      %112 = dma.done [#allocation9], 4096
    $region49: #{tpu_custom_call.1} parent=1 // pred_fallthru
      _
    // Predicated region
    $region50: #{tpu_custom_call.1} parent=1 // pred_check
      _
    $region51: #{tpu_custom_call.1} parent=1 // pred_check_branch
      %114 = sbr.rel (0) target = $region53
    $region52: #{tpu_custom_call.1} parent=1 // pred_region
      %115 = dma.done [#allocation12], 4096
    $region53: #{tpu_custom_call.1} parent=1 // pred_fallthru
      _
    // Predicated region
    $region54: #{tpu_custom_call.1} parent=1 // pred_check
      _
    $region55: #{tpu_custom_call.1} parent=1 // pred_check_branch
      %117 = sbr.rel (0) target = $region57
    $region56: #{tpu_custom_call.1} parent=1 // pred_region
      %118 = dma.done [#allocation12], 1536
    $region57: #{tpu_custom_call.1} parent=1 // pred_fallthru
      _
    %v120 = vld [vmem:[#allocation3] sm:$0xff]
    %v121 = vld [vmem:[#allocation3 + $0x8] sm:$0xff]
    %v122 = vpack.c.bf16 %v120, %v120
    %v123 = vpack.c.bf16 %v121, %v121
    %v124 = vld [vmem:[#allocation5] sm:$0xf]
    %v125 = vld [vmem:[#allocation5 + $0x4] sm:$0xf]
    %v126 = vld [vmem:[#allocation5 + $0x8] sm:$0xf]
    %v127 = vld [vmem:[#allocation5 + $0xc] sm:$0xf]
    %v128 = vld [vmem:[#allocation5 + $0x10] sm:$0xf]
    %v129 = vld [vmem:[#allocation5 + $0x14] sm:$0xf]
    %v130 = vld [vmem:[#allocation5 + $0x18] sm:$0xf]
    %v131 = vld [vmem:[#allocation5 + $0x1c] sm:$0xf]
    %v132 = vld [vmem:[#allocation5 + $0x20] sm:$0xf]
    %v133 = vld [vmem:[#allocation5 + $0x24] sm:$0xf]
    %v134 = vld [vmem:[#allocation5 + $0x28] sm:$0xf]
    %v135 = vld [vmem:[#allocation5 + $0x2c] sm:$0xf]
    %v136 = vld [vmem:[#allocation5 + $0x30] sm:$0xf]
    %v137 = vld [vmem:[#allocation5 + $0x34] sm:$0xf]
    %v138 = vld [vmem:[#allocation5 + $0x38] sm:$0xf]
    %v139 = vld [vmem:[#allocation5 + $0x3c] sm:$0xf]
    %v140 = vld [vmem:[#allocation5 + $0x40] sm:$0xf]
    %v141 = vld [vmem:[#allocation5 + $0x44] sm:$0xf]
    %v142 = vld [vmem:[#allocation5 + $0x48] sm:$0xf]
    %v143 = vld [vmem:[#allocation5 + $0x4c] sm:$0xf]
    %v144 = vld [vmem:[#allocation5 + $0x50] sm:$0xf]
    %v145 = vld [vmem:[#allocation5 + $0x54] sm:$0xf]
    %v146 = vld [vmem:[#allocation5 + $0x58] sm:$0xf]
    %v147 = vld [vmem:[#allocation5 + $0x5c] sm:$0xf]
    %v148 = vld [vmem:[#allocation5 + $0x60] sm:$0xf]
    %v149 = vld [vmem:[#allocation5 + $0x64] sm:$0xf]
    %v150 = vld [vmem:[#allocation5 + $0x68] sm:$0xf]
    %v151 = vld [vmem:[#allocation5 + $0x6c] sm:$0xf]
    %v152 = vld [vmem:[#allocation5 + $0x70] sm:$0xf]
    %v153 = vld [vmem:[#allocation5 + $0x74] sm:$0xf]
    %v154 = vld [vmem:[#allocation5 + $0x78] sm:$0xf]
    %v155 = vld [vmem:[#allocation5 + $0x7c] sm:$0xf]
    %v156 = vld [vmem:[#allocation13 + $0x6] ss:$0 sm:$0xff]
    %v189 = vunpack.c.l.b16 %v124
    %v190 = vunpack.c.l.b16 %v125
    %v191 = vunpack.c.l.b16 %v126
    %v192 = vunpack.c.l.b16 %v127
    %v193 = vunpack.c.l.b16 %v128
    %v194 = vunpack.c.l.b16 %v129
    %v195 = vunpack.c.l.b16 %v130
    %v196 = vunpack.c.l.b16 %v131
    %v197 = vunpack.c.l.b16 %v132
    %v198 = vunpack.c.l.b16 %v133
    %v199 = vunpack.c.l.b16 %v134
    %v200 = vunpack.c.l.b16 %v135
    %v201 = vunpack.c.l.b16 %v136
    %v202 = vunpack.c.l.b16 %v137
    %v203 = vunpack.c.l.b16 %v138
    %v204 = vunpack.c.l.b16 %v139
    %v205 = vunpack.c.l.b16 %v140
    %v206 = vunpack.c.l.b16 %v141
    %v207 = vunpack.c.l.b16 %v142
    %v208 = vunpack.c.l.b16 %v143
    %v209 = vunpack.c.l.b16 %v144
    %v210 = vunpack.c.l.b16 %v145
    %v211 = vunpack.c.l.b16 %v146
    %v212 = vunpack.c.l.b16 %v147
    %v213 = vunpack.c.l.b16 %v148
    %v214 = vunpack.c.l.b16 %v149
    %v215 = vunpack.c.l.b16 %v150
    %v216 = vunpack.c.l.b16 %v151
    %v217 = vunpack.c.l.b16 %v152
    %v218 = vunpack.c.l.b16 %v153
    %v219 = vunpack.c.l.b16 %v154
    %v220 = vunpack.c.l.b16 %v155
    %v221 = vpack.c.b16 %v190, %v189
    %v222 = vpack.c.b16 %v192, %v191
    %v223 = vpack.c.b16 %v194, %v193
    %v224 = vpack.c.b16 %v196, %v195
    %v225 = vpack.c.b16 %v198, %v197
    %v226 = vpack.c.b16 %v200, %v199
    %v227 = vpack.c.b16 %v202, %v201
    %v228 = vpack.c.b16 %v204, %v203
    %v229 = vpack.c.b16 %v206, %v205
    %v230 = vpack.c.b16 %v208, %v207
    %v231 = vpack.c.b16 %v210, %v209
    %v232 = vpack.c.b16 %v212, %v211
    %v233 = vpack.c.b16 %v214, %v213
    %v234 = vpack.c.b16 %v216, %v215
    %v235 = vpack.c.b16 %v218, %v217
    %v236 = vpack.c.b16 %v220, %v219
    %253 = vmatprep.subr.bf16.mxu0 0
    %254 = vmatpush1.bf16.msra.mxu0 %v228
    %255 = vmatprep.subr.bf16.mxu0 0
    %256 = vmatpush1.bf16.msra.mxu0 %v227
    %257 = vmatprep.subr.bf16.mxu0 0
    %258 = vmatpush1.bf16.msra.mxu0 %v226
    %259 = vmatprep.subr.bf16.mxu0 0
    %260 = vmatpush1.bf16.msra.mxu0 %v225
    %261 = vmatprep.subr.bf16.mxu0 0
    %262 = vmatpush1.bf16.msra.mxu0 %v224
    %263 = vmatprep.subr.bf16.mxu0 0
    %264 = vmatpush1.bf16.msra.mxu0 %v223
    %265 = vmatprep.subr.bf16.mxu0 0
    %266 = vmatpush1.bf16.msra.mxu0 %v222
    %267 = vmatprep.subr.bf16.mxu0 0
    %268 = vmatpush1.bf16.msra.mxu0 %v221
    %269 = vmatprep.subr.bf16.mxu0 0
    %270 = vmatpush2.bf16.msra.mxu0 %v236
    %271 = vmatprep.subr.bf16.mxu0 0
    %272 = vmatpush2.bf16.msra.mxu0 %v235
    %273 = vmatprep.subr.bf16.mxu0 0
    %274 = vmatpush2.bf16.msra.mxu0 %v234
    %275 = vmatprep.subr.bf16.mxu0 0
    %276 = vmatpush2.bf16.msra.mxu0 %v233
    %277 = vmatprep.subr.bf16.mxu0 0
    %278 = vmatpush2.bf16.msra.mxu0 %v232
    %279 = vmatprep.subr.bf16.mxu0 0
    %280 = vmatpush2.bf16.msra.mxu0 %v231
    %281 = vmatprep.subr.bf16.mxu0 0
    %282 = vmatpush2.bf16.msra.mxu0 %v230
    %283 = vmatprep.subr.bf16.mxu0 0
    %284 = vmatpush2.bf16.msra.mxu0 %v229
    %285 = vmatprep.mubr.bf16.mxu0 %v123
    %286 = vmatmul.mubr.bf16.gmra.mxu0 %v122
    %v287 = vpop.f32.mrf.mxu0
    %v288 = vadd.f32 %v156, %v287
    %v289 = vpop.f32.mrf.mxu0
    %v290 = vpop.f32.mrf.mxu0
    %v291 = vpop.f32.mrf.mxu0
    %292 = vdwg.mxu0
    %v293 = vld [vmem:[#allocation13] ss:$0 sm:$0xff]
    %v294 = vld [vmem:[#allocation13] sm:$0x3e]
    %v295 = vadd.f32 %v293, %v294
    %296 = vst [vmem:[#allocation2 - $0x1] sm:$0x2] %v295
    %v298 = vrot.slane %v294, 2
    %v300 = vadd.f32 %v288, %v298
    %301 = vst [vmem:[#allocation2 + $0x1] sm:$0xf] %v300
    %302 = vst [vmem:[#allocation2 + $0x4] sm:$0x2] %v295
    %v303 = vrot.slane %v294, 6
    %v305 = vadd.f32 %v288, %v303
    %306 = vst [vmem:[#allocation2 + $0x2] sm:$0xf0] %v305
    %v307 = vld [vmem:[#allocation2] sm:$0xff]
    %v308 = vld [vmem:[#allocation2 + $0x8] sm:$0x3]
    %v309 = vld [vmem:[#allocation13 + $0x19] ss:$0 sm:$0xff]
    %v310 = vld [vmem:[#allocation13 + $0x1a] ss:$0 sm:$0xff]
    %v311 = vld [vmem:[#allocation13 + $0x1b] ss:$0 sm:$0xff]
    %v312 = vld [vmem:[#allocation13 + $0x1c] ss:$0 sm:$0xff]
    %s313 = scalar_lea.vmem [#allocation13], 29
    %v314 = vld [vmem:[%s313] ss:$8 sm:$0x7]
    %v315 = vld [vmem:[#allocation13 + $0x1e] ss:$0 sm:$0xff]
    %s316 = scalar_lea.vmem [#allocation13], 31
    %v317 = vld [vmem:[%s316] ss:$8 sm:$0x3]
    %v318 = vld [vmem:[#allocation13 + $0x30] ss:$0 sm:$0xff]
    %319 = vadd.xlane.f32.xlu0 %v307
    %v320 = vpop.xlane.xlu0 %319
    %vm321 = vcmask 1041408
    %v322 = vsel %vm321, %v308, 0.0
    %323 = vadd.xlane.f32.xlu0 %v322
    %v324 = vpop.xlane.xlu0 %323
    %v325 = vrcp.pop 128.0
    %v326 = vmul.f32 %v320, %v325
    %v327 = vmul.f32 %v324, %v325
    %v328 = vsub.f32 %v307, %v326
    %v329 = vsub.f32 %v308, %v327
    %v330 = vmul.f32 %v328, %v328
    %v331 = vmul.f32 %v329, %v329
    %332 = vadd.xlane.f32.xlu0 %v330
    %v333 = vpop.xlane.xlu0 %332
    %v334 = vsel %vm321, %v331, 0.0
    %335 = vadd.xlane.f32.xlu0 %v334
    %v336 = vpop.xlane.xlu0 %335
    %v337 = vmul.f32 %v333, %v325
    %v338 = vmul.f32 %v336, %v325
    %v339 = vadd.f32 %v337, 1e-06
    %v340 = vadd.f32 %v338, 1e-06
    %v341 = vrsqrt.pop %v339
    %v342 = vrsqrt.pop %v340
    %v343 = vmul.f32 %v328, %v341
    %v344 = vmul.f32 %v329, %v342
    %v345 = vmul.f32 %v343, %v309
    %v346 = vmul.f32 %v344, %v309
    %v347 = vadd.f32 %v345, %v310
    %v348 = vadd.f32 %v346, %v310
    %v349 = vpack.c.bf16 %v348, %v347
    %v350 = vld [vmem:[#allocation7] sm:$0xff]
    %v351 = vld [vmem:[#allocation7 + $0x8] sm:$0xf]
    %v352 = vld [vmem:[#allocation7 + $0xc] sm:$0xff]
    %v353 = vld [vmem:[#allocation7 + $0x14] sm:$0xf]
    %v354 = vld [vmem:[#allocation7 + $0x18] sm:$0xff]
    %v355 = vld [vmem:[#allocation7 + $0x20] sm:$0xf]
    %v356 = vld [vmem:[#allocation7 + $0x24] sm:$0xff]
    %v357 = vld [vmem:[#allocation7 + $0x2c] sm:$0xf]
    %v358 = vld [vmem:[#allocation7 + $0x30] sm:$0xff]
    %v359 = vld [vmem:[#allocation7 + $0x38] sm:$0xf]
    %v360 = vld [vmem:[#allocation7 + $0x3c] sm:$0xff]
    %v361 = vld [vmem:[#allocation7 + $0x44] sm:$0xf]
    %v362 = vld [vmem:[#allocation7 + $0x48] sm:$0xff]
    %v363 = vld [vmem:[#allocation7 + $0x50] sm:$0xf]
    %v364 = vld [vmem:[#allocation7 + $0x54] sm:$0xff]
    %v365 = vld [vmem:[#allocation7 + $0x5c] sm:$0xf]
    %v366 = vld [vmem:[#allocation7 + $0x60] sm:$0xff]
    %v367 = vld [vmem:[#allocation7 + $0x68] sm:$0xf]
    %v368 = vld [vmem:[#allocation7 + $0x6c] sm:$0xff]
    %v369 = vld [vmem:[#allocation7 + $0x74] sm:$0xf]
    %v370 = vld [vmem:[#allocation7 + $0x78] sm:$0xff]
    %v371 = vld [vmem:[#allocation7 + $0x80] sm:$0xf]
    %v372 = vld [vmem:[#allocation7 + $0x84] sm:$0xff]
    %v373 = vld [vmem:[#allocation7 + $0x8c] sm:$0xf]
    %v374 = vld [vmem:[#allocation7 + $0x90] sm:$0xff]
    %v375 = vld [vmem:[#allocation7 + $0x98] sm:$0xf]
    %v376 = vld [vmem:[#allocation7 + $0x9c] sm:$0xff]
    %v377 = vld [vmem:[#allocation7 + $0xa4] sm:$0xf]
    %v378 = vld [vmem:[#allocation7 + $0xa8] sm:$0xff]
    %v379 = vld [vmem:[#allocation7 + $0xb0] sm:$0xf]
    %v380 = vld [vmem:[#allocation7 + $0xb4] sm:$0xff]
    %v381 = vld [vmem:[#allocation7 + $0xbc] sm:$0xf]
    %v383 = vlaneseq
    %v384 = vshrl.u32 %v383, 7
    %v385 = vsub.s32 0, %v384
    %v386 = vrot.slane %v314, %v385
    %v387 = vlaneseq
    %v388 = vshrl.u32 %v387, 7
    %v389 = vsub.s32 1, %v388
    %v390 = vrot.slane %v314, %v389
    %v391 = vlaneseq
    %v392 = vshrl.u32 %v391, 7
    %v393 = vsub.s32 2, %v392
    %v394 = vrot.slane %v314, %v393
    %v430 = vunpack.c.l.b16 %v350
    %v431 = vunpack.c.h.b16 %v350
    %v432 = vunpack.c.l.b16 %v351
    %v433 = vunpack.c.l.b16 %v352
    %v434 = vunpack.c.h.b16 %v352
    %v435 = vunpack.c.l.b16 %v353
    %v436 = vunpack.c.l.b16 %v354
    %v437 = vunpack.c.h.b16 %v354
    %v438 = vunpack.c.l.b16 %v355
    %v439 = vunpack.c.l.b16 %v356
    %v440 = vunpack.c.h.b16 %v356
    %v441 = vunpack.c.l.b16 %v357
    %v442 = vunpack.c.l.b16 %v358
    %v443 = vunpack.c.h.b16 %v358
    %v444 = vunpack.c.l.b16 %v359
    %v445 = vunpack.c.l.b16 %v360
    %v446 = vunpack.c.h.b16 %v360
    %v447 = vunpack.c.l.b16 %v361
    %v448 = vunpack.c.l.b16 %v362
    %v449 = vunpack.c.h.b16 %v362
    %v450 = vunpack.c.l.b16 %v363
    %v451 = vunpack.c.l.b16 %v364
    %v452 = vunpack.c.h.b16 %v364
    %v453 = vunpack.c.l.b16 %v365
    %v454 = vunpack.c.l.b16 %v366
    %v455 = vunpack.c.h.b16 %v366
    %v456 = vunpack.c.l.b16 %v367
    %v457 = vunpack.c.l.b16 %v368
    %v458 = vunpack.c.h.b16 %v368
    %v459 = vunpack.c.l.b16 %v369
    %v460 = vunpack.c.l.b16 %v370
    %v461 = vunpack.c.h.b16 %v370
    %v462 = vunpack.c.l.b16 %v371
    %v463 = vunpack.c.l.b16 %v372
    %v464 = vunpack.c.h.b16 %v372
    %v465 = vunpack.c.l.b16 %v373
    %v466 = vunpack.c.l.b16 %v374
    %v467 = vunpack.c.h.b16 %v374
    %v468 = vunpack.c.l.b16 %v375
    %v469 = vunpack.c.l.b16 %v376
    %v470 = vunpack.c.h.b16 %v376
    %v471 = vunpack.c.l.b16 %v377
    %v472 = vunpack.c.l.b16 %v378
    %v473 = vunpack.c.h.b16 %v378
    %v474 = vunpack.c.l.b16 %v379
    %v475 = vunpack.c.l.b16 %v380
    %v476 = vunpack.c.h.b16 %v380
    %v477 = vunpack.c.l.b16 %v381
    %v478 = vpack.c.b16 %v433, %v430
    %v479 = vpack.c.b16 %v434, %v431
    %v480 = vpack.c.b16 %v435, %v432
    %v481 = vpack.c.b16 %v439, %v436
    %v482 = vpack.c.b16 %v440, %v437
    %v483 = vpack.c.b16 %v441, %v438
    %v484 = vpack.c.b16 %v445, %v442
    %v485 = vpack.c.b16 %v446, %v443
    %v486 = vpack.c.b16 %v447, %v444
    %v487 = vpack.c.b16 %v451, %v448
    %v488 = vpack.c.b16 %v452, %v449
    %v489 = vpack.c.b16 %v453, %v450
    %v490 = vpack.c.b16 %v457, %v454
    %v491 = vpack.c.b16 %v458, %v455
    %v492 = vpack.c.b16 %v459, %v456
    %v493 = vpack.c.b16 %v463, %v460
    %v494 = vpack.c.b16 %v464, %v461
    %v495 = vpack.c.b16 %v465, %v462
    %v496 = vpack.c.b16 %v469, %v466
    %v497 = vpack.c.b16 %v470, %v467
    %v498 = vpack.c.b16 %v471, %v468
    %v499 = vpack.c.b16 %v475, %v472
    %v500 = vpack.c.b16 %v476, %v473
    %v501 = vpack.c.b16 %v477, %v474
    %526 = vmatprep.subr.bf16.mxu0 %v500
    %527 = vmatpush1.bf16.msra.mxu0 %v499
    %528 = vmatprep.subr.bf16.mxu0 %v497
    %529 = vmatpush1.bf16.msra.mxu0 %v496
    %530 = vmatprep.subr.bf16.mxu0 %v494
    %531 = vmatpush1.bf16.msra.mxu0 %v493
    %532 = vmatprep.subr.bf16.mxu0 %v491
    %533 = vmatpush1.bf16.msra.mxu0 %v490
    %534 = vmatprep.subr.bf16.mxu0 %v488
    %535 = vmatpush1.bf16.msra.mxu0 %v487
    %536 = vmatprep.subr.bf16.mxu0 %v485
    %537 = vmatpush1.bf16.msra.mxu0 %v484
    %538 = vmatprep.subr.bf16.mxu0 %v482
    %539 = vmatpush1.bf16.msra.mxu0 %v481
    %540 = vmatprep.subr.bf16.mxu0 %v479
    %541 = vmatpush1.bf16.msra.mxu0 %v478
    %542 = vmatprep.subr.bf16.mxu0 0
    %543 = vmatpush2.bf16.msra.mxu0 0
    %544 = vmatprep.subr.bf16.mxu0 0
    %545 = vmatpush2.bf16.msra.mxu0 0
    %546 = vmatprep.subr.bf16.mxu0 0
    %547 = vmatpush2.bf16.msra.mxu0 0
    %548 = vmatprep.subr.bf16.mxu0 0
    %549 = vmatpush2.bf16.msra.mxu0 0
    %550 = vmatprep.subr.bf16.mxu0 0
    %551 = vmatpush2.bf16.msra.mxu0 0
    %552 = vmatprep.subr.bf16.mxu0 0
    %553 = vmatpush2.bf16.msra.mxu0 0
    %554 = vmatprep.subr.bf16.mxu0 0
    %555 = vmatpush2.bf16.msra.mxu0 0
    %556 = vmatprep.subr.bf16.mxu0 0
    %557 = vmatpush2.bf16.msra.mxu0 0
    %558 = vmatprep.mubr.bf16.mxu0 0
    %559 = vmatmul.mubr.bf16.gmra.mxu0 %v349
    %v560 = vpop.f32.mrf.mxu0
    %v561 = vadd.f32 %v386, %v560
    %v562 = vpop.f32.mrf.mxu0
    %v563 = vadd.f32 %v390, %v562
    %v564 = vpop.f32.mrf.mxu0
    %v565 = vadd.f32 %v386, %v564
    %v566 = vpop.f32.mrf.mxu0
    %v567 = vadd.f32 %v390, %v566
    %568 = vdwg.mxu0
    %569 = vmatprep.subr.bf16.mxu0 0
    %570 = vmatpush1.bf16.msra.mxu0 %v501
    %571 = vmatprep.subr.bf16.mxu0 0
    %572 = vmatpush1.bf16.msra.mxu0 %v498
    %573 = vmatprep.subr.bf16.mxu0 0
    %574 = vmatpush1.bf16.msra.mxu0 %v495
    %575 = vmatprep.subr.bf16.mxu0 0
    %576 = vmatpush1.bf16.msra.mxu0 %v492
    %577 = vmatprep.subr.bf16.mxu0 0
    %578 = vmatpush1.bf16.msra.mxu0 %v489
    %579 = vmatprep.subr.bf16.mxu0 0
    %580 = vmatpush1.bf16.msra.mxu0 %v486
    %581 = vmatprep.subr.bf16.mxu0 0
    %582 = vmatpush1.bf16.msra.mxu0 %v483
    %583 = vmatprep.subr.bf16.mxu0 0
    %584 = vmatpush1.bf16.msra.mxu0 %v480
    %585 = vmatprep.subr.bf16.mxu0 0
    %586 = vmatpush2.bf16.msra.mxu0 0
    %587 = vmatprep.subr.bf16.mxu0 0
    %588 = vmatpush2.bf16.msra.mxu0 0
    %589 = vmatprep.subr.bf16.mxu0 0
    %590 = vmatpush2.bf16.msra.mxu0 0
    %591 = vmatprep.subr.bf16.mxu0 0
    %592 = vmatpush2.bf16.msra.mxu0 0
    %593 = vmatprep.subr.bf16.mxu0 0
    %594 = vmatpush2.bf16.msra.mxu0 0
    %595 = vmatprep.subr.bf16.mxu0 0
    %596 = vmatpush2.bf16.msra.mxu0 0
    %597 = vmatprep.subr.bf16.mxu0 0
    %598 = vmatpush2.bf16.msra.mxu0 0
    %599 = vmatprep.subr.bf16.mxu0 0
    %600 = vmatpush2.bf16.msra.mxu0 0
    %601 = vmatprep.mubr.bf16.mxu0 0
    %602 = vmatmul.mubr.bf16.gmra.mxu0 %v349
    %v603 = vpop.f32.mrf.mxu0
    %v604 = vadd.f32 %v394, %v603
    %v605 = vpop.f32.mrf.mxu0
    %v606 = vpop.f32.mrf.mxu0
    %v607 = vadd.f32 %v394, %v606
    %v608 = vpop.f32.mrf.mxu0
    %609 = vdwg.mxu0
    %611 = vrot.lane.b32.xlu0 %v561, 96
    %v612 = vpop.permute.xlu0 %611
    %614 = vrot.lane.b32.xlu0 %v561, 64
    %v615 = vpop.permute.xlu0 %614
    %617 = vrot.lane.b32.xlu0 %v561, 32
    %v618 = vpop.permute.xlu0 %617
    %vm621 = vcmask 1042432
    %v622 = vrot.slane %v561, 5
    %v623 = vrot.slane %v565, 5
    %v624 = vsel %vm621, %v622, %v623
    %626 = vrot.lane.b32.xlu0 %v624, 96
    %v627 = vpop.permute.xlu0 %626
    %629 = vrot.lane.b32.xlu0 %v624, 64
    %v630 = vpop.permute.xlu0 %629
    %632 = vrot.lane.b32.xlu0 %v624, 32
    %v633 = vpop.permute.xlu0 %632
    %636 = vrot.lane.b32.xlu0 %v563, 96
    %v637 = vpop.permute.xlu0 %636
    %639 = vrot.lane.b32.xlu0 %v563, 64
    %v640 = vpop.permute.xlu0 %639
    %642 = vrot.lane.b32.xlu0 %v563, 32
    %v643 = vpop.permute.xlu0 %642
    %v646 = vrot.slane %v563, 5
    %v647 = vrot.slane %v567, 5
    %v648 = vsel %vm621, %v646, %v647
    %650 = vrot.lane.b32.xlu0 %v648, 96
    %v651 = vpop.permute.xlu0 %650
    %653 = vrot.lane.b32.xlu0 %v648, 64
    %v654 = vpop.permute.xlu0 %653
    %656 = vrot.lane.b32.xlu0 %v648, 32
    %v657 = vpop.permute.xlu0 %656
    %660 = vrot.lane.b32.xlu0 %v604, 96
    %v661 = vpop.permute.xlu0 %660
    %663 = vrot.lane.b32.xlu0 %v604, 64
    %v664 = vpop.permute.xlu0 %663
    %666 = vrot.lane.b32.xlu0 %v604, 32
    %v667 = vpop.permute.xlu0 %666
    %v670 = vrot.slane %v604, 5
    %v671 = vrot.slane %v607, 5
    %v672 = vsel %vm621, %v670, %v671
    %674 = vrot.lane.b32.xlu0 %v672, 96
    %v675 = vpop.permute.xlu0 %674
    %677 = vrot.lane.b32.xlu0 %v672, 64
    %v678 = vpop.permute.xlu0 %677
    %680 = vrot.lane.b32.xlu0 %v672, 32
    %v681 = vpop.permute.xlu0 %680
    %v683 = vpack.c.bf16 %v561, %v561
    %v684 = vpack.c.bf16 %v612, %v612
    %v685 = vpack.c.bf16 %v615, %v615
    %v686 = vpack.c.bf16 %v618, %v618
    %v687 = vpack.c.bf16 %v624, %v624
    %v688 = vpack.c.bf16 %v627, %v627
    %v689 = vpack.c.bf16 %v630, %v630
    %v690 = vpack.c.bf16 %v633, %v633
    %v691 = vpack.c.bf16 %v563, %v563
    %v692 = vpack.c.bf16 %v637, %v637
    %v693 = vpack.c.bf16 %v640, %v640
    %v694 = vpack.c.bf16 %v643, %v643
    %v695 = vpack.c.bf16 %v648, %v648
    %v696 = vpack.c.bf16 %v651, %v651
    %v697 = vpack.c.bf16 %v654, %v654
    %v698 = vpack.c.bf16 %v657, %v657
    %vm699 = vcmask 261120
    %v701 = vsel %vm699, %v683, 0
    %v704 = vsel %vm699, %v691, 0
    %706 = vmatprep.subr.bf16.mxu0 0
    %707 = vmatpush1.bf16.xpose.msra.mxu0 0
    %708 = vmatprep.subr.bf16.mxu0 0
    %709 = vmatpush1.bf16.xpose.msra.mxu0 0
    %710 = vmatprep.subr.bf16.mxu0 0
    %711 = vmatpush1.bf16.xpose.msra.mxu0 0
    %712 = vmatprep.subr.bf16.mxu0 0
    %713 = vmatpush1.bf16.xpose.msra.mxu0 0
    %714 = vmatprep.subr.bf16.mxu0 0
    %715 = vmatpush1.bf16.xpose.msra.mxu0 0
    %716 = vmatprep.subr.bf16.mxu0 0
    %717 = vmatpush1.bf16.xpose.msra.mxu0 0
    %718 = vmatprep.subr.bf16.mxu0 0
    %719 = vmatpush1.bf16.xpose.msra.mxu0 0
    %720 = vmatprep.subr.bf16.mxu0 0
    %721 = vmatpush1.bf16.xpose.msra.mxu0 %v704
    %722 = vmatprep.subr.bf16.mxu0 0
    %723 = vmatpush2.bf16.xpose.msra.mxu0 0
    %724 = vmatprep.subr.bf16.mxu0 0
    %725 = vmatpush2.bf16.xpose.msra.mxu0 0
    %726 = vmatprep.subr.bf16.mxu0 0
    %727 = vmatpush2.bf16.xpose.msra.mxu0 0
    %728 = vmatprep.subr.bf16.mxu0 0
    %729 = vmatpush2.bf16.xpose.msra.mxu0 0
    %730 = vmatprep.subr.bf16.mxu0 0
    %731 = vmatpush2.bf16.xpose.msra.mxu0 0
    %732 = vmatprep.subr.bf16.mxu0 0
    %733 = vmatpush2.bf16.xpose.msra.mxu0 0
    %734 = vmatprep.subr.bf16.mxu0 0
    %735 = vmatpush2.bf16.xpose.msra.mxu0 0
    %736 = vmatprep.subr.bf16.mxu0 0
    %737 = vmatpush2.bf16.xpose.msra.mxu0 0
    %738 = vmatprep.mubr.bf16.mxu0 0
    %739 = vmatmul.mubr.bf16.gmra.mxu0 %v701
    %v740 = vpop.f32.mrf.mxu0
    %v741 = vadd.f32 0.0, %v740
    %v742 = vpop.f32.mrf.mxu0
    %v743 = vpop.f32.mrf.mxu0
    %v744 = vpop.f32.mrf.mxu0
    %745 = vdwg.mxu0
    %v747 = vsel %vm699, %v684, 0
    %v750 = vsel %vm699, %v692, 0
    %752 = vmatprep.subr.bf16.mxu0 0
    %753 = vmatpush1.bf16.xpose.msra.mxu0 0
    %754 = vmatprep.subr.bf16.mxu0 0
    %755 = vmatpush1.bf16.xpose.msra.mxu0 0
    %756 = vmatprep.subr.bf16.mxu0 0
    %757 = vmatpush1.bf16.xpose.msra.mxu0 0
    %758 = vmatprep.subr.bf16.mxu0 0
    %759 = vmatpush1.bf16.xpose.msra.mxu0 0
    %760 = vmatprep.subr.bf16.mxu0 0
    %761 = vmatpush1.bf16.xpose.msra.mxu0 0
    %762 = vmatprep.subr.bf16.mxu0 0
    %763 = vmatpush1.bf16.xpose.msra.mxu0 0
    %764 = vmatprep.subr.bf16.mxu0 0
    %765 = vmatpush1.bf16.xpose.msra.mxu0 0
    %766 = vmatprep.subr.bf16.mxu0 0
    %767 = vmatpush1.bf16.xpose.msra.mxu0 %v750
    %768 = vmatprep.subr.bf16.mxu0 0
    %769 = vmatpush2.bf16.xpose.msra.mxu0 0
    %770 = vmatprep.subr.bf16.mxu0 0
    %771 = vmatpush2.bf16.xpose.msra.mxu0 0
    %772 = vmatprep.subr.bf16.mxu0 0
    %773 = vmatpush2.bf16.xpose.msra.mxu0 0
    %774 = vmatprep.subr.bf16.mxu0 0
    %775 = vmatpush2.bf16.xpose.msra.mxu0 0
    %776 = vmatprep.subr.bf16.mxu0 0
    %777 = vmatpush2.bf16.xpose.msra.mxu0 0
    %778 = vmatprep.subr.bf16.mxu0 0
    %779 = vmatpush2.bf16.xpose.msra.mxu0 0
    %780 = vmatprep.subr.bf16.mxu0 0
    %781 = vmatpush2.bf16.xpose.msra.mxu0 0
    %782 = vmatprep.subr.bf16.mxu0 0
    %783 = vmatpush2.bf16.xpose.msra.mxu0 0
    %784 = vmatprep.mubr.bf16.mxu0 0
    %785 = vmatmul.mubr.bf16.gmra.mxu0 %v747
    %v786 = vpop.f32.mrf.mxu0
    %v787 = vadd.f32 0.0, %v786
    %v788 = vpop.f32.mrf.mxu0
    %v789 = vpop.f32.mrf.mxu0
    %v790 = vpop.f32.mrf.mxu0
    %791 = vdwg.mxu0
    %v793 = vsel %vm699, %v685, 0
    %v796 = vsel %vm699, %v693, 0
    %798 = vmatprep.subr.bf16.mxu0 0
    %799 = vmatpush1.bf16.xpose.msra.mxu0 0
    %800 = vmatprep.subr.bf16.mxu0 0
    %801 = vmatpush1.bf16.xpose.msra.mxu0 0
    %802 = vmatprep.subr.bf16.mxu0 0
    %803 = vmatpush1.bf16.xpose.msra.mxu0 0
    %804 = vmatprep.subr.bf16.mxu0 0
    %805 = vmatpush1.bf16.xpose.msra.mxu0 0
    %806 = vmatprep.subr.bf16.mxu0 0
    %807 = vmatpush1.bf16.xpose.msra.mxu0 0
    %808 = vmatprep.subr.bf16.mxu0 0
    %809 = vmatpush1.bf16.xpose.msra.mxu0 0
    %810 = vmatprep.subr.bf16.mxu0 0
    %811 = vmatpush1.bf16.xpose.msra.mxu0 0
    %812 = vmatprep.subr.bf16.mxu0 0
    %813 = vmatpush1.bf16.xpose.msra.mxu0 %v796
    %814 = vmatprep.subr.bf16.mxu0 0
    %815 = vmatpush2.bf16.xpose.msra.mxu0 0
    %816 = vmatprep.subr.bf16.mxu0 0
    %817 = vmatpush2.bf16.xpose.msra.mxu0 0
    %818 = vmatprep.subr.bf16.mxu0 0
    %819 = vmatpush2.bf16.xpose.msra.mxu0 0
    %820 = vmatprep.subr.bf16.mxu0 0
    %821 = vmatpush2.bf16.xpose.msra.mxu0 0
    %822 = vmatprep.subr.bf16.mxu0 0
    %823 = vmatpush2.bf16.xpose.msra.mxu0 0
    %824 = vmatprep.subr.bf16.mxu0 0
    %825 = vmatpush2.bf16.xpose.msra.mxu0 0
    %826 = vmatprep.subr.bf16.mxu0 0
    %827 = vmatpush2.bf16.xpose.msra.mxu0 0
    %828 = vmatprep.subr.bf16.mxu0 0
    %829 = vmatpush2.bf16.xpose.msra.mxu0 0
    %830 = vmatprep.mubr.bf16.mxu0 0
    %831 = vmatmul.mubr.bf16.gmra.mxu0 %v793
    %v832 = vpop.f32.mrf.mxu0
    %v833 = vadd.f32 0.0, %v832
    %v834 = vpop.f32.mrf.mxu0
    %v835 = vpop.f32.mrf.mxu0
    %v836 = vpop.f32.mrf.mxu0
    %837 = vdwg.mxu0
    %v839 = vsel %vm699, %v686, 0
    %v842 = vsel %vm699, %v694, 0
    %844 = vmatprep.subr.bf16.mxu0 0
    %845 = vmatpush1.bf16.xpose.msra.mxu0 0
    %846 = vmatprep.subr.bf16.mxu0 0
    %847 = vmatpush1.bf16.xpose.msra.mxu0 0
    %848 = vmatprep.subr.bf16.mxu0 0
    %849 = vmatpush1.bf16.xpose.msra.mxu0 0
    %850 = vmatprep.subr.bf16.mxu0 0
    %851 = vmatpush1.bf16.xpose.msra.mxu0 0
    %852 = vmatprep.subr.bf16.mxu0 0
    %853 = vmatpush1.bf16.xpose.msra.mxu0 0
    %854 = vmatprep.subr.bf16.mxu0 0
    %855 = vmatpush1.bf16.xpose.msra.mxu0 0
    %856 = vmatprep.subr.bf16.mxu0 0
    %857 = vmatpush1.bf16.xpose.msra.mxu0 0
    %858 = vmatprep.subr.bf16.mxu0 0
    %859 = vmatpush1.bf16.xpose.msra.mxu0 %v842
    %860 = vmatprep.subr.bf16.mxu0 0
    %861 = vmatpush2.bf16.xpose.msra.mxu0 0
    %862 = vmatprep.subr.bf16.mxu0 0
    %863 = vmatpush2.bf16.xpose.msra.mxu0 0
    %864 = vmatprep.subr.bf16.mxu0 0
    %865 = vmatpush2.bf16.xpose.msra.mxu0 0
    %866 = vmatprep.subr.bf16.mxu0 0
    %867 = vmatpush2.bf16.xpose.msra.mxu0 0
    %868 = vmatprep.subr.bf16.mxu0 0
    %869 = vmatpush2.bf16.xpose.msra.mxu0 0
    %870 = vmatprep.subr.bf16.mxu0 0
    %871 = vmatpush2.bf16.xpose.msra.mxu0 0
    %872 = vmatprep.subr.bf16.mxu0 0
    %873 = vmatpush2.bf16.xpose.msra.mxu0 0
    %874 = vmatprep.subr.bf16.mxu0 0
    %875 = vmatpush2.bf16.xpose.msra.mxu0 0
    %876 = vmatprep.mubr.bf16.mxu0 0
    %877 = vmatmul.mubr.bf16.gmra.mxu0 %v839
    %v878 = vpop.f32.mrf.mxu0
    %v879 = vadd.f32 0.0, %v878
    %v880 = vpop.f32.mrf.mxu0
    %v881 = vpop.f32.mrf.mxu0
    %v882 = vpop.f32.mrf.mxu0
    %883 = vdwg.mxu0
    %v885 = vsel %vm699, %v687, 0
    %v888 = vsel %vm699, %v695, 0
    %890 = vmatprep.subr.bf16.mxu0 0
    %891 = vmatpush1.bf16.xpose.msra.mxu0 0
    %892 = vmatprep.subr.bf16.mxu0 0
    %893 = vmatpush1.bf16.xpose.msra.mxu0 0
    %894 = vmatprep.subr.bf16.mxu0 0
    %895 = vmatpush1.bf16.xpose.msra.mxu0 0
    %896 = vmatprep.subr.bf16.mxu0 0
    %897 = vmatpush1.bf16.xpose.msra.mxu0 0
    %898 = vmatprep.subr.bf16.mxu0 0
    %899 = vmatpush1.bf16.xpose.msra.mxu0 0
    %900 = vmatprep.subr.bf16.mxu0 0
    %901 = vmatpush1.bf16.xpose.msra.mxu0 0
    %902 = vmatprep.subr.bf16.mxu0 0
    %903 = vmatpush1.bf16.xpose.msra.mxu0 0
    %904 = vmatprep.subr.bf16.mxu0 0
    %905 = vmatpush1.bf16.xpose.msra.mxu0 %v888
    %906 = vmatprep.subr.bf16.mxu0 0
    %907 = vmatpush2.bf16.xpose.msra.mxu0 0
    %908 = vmatprep.subr.bf16.mxu0 0
    %909 = vmatpush2.bf16.xpose.msra.mxu0 0
    %910 = vmatprep.subr.bf16.mxu0 0
    %911 = vmatpush2.bf16.xpose.msra.mxu0 0
    %912 = vmatprep.subr.bf16.mxu0 0
    %913 = vmatpush2.bf16.xpose.msra.mxu0 0
    %914 = vmatprep.subr.bf16.mxu0 0
    %915 = vmatpush2.bf16.xpose.msra.mxu0 0
    %916 = vmatprep.subr.bf16.mxu0 0
    %917 = vmatpush2.bf16.xpose.msra.mxu0 0
    %918 = vmatprep.subr.bf16.mxu0 0
    %919 = vmatpush2.bf16.xpose.msra.mxu0 0
    %920 = vmatprep.subr.bf16.mxu0 0
    %921 = vmatpush2.bf16.xpose.msra.mxu0 0
    %922 = vmatprep.mubr.bf16.mxu0 0
    %923 = vmatmul.mubr.bf16.gmra.mxu0 %v885
    %v924 = vpop.f32.mrf.mxu0
    %v925 = vadd.f32 0.0, %v924
    %v926 = vpop.f32.mrf.mxu0
    %v927 = vpop.f32.mrf.mxu0
    %v928 = vpop.f32.mrf.mxu0
    %929 = vdwg.mxu0
    %v931 = vsel %vm699, %v688, 0
    %v934 = vsel %vm699, %v696, 0
    %936 = vmatprep.subr.bf16.mxu0 0
    %937 = vmatpush1.bf16.xpose.msra.mxu0 0
    %938 = vmatprep.subr.bf16.mxu0 0
    %939 = vmatpush1.bf16.xpose.msra.mxu0 0
    %940 = vmatprep.subr.bf16.mxu0 0
    %941 = vmatpush1.bf16.xpose.msra.mxu0 0
    %942 = vmatprep.subr.bf16.mxu0 0
    %943 = vmatpush1.bf16.xpose.msra.mxu0 0
    %944 = vmatprep.subr.bf16.mxu0 0
    %945 = vmatpush1.bf16.xpose.msra.mxu0 0
    %946 = vmatprep.subr.bf16.mxu0 0
    %947 = vmatpush1.bf16.xpose.msra.mxu0 0
    %948 = vmatprep.subr.bf16.mxu0 0
    %949 = vmatpush1.bf16.xpose.msra.mxu0 0
    %950 = vmatprep.subr.bf16.mxu0 0
    %951 = vmatpush1.bf16.xpose.msra.mxu0 %v934
    %952 = vmatprep.subr.bf16.mxu0 0
    %953 = vmatpush2.bf16.xpose.msra.mxu0 0
    %954 = vmatprep.subr.bf16.mxu0 0
    %955 = vmatpush2.bf16.xpose.msra.mxu0 0
    %956 = vmatprep.subr.bf16.mxu0 0
    %957 = vmatpush2.bf16.xpose.msra.mxu0 0
    %958 = vmatprep.subr.bf16.mxu0 0
    %959 = vmatpush2.bf16.xpose.msra.mxu0 0
    %960 = vmatprep.subr.bf16.mxu0 0
    %961 = vmatpush2.bf16.xpose.msra.mxu0 0
    %962 = vmatprep.subr.bf16.mxu0 0
    %963 = vmatpush2.bf16.xpose.msra.mxu0 0
    %964 = vmatprep.subr.bf16.mxu0 0
    %965 = vmatpush2.bf16.xpose.msra.mxu0 0
    %966 = vmatprep.subr.bf16.mxu0 0
    %967 = vmatpush2.bf16.xpose.msra.mxu0 0
    %968 = vmatprep.mubr.bf16.mxu0 0
    %969 = vmatmul.mubr.bf16.gmra.mxu0 %v931
    %v970 = vpop.f32.mrf.mxu0
    %v971 = vadd.f32 0.0, %v970
    %v972 = vpop.f32.mrf.mxu0
    %v973 = vpop.f32.mrf.mxu0
    %v974 = vpop.f32.mrf.mxu0
    %975 = vdwg.mxu0
    %v977 = vsel %vm699, %v689, 0
    %v980 = vsel %vm699, %v697, 0
    %982 = vmatprep.subr.bf16.mxu0 0
    %983 = vmatpush1.bf16.xpose.msra.mxu0 0
    %984 = vmatprep.subr.bf16.mxu0 0
    %985 = vmatpush1.bf16.xpose.msra.mxu0 0
    %986 = vmatprep.subr.bf16.mxu0 0
    %987 = vmatpush1.bf16.xpose.msra.mxu0 0
    %988 = vmatprep.subr.bf16.mxu0 0
    %989 = vmatpush1.bf16.xpose.msra.mxu0 0
    %990 = vmatprep.subr.bf16.mxu0 0
    %991 = vmatpush1.bf16.xpose.msra.mxu0 0
    %992 = vmatprep.subr.bf16.mxu0 0
    %993 = vmatpush1.bf16.xpose.msra.mxu0 0
    %994 = vmatprep.subr.bf16.mxu0 0
    %995 = vmatpush1.bf16.xpose.msra.mxu0 0
    %996 = vmatprep.subr.bf16.mxu0 0
    %997 = vmatpush1.bf16.xpose.msra.mxu0 %v980
    %998 = vmatprep.subr.bf16.mxu0 0
    %999 = vmatpush2.bf16.xpose.msra.mxu0 0
    %1000 = vmatprep.subr.bf16.mxu0 0
    %1001 = vmatpush2.bf16.xpose.msra.mxu0 0
    %1002 = vmatprep.subr.bf16.mxu0 0
    %1003 = vmatpush2.bf16.xpose.msra.mxu0 0
    %1004 = vmatprep.subr.bf16.mxu0 0
    %1005 = vmatpush2.bf16.xpose.msra.mxu0 0
    %1006 = vmatprep.subr.bf16.mxu0 0
    %1007 = vmatpush2.bf16.xpose.msra.mxu0 0
    %1008 = vmatprep.subr.bf16.mxu0 0
    %1009 = vmatpush2.bf16.xpose.msra.mxu0 0
    %1010 = vmatprep.subr.bf16.mxu0 0
    %1011 = vmatpush2.bf16.xpose.msra.mxu0 0
    %1012 = vmatprep.subr.bf16.mxu0 0
    %1013 = vmatpush2.bf16.xpose.msra.mxu0 0
    %1014 = vmatprep.mubr.bf16.mxu0 0
    %1015 = vmatmul.mubr.bf16.gmra.mxu0 %v977
    %v1016 = vpop.f32.mrf.mxu0
    %v1017 = vadd.f32 0.0, %v1016
    %v1018 = vpop.f32.mrf.mxu0
    %v1019 = vpop.f32.mrf.mxu0
    %v1020 = vpop.f32.mrf.mxu0
    %1021 = vdwg.mxu0
    %v1023 = vsel %vm699, %v690, 0
    %v1026 = vsel %vm699, %v698, 0
    %1028 = vmatprep.subr.bf16.mxu0 0
    %1029 = vmatpush1.bf16.xpose.msra.mxu0 0
    %1030 = vmatprep.subr.bf16.mxu0 0
    %1031 = vmatpush1.bf16.xpose.msra.mxu0 0
    %1032 = vmatprep.subr.bf16.mxu0 0
    %1033 = vmatpush1.bf16.xpose.msra.mxu0 0
    %1034 = vmatprep.subr.bf16.mxu0 0
    %1035 = vmatpush1.bf16.xpose.msra.mxu0 0
    %1036 = vmatprep.subr.bf16.mxu0 0
    %1037 = vmatpush1.bf16.xpose.msra.mxu0 0
    %1038 = vmatprep.subr.bf16.mxu0 0
    %1039 = vmatpush1.bf16.xpose.msra.mxu0 0
    %1040 = vmatprep.subr.bf16.mxu0 0
    %1041 = vmatpush1.bf16.xpose.msra.mxu0 0
    %1042 = vmatprep.subr.bf16.mxu0 0
    %1043 = vmatpush1.bf16.xpose.msra.mxu0 %v1026
    %1044 = vmatprep.subr.bf16.mxu0 0
    %1045 = vmatpush2.bf16.xpose.msra.mxu0 0
    %1046 = vmatprep.subr.bf16.mxu0 0
    %1047 = vmatpush2.bf16.xpose.msra.mxu0 0
    %1048 = vmatprep.subr.bf16.mxu0 0
    %1049 = vmatpush2.bf16.xpose.msra.mxu0 0
    %1050 = vmatprep.subr.bf16.mxu0 0
    %1051 = vmatpush2.bf16.xpose.msra.mxu0 0
    %1052 = vmatprep.subr.bf16.mxu0 0
    %1053 = vmatpush2.bf16.xpose.msra.mxu0 0
    %1054 = vmatprep.subr.bf16.mxu0 0
    %1055 = vmatpush2.bf16.xpose.msra.mxu0 0
    %1056 = vmatprep.subr.bf16.mxu0 0
    %1057 = vmatpush2.bf16.xpose.msra.mxu0 0
    %1058 = vmatprep.subr.bf16.mxu0 0
    %1059 = vmatpush2.bf16.xpose.msra.mxu0 0
    %1060 = vmatprep.mubr.bf16.mxu0 0
    %1061 = vmatmul.mubr.bf16.gmra.mxu0 %v1023
    %v1062 = vpop.f32.mrf.mxu0
    %v1063 = vadd.f32 0.0, %v1062
    %v1064 = vpop.f32.mrf.mxu0
    %v1065 = vpop.f32.mrf.mxu0
    %v1066 = vpop.f32.mrf.mxu0
    %1067 = vdwg.mxu0
    %vm1068 = vcmask 36864
    %v1069 = vsel %vm1068, %v741, -inf
    %1070 = vmax.xlane.f32.xlu0 %v1069
    %v1071 = vpop.xlane.xlu0 %1070
    %v1072 = vsel %vm1068, %v787, -inf
    %1073 = vmax.xlane.f32.xlu0 %v1072
    %v1074 = vpop.xlane.xlu0 %1073
    %v1075 = vsel %vm1068, %v833, -inf
    %1076 = vmax.xlane.f32.xlu0 %v1075
    %v1077 = vpop.xlane.xlu0 %1076
    %v1078 = vsel %vm1068, %v879, -inf
    %1079 = vmax.xlane.f32.xlu0 %v1078
    %v1080 = vpop.xlane.xlu0 %1079
    %v1081 = vsel %vm1068, %v925, -inf
    %1082 = vmax.xlane.f32.xlu0 %v1081
    %v1083 = vpop.xlane.xlu0 %1082
    %v1084 = vsel %vm1068, %v971, -inf
    %1085 = vmax.xlane.f32.xlu0 %v1084
    %v1086 = vpop.xlane.xlu0 %1085
    %v1087 = vsel %vm1068, %v1017, -inf
    %1088 = vmax.xlane.f32.xlu0 %v1087
    %v1089 = vpop.xlane.xlu0 %1088
    %v1090 = vsel %vm1068, %v1063, -inf
    %1091 = vmax.xlane.f32.xlu0 %v1090
    %v1092 = vpop.xlane.xlu0 %1091
    %v1093 = vsub.f32 %v741, %v1071
    %v1094 = vsub.f32 %v787, %v1074
    %v1095 = vsub.f32 %v833, %v1077
    %v1096 = vsub.f32 %v879, %v1080
    %v1097 = vsub.f32 %v925, %v1083
    %v1098 = vsub.f32 %v971, %v1086
    %v1099 = vsub.f32 %v1017, %v1089
    %v1100 = vsub.f32 %v1063, %v1092
    %v1101 = vmul.f32 %v1093, 1.442695
    %v1102 = vpow.pop %v1101
    %v1103 = vmul.f32 %v1094, 1.442695
    %v1104 = vpow.pop %v1103
    %v1105 = vmul.f32 %v1095, 1.442695
    %v1106 = vpow.pop %v1105
    %v1107 = vmul.f32 %v1096, 1.442695
    %v1108 = vpow.pop %v1107
    %v1109 = vmul.f32 %v1097, 1.442695
    %v1110 = vpow.pop %v1109
    %v1111 = vmul.f32 %v1098, 1.442695
    %v1112 = vpow.pop %v1111
    %v1113 = vmul.f32 %v1099, 1.442695
    %v1114 = vpow.pop %v1113
    %v1115 = vmul.f32 %v1100, 1.442695
    %v1116 = vpow.pop %v1115
    %v1117 = vsel %vm1068, %v1102, 0.0
    %1118 = vadd.xlane.f32.xlu0 %v1117
    %v1119 = vpop.xlane.xlu0 %1118
    %v1120 = vsel %vm1068, %v1104, 0.0
    %1121 = vadd.xlane.f32.xlu0 %v1120
    %v1122 = vpop.xlane.xlu0 %1121
    %v1123 = vsel %vm1068, %v1106, 0.0
    %1124 = vadd.xlane.f32.xlu0 %v1123
    %v1125 = vpop.xlane.xlu0 %1124
    %v1126 = vsel %vm1068, %v1108, 0.0
    %1127 = vadd.xlane.f32.xlu0 %v1126
    %v1128 = vpop.xlane.xlu0 %1127
    %v1129 = vsel %vm1068, %v1110, 0.0
    %1130 = vadd.xlane.f32.xlu0 %v1129
    %v1131 = vpop.xlane.xlu0 %1130
    %v1132 = vsel %vm1068, %v1112, 0.0
    %1133 = vadd.xlane.f32.xlu0 %v1132
    %v1134 = vpop.xlane.xlu0 %1133
    %v1135 = vsel %vm1068, %v1114, 0.0
    %1136 = vadd.xlane.f32.xlu0 %v1135
    %v1137 = vpop.xlane.xlu0 %1136
    %v1138 = vsel %vm1068, %v1116, 0.0
    %1139 = vadd.xlane.f32.xlu0 %v1138
    %v1140 = vpop.xlane.xlu0 %1139
    %v1141 = vrcp.pop %v1119
    %v1142 = vmul.f32 %v1102, %v1141
    %v1143 = vrcp.pop %v1122
    %v1144 = vmul.f32 %v1104, %v1143
    %v1145 = vrcp.pop %v1125
    %v1146 = vmul.f32 %v1106, %v1145
    %v1147 = vrcp.pop %v1128
    %v1148 = vmul.f32 %v1108, %v1147
    %v1149 = vrcp.pop %v1131
    %v1150 = vmul.f32 %v1110, %v1149
    %v1151 = vrcp.pop %v1134
    %v1152 = vmul.f32 %v1112, %v1151
    %v1153 = vrcp.pop %v1137
    %v1154 = vmul.f32 %v1114, %v1153
    %v1155 = vrcp.pop %v1140
    %v1156 = vmul.f32 %v1116, %v1155
    %v1157 = vpack.c.bf16 %v1142, %v1142
    %v1158 = vpack.c.bf16 %v1144, %v1144
    %v1159 = vpack.c.bf16 %v1146, %v1146
    %v1160 = vpack.c.bf16 %v1148, %v1148
    %v1161 = vpack.c.bf16 %v1150, %v1150
    %v1162 = vpack.c.bf16 %v1152, %v1152
    %v1163 = vpack.c.bf16 %v1154, %v1154
    %v1164 = vpack.c.bf16 %v1156, %v1156
    %v1165 = vpack.c.bf16 %v604, %v604
    %v1166 = vpack.c.bf16 %v661, %v661
    %v1167 = vpack.c.bf16 %v664, %v664
    %v1168 = vpack.c.bf16 %v667, %v667
    %v1169 = vpack.c.bf16 %v672, %v672
    %v1170 = vpack.c.bf16 %v675, %v675
    %v1171 = vpack.c.bf16 %v678, %v678
    %v1172 = vpack.c.bf16 %v681, %v681
    %vm1173 = vcmask 39936
    %v1175 = vsel %vm1173, %v1157, 0
    %v1177 = vsel %vm321, 4294967295, 65535
    %v1178 = vsel %vm621, %v1177, 0
    %v1180 = vand.u32 %v1165, %v1178
    %1182 = vmatprep.subr.bf16.mxu0 0
    %1183 = vmatpush1.bf16.msra.mxu0 0
    %1184 = vmatprep.subr.bf16.mxu0 0
    %1185 = vmatpush1.bf16.msra.mxu0 0
    %1186 = vmatprep.subr.bf16.mxu0 0
    %1187 = vmatpush1.bf16.msra.mxu0 0
    %1188 = vmatprep.subr.bf16.mxu0 0
    %1189 = vmatpush1.bf16.msra.mxu0 0
    %1190 = vmatprep.subr.bf16.mxu0 0
    %1191 = vmatpush1.bf16.msra.mxu0 0
    %1192 = vmatprep.subr.bf16.mxu0 0
    %1193 = vmatpush1.bf16.msra.mxu0 0
    %1194 = vmatprep.subr.bf16.mxu0 0
    %1195 = vmatpush1.bf16.msra.mxu0 0
    %1196 = vmatprep.subr.bf16.mxu0 0
    %1197 = vmatpush1.bf16.msra.mxu0 %v1180
    %1198 = vmatprep.subr.bf16.mxu0 0
    %1199 = vmatpush2.bf16.msra.mxu0 0
    %1200 = vmatprep.subr.bf16.mxu0 0
    %1201 = vmatpush2.bf16.msra.mxu0 0
    %1202 = vmatprep.subr.bf16.mxu0 0
    %1203 = vmatpush2.bf16.msra.mxu0 0
    %1204 = vmatprep.subr.bf16.mxu0 0
    %1205 = vmatpush2.bf16.msra.mxu0 0
    %1206 = vmatprep.subr.bf16.mxu0 0
    %1207 = vmatpush2.bf16.msra.mxu0 0
    %1208 = vmatprep.subr.bf16.mxu0 0
    %1209 = vmatpush2.bf16.msra.mxu0 0
    %1210 = vmatprep.subr.bf16.mxu0 0
    %1211 = vmatpush2.bf16.msra.mxu0 0
    %1212 = vmatprep.subr.bf16.mxu0 0
    %1213 = vmatpush2.bf16.msra.mxu0 0
    %1214 = vmatprep.mubr.bf16.mxu0 0
    %1215 = vmatmul.mubr.bf16.gmra.mxu0 %v1175
    %v1216 = vpop.f32.mrf.mxu0
    %v1217 = vadd.f32 0.0, %v1216
    %v1218 = vpop.f32.mrf.mxu0
    %v1219 = vpop.f32.mrf.mxu0
    %v1220 = vpop.f32.mrf.mxu0
    %1221 = vdwg.mxu0
    %v1223 = vsel %vm1173, %v1158, 0
    %v1226 = vand.u32 %v1166, %v1178
    %1228 = vmatprep.subr.bf16.mxu0 0
    %1229 = vmatpush1.bf16.msra.mxu0 0
    %1230 = vmatprep.subr.bf16.mxu0 0
    %1231 = vmatpush1.bf16.msra.mxu0 0
    %1232 = vmatprep.subr.bf16.mxu0 0
    %1233 = vmatpush1.bf16.msra.mxu0 0
    %1234 = vmatprep.subr.bf16.mxu0 0
    %1235 = vmatpush1.bf16.msra.mxu0 0
    %1236 = vmatprep.subr.bf16.mxu0 0
    %1237 = vmatpush1.bf16.msra.mxu0 0
    %1238 = vmatprep.subr.bf16.mxu0 0
    %1239 = vmatpush1.bf16.msra.mxu0 0
    %1240 = vmatprep.subr.bf16.mxu0 0
    %1241 = vmatpush1.bf16.msra.mxu0 0
    %1242 = vmatprep.subr.bf16.mxu0 0
    %1243 = vmatpush1.bf16.msra.mxu0 %v1226
    %1244 = vmatprep.subr.bf16.mxu0 0
    %1245 = vmatpush2.bf16.msra.mxu0 0
    %1246 = vmatprep.subr.bf16.mxu0 0
    %1247 = vmatpush2.bf16.msra.mxu0 0
    %1248 = vmatprep.subr.bf16.mxu0 0
    %1249 = vmatpush2.bf16.msra.mxu0 0
    %1250 = vmatprep.subr.bf16.mxu0 0
    %1251 = vmatpush2.bf16.msra.mxu0 0
    %1252 = vmatprep.subr.bf16.mxu0 0
    %1253 = vmatpush2.bf16.msra.mxu0 0
    %1254 = vmatprep.subr.bf16.mxu0 0
    %1255 = vmatpush2.bf16.msra.mxu0 0
    %1256 = vmatprep.subr.bf16.mxu0 0
    %1257 = vmatpush2.bf16.msra.mxu0 0
    %1258 = vmatprep.subr.bf16.mxu0 0
    %1259 = vmatpush2.bf16.msra.mxu0 0
    %1260 = vmatprep.mubr.bf16.mxu0 0
    %1261 = vmatmul.mubr.bf16.gmra.mxu0 %v1223
    %v1262 = vpop.f32.mrf.mxu0
    %v1263 = vadd.f32 0.0, %v1262
    %v1264 = vpop.f32.mrf.mxu0
    %v1265 = vpop.f32.mrf.mxu0
    %v1266 = vpop.f32.mrf.mxu0
    %1267 = vdwg.mxu0
    %v1269 = vsel %vm1173, %v1159, 0
    %v1272 = vand.u32 %v1167, %v1178
    %1274 = vmatprep.subr.bf16.mxu0 0
    %1275 = vmatpush1.bf16.msra.mxu0 0
    %1276 = vmatprep.subr.bf16.mxu0 0
    %1277 = vmatpush1.bf16.msra.mxu0 0
    %1278 = vmatprep.subr.bf16.mxu0 0
    %1279 = vmatpush1.bf16.msra.mxu0 0
    %1280 = vmatprep.subr.bf16.mxu0 0
    %1281 = vmatpush1.bf16.msra.mxu0 0
    %1282 = vmatprep.subr.bf16.mxu0 0
    %1283 = vmatpush1.bf16.msra.mxu0 0
    %1284 = vmatprep.subr.bf16.mxu0 0
    %1285 = vmatpush1.bf16.msra.mxu0 0
    %1286 = vmatprep.subr.bf16.mxu0 0
    %1287 = vmatpush1.bf16.msra.mxu0 0
    %1288 = vmatprep.subr.bf16.mxu0 0
    %1289 = vmatpush1.bf16.msra.mxu0 %v1272
    %1290 = vmatprep.subr.bf16.mxu0 0
    %1291 = vmatpush2.bf16.msra.mxu0 0
    %1292 = vmatprep.subr.bf16.mxu0 0
    %1293 = vmatpush2.bf16.msra.mxu0 0
    %1294 = vmatprep.subr.bf16.mxu0 0
    %1295 = vmatpush2.bf16.msra.mxu0 0
    %1296 = vmatprep.subr.bf16.mxu0 0
    %1297 = vmatpush2.bf16.msra.mxu0 0
    %1298 = vmatprep.subr.bf16.mxu0 0
    %1299 = vmatpush2.bf16.msra.mxu0 0
    %1300 = vmatprep.subr.bf16.mxu0 0
    %1301 = vmatpush2.bf16.msra.mxu0 0
    %1302 = vmatprep.subr.bf16.mxu0 0
    %1303 = vmatpush2.bf16.msra.mxu0 0
    %1304 = vmatprep.subr.bf16.mxu0 0
    %1305 = vmatpush2.bf16.msra.mxu0 0
    %1306 = vmatprep.mubr.bf16.mxu0 0
    %1307 = vmatmul.mubr.bf16.gmra.mxu0 %v1269
    %v1308 = vpop.f32.mrf.mxu0
    %v1309 = vadd.f32 0.0, %v1308
    %v1310 = vpop.f32.mrf.mxu0
    %v1311 = vpop.f32.mrf.mxu0
    %v1312 = vpop.f32.mrf.mxu0
    %1313 = vdwg.mxu0
    %v1315 = vsel %vm1173, %v1160, 0
    %v1318 = vand.u32 %v1168, %v1178
    %1320 = vmatprep.subr.bf16.mxu0 0
    %1321 = vmatpush1.bf16.msra.mxu0 0
    %1322 = vmatprep.subr.bf16.mxu0 0
    %1323 = vmatpush1.bf16.msra.mxu0 0
    %1324 = vmatprep.subr.bf16.mxu0 0
    %1325 = vmatpush1.bf16.msra.mxu0 0
    %1326 = vmatprep.subr.bf16.mxu0 0
    %1327 = vmatpush1.bf16.msra.mxu0 0
    %1328 = vmatprep.subr.bf16.mxu0 0
    %1329 = vmatpush1.bf16.msra.mxu0 0
    %1330 = vmatprep.subr.bf16.mxu0 0
    %1331 = vmatpush1.bf16.msra.mxu0 0
    %1332 = vmatprep.subr.bf16.mxu0 0
    %1333 = vmatpush1.bf16.msra.mxu0 0
    %1334 = vmatprep.subr.bf16.mxu0 0
    %1335 = vmatpush1.bf16.msra.mxu0 %v1318
    %1336 = vmatprep.subr.bf16.mxu0 0
    %1337 = vmatpush2.bf16.msra.mxu0 0
    %1338 = vmatprep.subr.bf16.mxu0 0
    %1339 = vmatpush2.bf16.msra.mxu0 0
    %1340 = vmatprep.subr.bf16.mxu0 0
    %1341 = vmatpush2.bf16.msra.mxu0 0
    %1342 = vmatprep.subr.bf16.mxu0 0
    %1343 = vmatpush2.bf16.msra.mxu0 0
    %1344 = vmatprep.subr.bf16.mxu0 0
    %1345 = vmatpush2.bf16.msra.mxu0 0
    %1346 = vmatprep.subr.bf16.mxu0 0
    %1347 = vmatpush2.bf16.msra.mxu0 0
    %1348 = vmatprep.subr.bf16.mxu0 0
    %1349 = vmatpush2.bf16.msra.mxu0 0
    %1350 = vmatprep.subr.bf16.mxu0 0
    %1351 = vmatpush2.bf16.msra.mxu0 0
    %1352 = vmatprep.mubr.bf16.mxu0 0
    %1353 = vmatmul.mubr.bf16.gmra.mxu0 %v1315
    %v1354 = vpop.f32.mrf.mxu0
    %v1355 = vadd.f32 0.0, %v1354
    %v1356 = vpop.f32.mrf.mxu0
    %v1357 = vpop.f32.mrf.mxu0
    %v1358 = vpop.f32.mrf.mxu0
    %1359 = vdwg.mxu0
    %v1361 = vsel %vm1173, %v1161, 0
    %v1364 = vand.u32 %v1169, %v1178
    %1366 = vmatprep.subr.bf16.mxu0 0
    %1367 = vmatpush1.bf16.msra.mxu0 0
    %1368 = vmatprep.subr.bf16.mxu0 0
    %1369 = vmatpush1.bf16.msra.mxu0 0
    %1370 = vmatprep.subr.bf16.mxu0 0
    %1371 = vmatpush1.bf16.msra.mxu0 0
    %1372 = vmatprep.subr.bf16.mxu0 0
    %1373 = vmatpush1.bf16.msra.mxu0 0
    %1374 = vmatprep.subr.bf16.mxu0 0
    %1375 = vmatpush1.bf16.msra.mxu0 0
    %1376 = vmatprep.subr.bf16.mxu0 0
    %1377 = vmatpush1.bf16.msra.mxu0 0
    %1378 = vmatprep.subr.bf16.mxu0 0
    %1379 = vmatpush1.bf16.msra.mxu0 0
    %1380 = vmatprep.subr.bf16.mxu0 0
    %1381 = vmatpush1.bf16.msra.mxu0 %v1364
    %1382 = vmatprep.subr.bf16.mxu0 0
    %1383 = vmatpush2.bf16.msra.mxu0 0
    %1384 = vmatprep.subr.bf16.mxu0 0
    %1385 = vmatpush2.bf16.msra.mxu0 0
    %1386 = vmatprep.subr.bf16.mxu0 0
    %1387 = vmatpush2.bf16.msra.mxu0 0
    %1388 = vmatprep.subr.bf16.mxu0 0
    %1389 = vmatpush2.bf16.msra.mxu0 0
    %1390 = vmatprep.subr.bf16.mxu0 0
    %1391 = vmatpush2.bf16.msra.mxu0 0
    %1392 = vmatprep.subr.bf16.mxu0 0
    %1393 = vmatpush2.bf16.msra.mxu0 0
    %1394 = vmatprep.subr.bf16.mxu0 0
    %1395 = vmatpush2.bf16.msra.mxu0 0
    %1396 = vmatprep.subr.bf16.mxu0 0
    %1397 = vmatpush2.bf16.msra.mxu0 0
    %1398 = vmatprep.mubr.bf16.mxu0 0
    %1399 = vmatmul.mubr.bf16.gmra.mxu0 %v1361
    %v1400 = vpop.f32.mrf.mxu0
    %v1401 = vadd.f32 0.0, %v1400
    %v1402 = vpop.f32.mrf.mxu0
    %v1403 = vpop.f32.mrf.mxu0
    %v1404 = vpop.f32.mrf.mxu0
    %1405 = vdwg.mxu0
    %v1407 = vsel %vm1173, %v1162, 0
    %v1410 = vand.u32 %v1170, %v1178
    %1412 = vmatprep.subr.bf16.mxu0 0
    %1413 = vmatpush1.bf16.msra.mxu0 0
    %1414 = vmatprep.subr.bf16.mxu0 0
    %1415 = vmatpush1.bf16.msra.mxu0 0
    %1416 = vmatprep.subr.bf16.mxu0 0
    %1417 = vmatpush1.bf16.msra.mxu0 0
    %1418 = vmatprep.subr.bf16.mxu0 0
    %1419 = vmatpush1.bf16.msra.mxu0 0
    %1420 = vmatprep.subr.bf16.mxu0 0
    %1421 = vmatpush1.bf16.msra.mxu0 0
    %1422 = vmatprep.subr.bf16.mxu0 0
    %1423 = vmatpush1.bf16.msra.mxu0 0
    %1424 = vmatprep.subr.bf16.mxu0 0
    %1425 = vmatpush1.bf16.msra.mxu0 0
    %1426 = vmatprep.subr.bf16.mxu0 0
    %1427 = vmatpush1.bf16.msra.mxu0 %v1410
    %1428 = vmatprep.subr.bf16.mxu0 0
    %1429 = vmatpush2.bf16.msra.mxu0 0
    %1430 = vmatprep.subr.bf16.mxu0 0
    %1431 = vmatpush2.bf16.msra.mxu0 0
    %1432 = vmatprep.subr.bf16.mxu0 0
    %1433 = vmatpush2.bf16.msra.mxu0 0
    %1434 = vmatprep.subr.bf16.mxu0 0
    %1435 = vmatpush2.bf16.msra.mxu0 0
    %1436 = vmatprep.subr.bf16.mxu0 0
    %1437 = vmatpush2.bf16.msra.mxu0 0
    %1438 = vmatprep.subr.bf16.mxu0 0
    %1439 = vmatpush2.bf16.msra.mxu0 0
    %1440 = vmatprep.subr.bf16.mxu0 0
    %1441 = vmatpush2.bf16.msra.mxu0 0
    %1442 = vmatprep.subr.bf16.mxu0 0
    %1443 = vmatpush2.bf16.msra.mxu0 0
    %1444 = vmatprep.mubr.bf16.mxu0 0
    %1445 = vmatmul.mubr.bf16.gmra.mxu0 %v1407
    %v1446 = vpop.f32.mrf.mxu0
    %v1447 = vadd.f32 0.0, %v1446
    %v1448 = vpop.f32.mrf.mxu0
    %v1449 = vpop.f32.mrf.mxu0
    %v1450 = vpop.f32.mrf.mxu0
    %1451 = vdwg.mxu0
    %v1453 = vsel %vm1173, %v1163, 0
    %v1456 = vand.u32 %v1171, %v1178
    %1458 = vmatprep.subr.bf16.mxu0 0
    %1459 = vmatpush1.bf16.msra.mxu0 0
    %1460 = vmatprep.subr.bf16.mxu0 0
    %1461 = vmatpush1.bf16.msra.mxu0 0
    %1462 = vmatprep.subr.bf16.mxu0 0
    %1463 = vmatpush1.bf16.msra.mxu0 0
    %1464 = vmatprep.subr.bf16.mxu0 0
    %1465 = vmatpush1.bf16.msra.mxu0 0
    %1466 = vmatprep.subr.bf16.mxu0 0
    %1467 = vmatpush1.bf16.msra.mxu0 0
    %1468 = vmatprep.subr.bf16.mxu0 0
    %1469 = vmatpush1.bf16.msra.mxu0 0
    %1470 = vmatprep.subr.bf16.mxu0 0
    %1471 = vmatpush1.bf16.msra.mxu0 0
    %1472 = vmatprep.subr.bf16.mxu0 0
    %1473 = vmatpush1.bf16.msra.mxu0 %v1456
    %1474 = vmatprep.subr.bf16.mxu0 0
    %1475 = vmatpush2.bf16.msra.mxu0 0
    %1476 = vmatprep.subr.bf16.mxu0 0
    %1477 = vmatpush2.bf16.msra.mxu0 0
    %1478 = vmatprep.subr.bf16.mxu0 0
    %1479 = vmatpush2.bf16.msra.mxu0 0
    %1480 = vmatprep.subr.bf16.mxu0 0
    %1481 = vmatpush2.bf16.msra.mxu0 0
    %1482 = vmatprep.subr.bf16.mxu0 0
    %1483 = vmatpush2.bf16.msra.mxu0 0
    %1484 = vmatprep.subr.bf16.mxu0 0
    %1485 = vmatpush2.bf16.msra.mxu0 0
    %1486 = vmatprep.subr.bf16.mxu0 0
    %1487 = vmatpush2.bf16.msra.mxu0 0
    %1488 = vmatprep.subr.bf16.mxu0 0
    %1489 = vmatpush2.bf16.msra.mxu0 0
    %1490 = vmatprep.mubr.bf16.mxu0 0
    %1491 = vmatmul.mubr.bf16.gmra.mxu0 %v1453
    %v1492 = vpop.f32.mrf.mxu0
    %v1493 = vadd.f32 0.0, %v1492
    %v1494 = vpop.f32.mrf.mxu0
    %v1495 = vpop.f32.mrf.mxu0
    %v1496 = vpop.f32.mrf.mxu0
    %1497 = vdwg.mxu0
    %v1499 = vsel %vm1173, %v1164, 0
    %v1502 = vand.u32 %v1172, %v1178
    %1504 = vmatprep.subr.bf16.mxu0 0
    %1505 = vmatpush1.bf16.msra.mxu0 0
    %1506 = vmatprep.subr.bf16.mxu0 0
    %1507 = vmatpush1.bf16.msra.mxu0 0
    %1508 = vmatprep.subr.bf16.mxu0 0
    %1509 = vmatpush1.bf16.msra.mxu0 0
    %1510 = vmatprep.subr.bf16.mxu0 0
    %1511 = vmatpush1.bf16.msra.mxu0 0
    %1512 = vmatprep.subr.bf16.mxu0 0
    %1513 = vmatpush1.bf16.msra.mxu0 0
    %1514 = vmatprep.subr.bf16.mxu0 0
    %1515 = vmatpush1.bf16.msra.mxu0 0
    %1516 = vmatprep.subr.bf16.mxu0 0
    %1517 = vmatpush1.bf16.msra.mxu0 0
    %1518 = vmatprep.subr.bf16.mxu0 0
    %1519 = vmatpush1.bf16.msra.mxu0 %v1502
    %1520 = vmatprep.subr.bf16.mxu0 0
    %1521 = vmatpush2.bf16.msra.mxu0 0
    %1522 = vmatprep.subr.bf16.mxu0 0
    %1523 = vmatpush2.bf16.msra.mxu0 0
    %1524 = vmatprep.subr.bf16.mxu0 0
    %1525 = vmatpush2.bf16.msra.mxu0 0
    %1526 = vmatprep.subr.bf16.mxu0 0
    %1527 = vmatpush2.bf16.msra.mxu0 0
    %1528 = vmatprep.subr.bf16.mxu0 0
    %1529 = vmatpush2.bf16.msra.mxu0 0
    %1530 = vmatprep.subr.bf16.mxu0 0
    %1531 = vmatpush2.bf16.msra.mxu0 0
    %1532 = vmatprep.subr.bf16.mxu0 0
    %1533 = vmatpush2.bf16.msra.mxu0 0
    %1534 = vmatprep.subr.bf16.mxu0 0
    %1535 = vmatpush2.bf16.msra.mxu0 0
    %1536 = vmatprep.mubr.bf16.mxu0 0
    %1537 = vmatmul.mubr.bf16.gmra.mxu0 %v1499
    %v1538 = vpop.f32.mrf.mxu0
    %v1539 = vadd.f32 0.0, %v1538
    %v1540 = vpop.f32.mrf.mxu0
    %v1541 = vpop.f32.mrf.mxu0
    %v1542 = vpop.f32.mrf.mxu0
    %1543 = vdwg.mxu0
    %vm1544 = vcmask 258048
    %1545 = vst.msk [vmem:[#allocation2] sm:$0x1f] %vm1544, %v1217
    %1547 = vrot.lane.b32.xlu0 %v1263, 32
    %v1548 = vpop.permute.xlu0 %1547
    %vm1550 = vcmask 520448
    %1551 = vst.msk [vmem:[#allocation2] sm:$0x1f] %vm1550, %v1548
    %1553 = vrot.lane.b32.xlu0 %v1309, 64
    %v1554 = vpop.permute.xlu0 %1553
    %vm1556 = vcmask 782848
    %1557 = vst.msk [vmem:[#allocation2] sm:$0x1f] %vm1556, %v1554
    %1559 = vrot.lane.b32.xlu0 %v1355, 96
    %v1560 = vpop.permute.xlu0 %1559
    %vm1562 = vcmask 1045248
    %1563 = vst.msk [vmem:[#allocation2] sm:$0x1f] %vm1562, %v1560
    %1564 = vst.msk [vmem:[#allocation2 + $0x5] sm:$0x1f] %vm1544, %v1401
    %1566 = vrot.lane.b32.xlu0 %v1447, 32
    %v1567 = vpop.permute.xlu0 %1566
    %1569 = vst.msk [vmem:[#allocation2 + $0x5] sm:$0x1f] %vm1550, %v1567
    %1571 = vrot.lane.b32.xlu0 %v1493, 64
    %v1572 = vpop.permute.xlu0 %1571
    %1574 = vst.msk [vmem:[#allocation2 + $0x5] sm:$0x1f] %vm1556, %v1572
    %1576 = vrot.lane.b32.xlu0 %v1539, 96
    %v1577 = vpop.permute.xlu0 %1576
    %1579 = vst.msk [vmem:[#allocation2 + $0x5] sm:$0x1f] %vm1562, %v1577
    %v1580 = vld [vmem:[#allocation2] sm:$0xff]
    %v1581 = vld [vmem:[#allocation2 + $0x8] sm:$0x3]
    %v1582 = vpack.c.bf16 %v1581, %v1580
    %v1583 = vld [vmem:[#allocation8] sm:$0xf]
    %v1584 = vld [vmem:[#allocation8 + $0x4] sm:$0xf]
    %v1585 = vld [vmem:[#allocation8 + $0x8] sm:$0xf]
    %v1586 = vld [vmem:[#allocation8 + $0xc] sm:$0xf]
    %v1587 = vld [vmem:[#allocation8 + $0x10] sm:$0xf]
    %v1588 = vld [vmem:[#allocation8 + $0x14] sm:$0xf]
    %v1589 = vld [vmem:[#allocation8 + $0x18] sm:$0xf]
    %v1590 = vld [vmem:[#allocation8 + $0x1c] sm:$0xf]
    %v1591 = vld [vmem:[#allocation8 + $0x20] sm:$0xf]
    %v1592 = vld [vmem:[#allocation8 + $0x24] sm:$0xf]
    %v1593 = vld [vmem:[#allocation8 + $0x28] sm:$0xf]
    %v1594 = vld [vmem:[#allocation8 + $0x2c] sm:$0xf]
    %v1595 = vld [vmem:[#allocation8 + $0x30] sm:$0xf]
    %v1596 = vld [vmem:[#allocation8 + $0x34] sm:$0xf]
    %v1597 = vld [vmem:[#allocation8 + $0x38] sm:$0xf]
    %v1598 = vld [vmem:[#allocation8 + $0x3c] sm:$0xf]
    %v1615 = vunpack.c.l.b16 %v1583
    %v1616 = vunpack.c.l.b16 %v1584
    %v1617 = vunpack.c.l.b16 %v1585
    %v1618 = vunpack.c.l.b16 %v1586
    %v1619 = vunpack.c.l.b16 %v1587
    %v1620 = vunpack.c.l.b16 %v1588
    %v1621 = vunpack.c.l.b16 %v1589
    %v1622 = vunpack.c.l.b16 %v1590
    %v1623 = vunpack.c.l.b16 %v1591
    %v1624 = vunpack.c.l.b16 %v1592
    %v1625 = vunpack.c.l.b16 %v1593
    %v1626 = vunpack.c.l.b16 %v1594
    %v1627 = vunpack.c.l.b16 %v1595
    %v1628 = vunpack.c.l.b16 %v1596
    %v1629 = vunpack.c.l.b16 %v1597
    %v1630 = vunpack.c.l.b16 %v1598
    %v1631 = vpack.c.b16 %v1616, %v1615
    %v1632 = vpack.c.b16 %v1618, %v1617
    %v1633 = vpack.c.b16 %v1620, %v1619
    %v1634 = vpack.c.b16 %v1622, %v1621
    %v1635 = vpack.c.b16 %v1624, %v1623
    %v1636 = vpack.c.b16 %v1626, %v1625
    %v1637 = vpack.c.b16 %v1628, %v1627
    %v1638 = vpack.c.b16 %v1630, %v1629
    %1647 = vmatprep.subr.bf16.mxu0 0
    %1648 = vmatpush1.bf16.msra.mxu0 %v1638
    %1649 = vmatprep.subr.bf16.mxu0 0
    %1650 = vmatpush1.bf16.msra.mxu0 %v1637
    %1651 = vmatprep.subr.bf16.mxu0 0
    %1652 = vmatpush1.bf16.msra.mxu0 %v1636
    %1653 = vmatprep.subr.bf16.mxu0 0
    %1654 = vmatpush1.bf16.msra.mxu0 %v1635
    %1655 = vmatprep.subr.bf16.mxu0 0
    %1656 = vmatpush1.bf16.msra.mxu0 %v1634
    %1657 = vmatprep.subr.bf16.mxu0 0
    %1658 = vmatpush1.bf16.msra.mxu0 %v1633
    %1659 = vmatprep.subr.bf16.mxu0 0
    %1660 = vmatpush1.bf16.msra.mxu0 %v1632
    %1661 = vmatprep.subr.bf16.mxu0 0
    %1662 = vmatpush1.bf16.msra.mxu0 %v1631
    %1663 = vmatprep.subr.bf16.mxu0 0
    %1664 = vmatpush2.bf16.msra.mxu0 0
    %1665 = vmatprep.subr.bf16.mxu0 0
    %1666 = vmatpush2.bf16.msra.mxu0 0
    %1667 = vmatprep.subr.bf16.mxu0 0
    %1668 = vmatpush2.bf16.msra.mxu0 0
    %1669 = vmatprep.subr.bf16.mxu0 0
    %1670 = vmatpush2.bf16.msra.mxu0 0
    %1671 = vmatprep.subr.bf16.mxu0 0
    %1672 = vmatpush2.bf16.msra.mxu0 0
    %1673 = vmatprep.subr.bf16.mxu0 0
    %1674 = vmatpush2.bf16.msra.mxu0 0
    %1675 = vmatprep.subr.bf16.mxu0 0
    %1676 = vmatpush2.bf16.msra.mxu0 0
    %1677 = vmatprep.subr.bf16.mxu0 0
    %1678 = vmatpush2.bf16.msra.mxu0 0
    %1679 = vmatprep.mubr.bf16.mxu0 0
    %1680 = vmatmul.mubr.bf16.gmra.mxu0 %v1582
    %v1681 = vpop.f32.mrf.mxu0
    %v1682 = vadd.f32 %v315, %v1681
    %v1683 = vpop.f32.mrf.mxu0
    %v1684 = vpop.f32.mrf.mxu0
    %v1685 = vadd.f32 %v315, %v1684
    %v1686 = vpop.f32.mrf.mxu0
    %1687 = vdwg.mxu0
    %v1688 = vadd.f32 %v307, %v1682
    %v1689 = vadd.f32 %v308, %v1685
    %1690 = vadd.xlane.f32.xlu0 %v1688
    %v1691 = vpop.xlane.xlu0 %1690
    %v1692 = vsel %vm321, %v1689, 0.0
    %1693 = vadd.xlane.f32.xlu0 %v1692
    %v1694 = vpop.xlane.xlu0 %1693
    %v1695 = vmul.f32 %v1691, %v325
    %v1696 = vmul.f32 %v1694, %v325
    %v1697 = vsub.f32 %v1688, %v1695
    %v1698 = vsub.f32 %v1689, %v1696
    %v1699 = vmul.f32 %v1697, %v1697
    %v1700 = vmul.f32 %v1698, %v1698
    %1701 = vadd.xlane.f32.xlu0 %v1699
    %v1702 = vpop.xlane.xlu0 %1701
    %v1703 = vsel %vm321, %v1700, 0.0
    %1704 = vadd.xlane.f32.xlu0 %v1703
    %v1705 = vpop.xlane.xlu0 %1704
    %v1706 = vmul.f32 %v1702, %v325
    %v1707 = vmul.f32 %v1705, %v325
    %v1708 = vadd.f32 %v1706, 1e-06
    %v1709 = vadd.f32 %v1707, 1e-06
    %v1710 = vrsqrt.pop %v1708
    %v1711 = vrsqrt.pop %v1709
    %v1712 = vmul.f32 %v1697, %v1710
    %v1713 = vmul.f32 %v1698, %v1711
    %v1714 = vmul.f32 %v1712, %v311
    %v1715 = vmul.f32 %v1713, %v311
    %v1716 = vadd.f32 %v1714, %v312
    %v1717 = vadd.f32 %v1715, %v312
    %v1718 = vpack.c.bf16 %v1717, %v1716
    %v1719 = vld [vmem:[#allocation10] sm:$0xff]
    %v1720 = vld [vmem:[#allocation10 + $0x8] sm:$0xff]
    %v1721 = vld [vmem:[#allocation10 + $0x10] sm:$0xff]
    %v1722 = vld [vmem:[#allocation10 + $0x18] sm:$0xff]
    %v1723 = vld [vmem:[#allocation10 + $0x20] sm:$0xff]
    %v1724 = vld [vmem:[#allocation10 + $0x28] sm:$0xff]
    %v1725 = vld [vmem:[#allocation10 + $0x30] sm:$0xff]
    %v1726 = vld [vmem:[#allocation10 + $0x38] sm:$0xff]
    %v1727 = vld [vmem:[#allocation10 + $0x40] sm:$0xff]
    %v1728 = vld [vmem:[#allocation10 + $0x48] sm:$0xff]
    %v1729 = vld [vmem:[#allocation10 + $0x50] sm:$0xff]
    %v1730 = vld [vmem:[#allocation10 + $0x58] sm:$0xff]
    %v1731 = vld [vmem:[#allocation10 + $0x60] sm:$0xff]
    %v1732 = vld [vmem:[#allocation10 + $0x68] sm:$0xff]
    %v1733 = vld [vmem:[#allocation10 + $0x70] sm:$0xff]
    %v1734 = vld [vmem:[#allocation10 + $0x78] sm:$0xff]
    %v1736 = vlaneseq
    %v1737 = vshrl.u32 %v1736, 7
    %v1738 = vsub.s32 0, %v1737
    %v1739 = vrot.slane %v317, %v1738
    %v1740 = vlaneseq
    %v1741 = vshrl.u32 %v1740, 7
    %v1742 = vsub.s32 1, %v1741
    %v1743 = vrot.slane %v317, %v1742
    %v1762 = vunpack.c.l.b16 %v1719
    %v1763 = vunpack.c.h.b16 %v1719
    %v1764 = vunpack.c.l.b16 %v1720
    %v1765 = vunpack.c.h.b16 %v1720
    %v1766 = vunpack.c.l.b16 %v1721
    %v1767 = vunpack.c.h.b16 %v1721
    %v1768 = vunpack.c.l.b16 %v1722
    %v1769 = vunpack.c.h.b16 %v1722
    %v1770 = vunpack.c.l.b16 %v1723
    %v1771 = vunpack.c.h.b16 %v1723
    %v1772 = vunpack.c.l.b16 %v1724
    %v1773 = vunpack.c.h.b16 %v1724
    %v1774 = vunpack.c.l.b16 %v1725
    %v1775 = vunpack.c.h.b16 %v1725
    %v1776 = vunpack.c.l.b16 %v1726
    %v1777 = vunpack.c.h.b16 %v1726
    %v1778 = vunpack.c.l.b16 %v1727
    %v1779 = vunpack.c.h.b16 %v1727
    %v1780 = vunpack.c.l.b16 %v1728
    %v1781 = vunpack.c.h.b16 %v1728
    %v1782 = vunpack.c.l.b16 %v1729
    %v1783 = vunpack.c.h.b16 %v1729
    %v1784 = vunpack.c.l.b16 %v1730
    %v1785 = vunpack.c.h.b16 %v1730
    %v1786 = vunpack.c.l.b16 %v1731
    %v1787 = vunpack.c.h.b16 %v1731
    %v1788 = vunpack.c.l.b16 %v1732
    %v1789 = vunpack.c.h.b16 %v1732
    %v1790 = vunpack.c.l.b16 %v1733
    %v1791 = vunpack.c.h.b16 %v1733
    %v1792 = vunpack.c.l.b16 %v1734
    %v1793 = vunpack.c.h.b16 %v1734
    %v1794 = vpack.c.b16 %v1764, %v1762
    %v1795 = vpack.c.b16 %v1765, %v1763
    %v1796 = vpack.c.b16 %v1768, %v1766
    %v1797 = vpack.c.b16 %v1769, %v1767
    %v1798 = vpack.c.b16 %v1772, %v1770
    %v1799 = vpack.c.b16 %v1773, %v1771
    %v1800 = vpack.c.b16 %v1776, %v1774
    %v1801 = vpack.c.b16 %v1777, %v1775
    %v1802 = vpack.c.b16 %v1780, %v1778
    %v1803 = vpack.c.b16 %v1781, %v1779
    %v1804 = vpack.c.b16 %v1784, %v1782
    %v1805 = vpack.c.b16 %v1785, %v1783
    %v1806 = vpack.c.b16 %v1788, %v1786
    %v1807 = vpack.c.b16 %v1789, %v1787
    %v1808 = vpack.c.b16 %v1792, %v1790
    %v1809 = vpack.c.b16 %v1793, %v1791
    %1826 = vmatprep.subr.bf16.mxu0 %v1809
    %1827 = vmatpush1.bf16.msra.mxu0 %v1808
    %1828 = vmatprep.subr.bf16.mxu0 %v1807
    %1829 = vmatpush1.bf16.msra.mxu0 %v1806
    %1830 = vmatprep.subr.bf16.mxu0 %v1805
    %1831 = vmatpush1.bf16.msra.mxu0 %v1804
    %1832 = vmatprep.subr.bf16.mxu0 %v1803
    %1833 = vmatpush1.bf16.msra.mxu0 %v1802
    %1834 = vmatprep.subr.bf16.mxu0 %v1801
    %1835 = vmatpush1.bf16.msra.mxu0 %v1800
    %1836 = vmatprep.subr.bf16.mxu0 %v1799
    %1837 = vmatpush1.bf16.msra.mxu0 %v1798
    %1838 = vmatprep.subr.bf16.mxu0 %v1797
    %1839 = vmatpush1.bf16.msra.mxu0 %v1796
    %1840 = vmatprep.subr.bf16.mxu0 %v1795
    %1841 = vmatpush1.bf16.msra.mxu0 %v1794
    %1842 = vmatprep.subr.bf16.mxu0 0
    %1843 = vmatpush2.bf16.msra.mxu0 0
    %1844 = vmatprep.subr.bf16.mxu0 0
    %1845 = vmatpush2.bf16.msra.mxu0 0
    %1846 = vmatprep.subr.bf16.mxu0 0
    %1847 = vmatpush2.bf16.msra.mxu0 0
    %1848 = vmatprep.subr.bf16.mxu0 0
    %1849 = vmatpush2.bf16.msra.mxu0 0
    %1850 = vmatprep.subr.bf16.mxu0 0
    %1851 = vmatpush2.bf16.msra.mxu0 0
    %1852 = vmatprep.subr.bf16.mxu0 0
    %1853 = vmatpush2.bf16.msra.mxu0 0
    %1854 = vmatprep.subr.bf16.mxu0 0
    %1855 = vmatpush2.bf16.msra.mxu0 0
    %1856 = vmatprep.subr.bf16.mxu0 0
    %1857 = vmatpush2.bf16.msra.mxu0 0
    %1858 = vmatprep.mubr.bf16.mxu0 0
    %1859 = vmatmul.mubr.bf16.gmra.mxu0 %v1718
    %v1860 = vpop.f32.mrf.mxu0
    %v1861 = vadd.f32 %v1739, %v1860
    %v1862 = vpop.f32.mrf.mxu0
    %v1863 = vadd.f32 %v1743, %v1862
    %v1864 = vpop.f32.mrf.mxu0
    %v1865 = vadd.f32 %v1739, %v1864
    %v1866 = vpop.f32.mrf.mxu0
    %v1867 = vadd.f32 %v1743, %v1866
    %1868 = vdwg.mxu0
    %v1869 = vmul.f32 %v1861, %v1861
    %v1870 = vmul.f32 %v1863, %v1863
    %v1871 = vmul.f32 %v1865, %v1865
    %v1872 = vmul.f32 %v1867, %v1867
    %v1873 = vmul.f32 %v1861, %v1869
    %v1874 = vmul.f32 %v1863, %v1870
    %v1875 = vmul.f32 %v1865, %v1871
    %v1876 = vmul.f32 %v1867, %v1872
    %v1877 = vmul.f32 %v1873, 0.044715
    %v1878 = vmul.f32 %v1874, 0.044715
    %v1879 = vmul.f32 %v1875, 0.044715
    %v1880 = vmul.f32 %v1876, 0.044715
    %v1881 = vadd.f32 %v1861, %v1877
    %v1882 = vadd.f32 %v1863, %v1878
    %v1883 = vadd.f32 %v1865, %v1879
    %v1884 = vadd.f32 %v1867, %v1880
    %v1885 = vmul.f32 %v1881, 0.7978846
    %v1886 = vmul.f32 %v1882, 0.7978846
    %v1887 = vmul.f32 %v1883, 0.7978846
    %v1888 = vmul.f32 %v1884, 0.7978846
    %v1889 = vtanh.pop %v1885
    %v1890 = vtanh.pop %v1886
    %v1891 = vtanh.pop %v1887
    %v1892 = vtanh.pop %v1888
    %v1893 = vadd.f32 %v1889, 1.0
    %v1894 = vadd.f32 %v1890, 1.0
    %v1895 = vadd.f32 %v1891, 1.0
    %v1896 = vadd.f32 %v1892, 1.0
    %v1897 = vmul.f32 %v1893, 0.5
    %v1898 = vmul.f32 %v1894, 0.5
    %v1899 = vmul.f32 %v1895, 0.5
    %v1900 = vmul.f32 %v1896, 0.5
    %v1901 = vmul.f32 %v1861, %v1897
    %v1902 = vmul.f32 %v1863, %v1898
    %v1903 = vmul.f32 %v1865, %v1899
    %v1904 = vmul.f32 %v1867, %v1900
    %v1905 = vpack.c.bf16 %v1903, %v1901
    %v1906 = vpack.c.bf16 %v1904, %v1902
    %v1907 = vld [vmem:[#allocation11] sm:$0xf]
    %v1908 = vld [vmem:[#allocation11 + $0x4] sm:$0xf]
    %v1909 = vld [vmem:[#allocation11 + $0x8] sm:$0xf]
    %v1910 = vld [vmem:[#allocation11 + $0xc] sm:$0xf]
    %v1911 = vld [vmem:[#allocation11 + $0x10] sm:$0xf]
    %v1912 = vld [vmem:[#allocation11 + $0x14] sm:$0xf]
    %v1913 = vld [vmem:[#allocation11 + $0x18] sm:$0xf]
    %v1914 = vld [vmem:[#allocation11 + $0x1c] sm:$0xf]
    %v1915 = vld [vmem:[#allocation11 + $0x20] sm:$0xf]
    %v1916 = vld [vmem:[#allocation11 + $0x24] sm:$0xf]
    %v1917 = vld [vmem:[#allocation11 + $0x28] sm:$0xf]
    %v1918 = vld [vmem:[#allocation11 + $0x2c] sm:$0xf]
    %v1919 = vld [vmem:[#allocation11 + $0x30] sm:$0xf]
    %v1920 = vld [vmem:[#allocation11 + $0x34] sm:$0xf]
    %v1921 = vld [vmem:[#allocation11 + $0x38] sm:$0xf]
    %v1922 = vld [vmem:[#allocation11 + $0x3c] sm:$0xf]
    %v1923 = vld [vmem:[#allocation11 + $0x40] sm:$0xf]
    %v1924 = vld [vmem:[#allocation11 + $0x44] sm:$0xf]
    %v1925 = vld [vmem:[#allocation11 + $0x48] sm:$0xf]
    %v1926 = vld [vmem:[#allocation11 + $0x4c] sm:$0xf]
    %v1927 = vld [vmem:[#allocation11 + $0x50] sm:$0xf]
    %v1928 = vld [vmem:[#allocation11 + $0x54] sm:$0xf]
    %v1929 = vld [vmem:[#allocation11 + $0x58] sm:$0xf]
    %v1930 = vld [vmem:[#allocation11 + $0x5c] sm:$0xf]
    %v1931 = vld [vmem:[#allocation11 + $0x60] sm:$0xf]
    %v1932 = vld [vmem:[#allocation11 + $0x64] sm:$0xf]
    %v1933 = vld [vmem:[#allocation11 + $0x68] sm:$0xf]
    %v1934 = vld [vmem:[#allocation11 + $0x6c] sm:$0xf]
    %v1935 = vld [vmem:[#allocation11 + $0x70] sm:$0xf]
    %v1936 = vld [vmem:[#allocation11 + $0x74] sm:$0xf]
    %v1937 = vld [vmem:[#allocation11 + $0x78] sm:$0xf]
    %v1938 = vld [vmem:[#allocation11 + $0x7c] sm:$0xf]
    %v1971 = vunpack.c.l.b16 %v1907
    %v1972 = vunpack.c.l.b16 %v1908
    %v1973 = vunpack.c.l.b16 %v1909
    %v1974 = vunpack.c.l.b16 %v1910
    %v1975 = vunpack.c.l.b16 %v1911
    %v1976 = vunpack.c.l.b16 %v1912
    %v1977 = vunpack.c.l.b16 %v1913
    %v1978 = vunpack.c.l.b16 %v1914
    %v1979 = vunpack.c.l.b16 %v1915
    %v1980 = vunpack.c.l.b16 %v1916
    %v1981 = vunpack.c.l.b16 %v1917
    %v1982 = vunpack.c.l.b16 %v1918
    %v1983 = vunpack.c.l.b16 %v1919
    %v1984 = vunpack.c.l.b16 %v1920
    %v1985 = vunpack.c.l.b16 %v1921
    %v1986 = vunpack.c.l.b16 %v1922
    %v1987 = vunpack.c.l.b16 %v1923
    %v1988 = vunpack.c.l.b16 %v1924
    %v1989 = vunpack.c.l.b16 %v1925
    %v1990 = vunpack.c.l.b16 %v1926
    %v1991 = vunpack.c.l.b16 %v1927
    %v1992 = vunpack.c.l.b16 %v1928
    %v1993 = vunpack.c.l.b16 %v1929
    %v1994 = vunpack.c.l.b16 %v1930
    %v1995 = vunpack.c.l.b16 %v1931
    %v1996 = vunpack.c.l.b16 %v1932
    %v1997 = vunpack.c.l.b16 %v1933
    %v1998 = vunpack.c.l.b16 %v1934
    %v1999 = vunpack.c.l.b16 %v1935
    %v2000 = vunpack.c.l.b16 %v1936
    %v2001 = vunpack.c.l.b16 %v1937
    %v2002 = vunpack.c.l.b16 %v1938
    %v2003 = vpack.c.b16 %v1972, %v1971
    %v2004 = vpack.c.b16 %v1974, %v1973
    %v2005 = vpack.c.b16 %v1976, %v1975
    %v2006 = vpack.c.b16 %v1978, %v1977
    %v2007 = vpack.c.b16 %v1980, %v1979
    %v2008 = vpack.c.b16 %v1982, %v1981
    %v2009 = vpack.c.b16 %v1984, %v1983
    %v2010 = vpack.c.b16 %v1986, %v1985
    %v2011 = vpack.c.b16 %v1988, %v1987
    %v2012 = vpack.c.b16 %v1990, %v1989
    %v2013 = vpack.c.b16 %v1992, %v1991
    %v2014 = vpack.c.b16 %v1994, %v1993
    %v2015 = vpack.c.b16 %v1996, %v1995
    %v2016 = vpack.c.b16 %v1998, %v1997
    %v2017 = vpack.c.b16 %v2000, %v1999
    %v2018 = vpack.c.b16 %v2002, %v2001
    %2035 = vmatprep.subr.bf16.mxu0 0
    %2036 = vmatpush1.bf16.msra.mxu0 %v2010
    %2037 = vmatprep.subr.bf16.mxu0 0
    %2038 = vmatpush1.bf16.msra.mxu0 %v2009
    %2039 = vmatprep.subr.bf16.mxu0 0
    %2040 = vmatpush1.bf16.msra.mxu0 %v2008
    %2041 = vmatprep.subr.bf16.mxu0 0
    %2042 = vmatpush1.bf16.msra.mxu0 %v2007
    %2043 = vmatprep.subr.bf16.mxu0 0
    %2044 = vmatpush1.bf16.msra.mxu0 %v2006
    %2045 = vmatprep.subr.bf16.mxu0 0
    %2046 = vmatpush1.bf16.msra.mxu0 %v2005
    %2047 = vmatprep.subr.bf16.mxu0 0
    %2048 = vmatpush1.bf16.msra.mxu0 %v2004
    %2049 = vmatprep.subr.bf16.mxu0 0
    %2050 = vmatpush1.bf16.msra.mxu0 %v2003
    %2051 = vmatprep.subr.bf16.mxu0 0
    %2052 = vmatpush2.bf16.msra.mxu0 %v2018
    %2053 = vmatprep.subr.bf16.mxu0 0
    %2054 = vmatpush2.bf16.msra.mxu0 %v2017
    %2055 = vmatprep.subr.bf16.mxu0 0
    %2056 = vmatpush2.bf16.msra.mxu0 %v2016
    %2057 = vmatprep.subr.bf16.mxu0 0
    %2058 = vmatpush2.bf16.msra.mxu0 %v2015
    %2059 = vmatprep.subr.bf16.mxu0 0
    %2060 = vmatpush2.bf16.msra.mxu0 %v2014
    %2061 = vmatprep.subr.bf16.mxu0 0
    %2062 = vmatpush2.bf16.msra.mxu0 %v2013
    %2063 = vmatprep.subr.bf16.mxu0 0
    %2064 = vmatpush2.bf16.msra.mxu0 %v2012
    %2065 = vmatprep.subr.bf16.mxu0 0
    %2066 = vmatpush2.bf16.msra.mxu0 %v2011
    %2067 = vmatprep.mubr.bf16.mxu0 %v1906
    %2068 = vmatmul.mubr.bf16.gmra.mxu0 %v1905
    %v2069 = vpop.f32.mrf.mxu0
    %v2070 = vadd.f32 %v318, %v2069
    %v2071 = vpop.f32.mrf.mxu0
    %v2072 = vpop.f32.mrf.mxu0
    %v2073 = vadd.f32 %v318, %v2072
    %v2074 = vpop.f32.mrf.mxu0
    %2075 = vdwg.mxu0
    %v2076 = vadd.f32 %v1688, %v2070
    %v2077 = vadd.f32 %v1689, %v2073
    %v2078 = vld [vmem:[#allocation13 + $0x31] ss:$0 sm:$0xff]
    %v2079 = vld [vmem:[#allocation13 + $0x32] ss:$0 sm:$0xff]
    %v2080 = vld [vmem:[#allocation13 + $0x33] ss:$0 sm:$0xff]
    %v2081 = vld [vmem:[#allocation13 + $0x34] ss:$0 sm:$0xff]
    %s2082 = scalar_lea.vmem [#allocation13], 53
    %v2083 = vld [vmem:[%s2082] ss:$8 sm:$0x7]
    %v2084 = vld [vmem:[#allocation13 + $0x36] ss:$0 sm:$0xff]
    %s2085 = scalar_lea.vmem [#allocation13], 55
    %v2086 = vld [vmem:[%s2085] ss:$8 sm:$0x3]
    %v2087 = vld [vmem:[#allocation13 + $0x48] ss:$0 sm:$0xff]
    %2088 = vadd.xlane.f32.xlu0 %v2076
    %v2089 = vpop.xlane.xlu0 %2088
    %v2090 = vsel %vm321, %v2077, 0.0
    %2091 = vadd.xlane.f32.xlu0 %v2090
    %v2092 = vpop.xlane.xlu0 %2091
    %v2093 = vmul.f32 %v2089, %v325
    %v2094 = vmul.f32 %v2092, %v325
    %v2095 = vsub.f32 %v2076, %v2093
    %v2096 = vsub.f32 %v2077, %v2094
    %v2097 = vmul.f32 %v2095, %v2095
    %v2098 = vmul.f32 %v2096, %v2096
    %2099 = vadd.xlane.f32.xlu0 %v2097
    %v2100 = vpop.xlane.xlu0 %2099
    %v2101 = vsel %vm321, %v2098, 0.0
    %2102 = vadd.xlane.f32.xlu0 %v2101
    %v2103 = vpop.xlane.xlu0 %2102
    %v2104 = vmul.f32 %v2100, %v325
    %v2105 = vmul.f32 %v2103, %v325
    %v2106 = vadd.f32 %v2104, 1e-06
    %v2107 = vadd.f32 %v2105, 1e-06
    %v2108 = vrsqrt.pop %v2106
    %v2109 = vrsqrt.pop %v2107
    %v2110 = vmul.f32 %v2095, %v2108
    %v2111 = vmul.f32 %v2096, %v2109
    %v2112 = vmul.f32 %v2110, %v2078
    %v2113 = vmul.f32 %v2111, %v2078
    %v2114 = vadd.f32 %v2112, %v2079
    %v2115 = vadd.f32 %v2113, %v2079
    %v2116 = vpack.c.bf16 %v2115, %v2114
    %s2117 = scalar_lea.vmem [#allocation7], 192
    %v2118 = vld [vmem:[%s2117] sm:$0xff]
    %v2119 = vld [vmem:[%s2117 + $0x8] sm:$0xf]
    %v2120 = vld [vmem:[%s2117 + $0xc] sm:$0xff]
    %v2121 = vld [vmem:[%s2117 + $0x14] sm:$0xf]
    %v2122 = vld [vmem:[%s2117 + $0x18] sm:$0xff]
    %v2123 = vld [vmem:[%s2117 + $0x20] sm:$0xf]
    %v2124 = vld [vmem:[%s2117 + $0x24] sm:$0xff]
    %v2125 = vld [vmem:[%s2117 + $0x2c] sm:$0xf]
    %v2126 = vld [vmem:[%s2117 + $0x30] sm:$0xff]
    %v2127 = vld [vmem:[%s2117 + $0x38] sm:$0xf]
    %v2128 = vld [vmem:[%s2117 + $0x3c] sm:$0xff]
    %v2129 = vld [vmem:[%s2117 + $0x44] sm:$0xf]
    %v2130 = vld [vmem:[%s2117 + $0x48] sm:$0xff]
    %v2131 = vld [vmem:[%s2117 + $0x50] sm:$0xf]
    %v2132 = vld [vmem:[%s2117 + $0x54] sm:$0xff]
    %v2133 = vld [vmem:[%s2117 + $0x5c] sm:$0xf]
    %v2134 = vld [vmem:[%s2117 + $0x60] sm:$0xff]
    %v2135 = vld [vmem:[%s2117 + $0x68] sm:$0xf]
    %v2136 = vld [vmem:[%s2117 + $0x6c] sm:$0xff]
    %v2137 = vld [vmem:[%s2117 + $0x74] sm:$0xf]
    %v2138 = vld [vmem:[%s2117 + $0x78] sm:$0xff]
    %v2139 = vld [vmem:[%s2117 + $0x80] sm:$0xf]
    %v2140 = vld [vmem:[%s2117 + $0x84] sm:$0xff]
    %v2141 = vld [vmem:[%s2117 + $0x8c] sm:$0xf]
    %v2142 = vld [vmem:[%s2117 + $0x90] sm:$0xff]
    %v2143 = vld [vmem:[%s2117 + $0x98] sm:$0xf]
    %v2144 = vld [vmem:[%s2117 + $0x9c] sm:$0xff]
    %v2145 = vld [vmem:[%s2117 + $0xa4] sm:$0xf]
    %v2146 = vld [vmem:[%s2117 + $0xa8] sm:$0xff]
    %v2147 = vld [vmem:[%s2117 + $0xb0] sm:$0xf]
    %v2148 = vld [vmem:[%s2117 + $0xb4] sm:$0xff]
    %v2149 = vld [vmem:[%s2117 + $0xbc] sm:$0xf]
    %v2151 = vlaneseq
    %v2152 = vshrl.u32 %v2151, 7
    %v2153 = vsub.s32 0, %v2152
    %v2154 = vrot.slane %v2083, %v2153
    %v2155 = vlaneseq
    %v2156 = vshrl.u32 %v2155, 7
    %v2157 = vsub.s32 1, %v2156
    %v2158 = vrot.slane %v2083, %v2157
    %v2159 = vlaneseq
    %v2160 = vshrl.u32 %v2159, 7
    %v2161 = vsub.s32 2, %v2160
    %v2162 = vrot.slane %v2083, %v2161
    %v2198 = vunpack.c.l.b16 %v2118
    %v2199 = vunpack.c.h.b16 %v2118
    %v2200 = vunpack.c.l.b16 %v2119
    %v2201 = vunpack.c.l.b16 %v2120
    %v2202 = vunpack.c.h.b16 %v2120
    %v2203 = vunpack.c.l.b16 %v2121
    %v2204 = vunpack.c.l.b16 %v2122
    %v2205 = vunpack.c.h.b16 %v2122
    %v2206 = vunpack.c.l.b16 %v2123
    %v2207 = vunpack.c.l.b16 %v2124
    %v2208 = vunpack.c.h.b16 %v2124
    %v2209 = vunpack.c.l.b16 %v2125
    %v2210 = vunpack.c.l.b16 %v2126
    %v2211 = vunpack.c.h.b16 %v2126
    %v2212 = vunpack.c.l.b16 %v2127
    %v2213 = vunpack.c.l.b16 %v2128
    %v2214 = vunpack.c.h.b16 %v2128
    %v2215 = vunpack.c.l.b16 %v2129
    %v2216 = vunpack.c.l.b16 %v2130
    %v2217 = vunpack.c.h.b16 %v2130
    %v2218 = vunpack.c.l.b16 %v2131
    %v2219 = vunpack.c.l.b16 %v2132
    %v2220 = vunpack.c.h.b16 %v2132
    %v2221 = vunpack.c.l.b16 %v2133
    %v2222 = vunpack.c.l.b16 %v2134
    %v2223 = vunpack.c.h.b16 %v2134
    %v2224 = vunpack.c.l.b16 %v2135
    %v2225 = vunpack.c.l.b16 %v2136
    %v2226 = vunpack.c.h.b16 %v2136
    %v2227 = vunpack.c.l.b16 %v2137
    %v2228 = vunpack.c.l.b16 %v2138
    %v2229 = vunpack.c.h.b16 %v2138
    %v2230 = vunpack.c.l.b16 %v2139
    %v2231 = vunpack.c.l.b16 %v2140
    %v2232 = vunpack.c.h.b16 %v2140
    %v2233 = vunpack.c.l.b16 %v2141
    %v2234 = vunpack.c.l.b16 %v2142
    %v2235 = vunpack.c.h.b16 %v2142
    %v2236 = vunpack.c.l.b16 %v2143
    %v2237 = vunpack.c.l.b16 %v2144
    %v2238 = vunpack.c.h.b16 %v2144
    %v2239 = vunpack.c.l.b16 %v2145
    %v2240 = vunpack.c.l.b16 %v2146
    %v2241 = vunpack.c.h.b16 %v2146
    %v2242 = vunpack.c.l.b16 %v2147
    %v2243 = vunpack.c.l.b16 %v2148
    %v2244 = vunpack.c.h.b16 %v2148
    %v2245 = vunpack.c.l.b16 %v2149
    %v2246 = vpack.c.b16 %v2201, %v2198
    %v2247 = vpack.c.b16 %v2202, %v2199
    %v2248 = vpack.c.b16 %v2203, %v2200
    %v2249 = vpack.c.b16 %v2207, %v2204
    %v2250 = vpack.c.b16 %v2208, %v2205
    %v2251 = vpack.c.b16 %v2209, %v2206
    %v2252 = vpack.c.b16 %v2213, %v2210
    %v2253 = vpack.c.b16 %v2214, %v2211
    %v2254 = vpack.c.b16 %v2215, %v2212
    %v2255 = vpack.c.b16 %v2219, %v2216
    %v2256 = vpack.c.b16 %v2220, %v2217
    %v2257 = vpack.c.b16 %v2221, %v2218
    %v2258 = vpack.c.b16 %v2225, %v2222
    %v2259 = vpack.c.b16 %v2226, %v2223
    %v2260 = vpack.c.b16 %v2227, %v2224
    %v2261 = vpack.c.b16 %v2231, %v2228
    %v2262 = vpack.c.b16 %v2232, %v2229
    %v2263 = vpack.c.b16 %v2233, %v2230
    %v2264 = vpack.c.b16 %v2237, %v2234
    %v2265 = vpack.c.b16 %v2238, %v2235
    %v2266 = vpack.c.b16 %v2239, %v2236
    %v2267 = vpack.c.b16 %v2243, %v2240
    %v2268 = vpack.c.b16 %v2244, %v2241
    %v2269 = vpack.c.b16 %v2245, %v2242
    %2294 = vmatprep.subr.bf16.mxu0 %v2268
    %2295 = vmatpush1.bf16.msra.mxu0 %v2267
    %2296 = vmatprep.subr.bf16.mxu0 %v2265
    %2297 = vmatpush1.bf16.msra.mxu0 %v2264
    %2298 = vmatprep.subr.bf16.mxu0 %v2262
    %2299 = vmatpush1.bf16.msra.mxu0 %v2261
    %2300 = vmatprep.subr.bf16.mxu0 %v2259
    %2301 = vmatpush1.bf16.msra.mxu0 %v2258
    %2302 = vmatprep.subr.bf16.mxu0 %v2256
    %2303 = vmatpush1.bf16.msra.mxu0 %v2255
    %2304 = vmatprep.subr.bf16.mxu0 %v2253
    %2305 = vmatpush1.bf16.msra.mxu0 %v2252
    %2306 = vmatprep.subr.bf16.mxu0 %v2250
    %2307 = vmatpush1.bf16.msra.mxu0 %v2249
    %2308 = vmatprep.subr.bf16.mxu0 %v2247
    %2309 = vmatpush1.bf16.msra.mxu0 %v2246
    %2310 = vmatprep.subr.bf16.mxu0 0
    %2311 = vmatpush2.bf16.msra.mxu0 0
    %2312 = vmatprep.subr.bf16.mxu0 0
    %2313 = vmatpush2.bf16.msra.mxu0 0
    %2314 = vmatprep.subr.bf16.mxu0 0
    %2315 = vmatpush2.bf16.msra.mxu0 0
    %2316 = vmatprep.subr.bf16.mxu0 0
    %2317 = vmatpush2.bf16.msra.mxu0 0
    %2318 = vmatprep.subr.bf16.mxu0 0
    %2319 = vmatpush2.bf16.msra.mxu0 0
    %2320 = vmatprep.subr.bf16.mxu0 0
    %2321 = vmatpush2.bf16.msra.mxu0 0
    %2322 = vmatprep.subr.bf16.mxu0 0
    %2323 = vmatpush2.bf16.msra.mxu0 0
    %2324 = vmatprep.subr.bf16.mxu0 0
    %2325 = vmatpush2.bf16.msra.mxu0 0
    %2326 = vmatprep.mubr.bf16.mxu0 0
    %2327 = vmatmul.mubr.bf16.gmra.mxu0 %v2116
    %v2328 = vpop.f32.mrf.mxu0
    %v2329 = vadd.f32 %v2154, %v2328
    %v2330 = vpop.f32.mrf.mxu0
    %v2331 = vadd.f32 %v2158, %v2330
    %v2332 = vpop.f32.mrf.mxu0
    %v2333 = vadd.f32 %v2154, %v2332
    %v2334 = vpop.f32.mrf.mxu0
    %v2335 = vadd.f32 %v2158, %v2334
    %2336 = vdwg.mxu0
    %2337 = vmatprep.subr.bf16.mxu0 0
    %2338 = vmatpush1.bf16.msra.mxu0 %v2269
    %2339 = vmatprep.subr.bf16.mxu0 0
    %2340 = vmatpush1.bf16.msra.mxu0 %v2266
    %2341 = vmatprep.subr.bf16.mxu0 0
    %2342 = vmatpush1.bf16.msra.mxu0 %v2263
    %2343 = vmatprep.subr.bf16.mxu0 0
    %2344 = vmatpush1.bf16.msra.mxu0 %v2260
    %2345 = vmatprep.subr.bf16.mxu0 0
    %2346 = vmatpush1.bf16.msra.mxu0 %v2257
    %2347 = vmatprep.subr.bf16.mxu0 0
    %2348 = vmatpush1.bf16.msra.mxu0 %v2254
    %2349 = vmatprep.subr.bf16.mxu0 0
    %2350 = vmatpush1.bf16.msra.mxu0 %v2251
    %2351 = vmatprep.subr.bf16.mxu0 0
    %2352 = vmatpush1.bf16.msra.mxu0 %v2248
    %2353 = vmatprep.subr.bf16.mxu0 0
    %2354 = vmatpush2.bf16.msra.mxu0 0
    %2355 = vmatprep.subr.bf16.mxu0 0
    %2356 = vmatpush2.bf16.msra.mxu0 0
    %2357 = vmatprep.subr.bf16.mxu0 0
    %2358 = vmatpush2.bf16.msra.mxu0 0
    %2359 = vmatprep.subr.bf16.mxu0 0
    %2360 = vmatpush2.bf16.msra.mxu0 0
    %2361 = vmatprep.subr.bf16.mxu0 0
    %2362 = vmatpush2.bf16.msra.mxu0 0
    %2363 = vmatprep.subr.bf16.mxu0 0
    %2364 = vmatpush2.bf16.msra.mxu0 0
    %2365 = vmatprep.subr.bf16.mxu0 0
    %2366 = vmatpush2.bf16.msra.mxu0 0
    %2367 = vmatprep.subr.bf16.mxu0 0
    %2368 = vmatpush2.bf16.msra.mxu0 0
    %2369 = vmatprep.mubr.bf16.mxu0 0
    %2370 = vmatmul.mubr.bf16.gmra.mxu0 %v2116
    %v2371 = vpop.f32.mrf.mxu0
    %v2372 = vadd.f32 %v2162, %v2371
    %v2373 = vpop.f32.mrf.mxu0
    %v2374 = vpop.f32.mrf.mxu0
    %v2375 = vadd.f32 %v2162, %v2374
    %v2376 = vpop.f32.mrf.mxu0
    %2377 = vdwg.mxu0
    %2379 = vrot.lane.b32.xlu0 %v2329, 96
    %v2380 = vpop.permute.xlu0 %2379
    %2382 = vrot.lane.b32.xlu0 %v2329, 64
    %v2383 = vpop.permute.xlu0 %2382
    %2385 = vrot.lane.b32.xlu0 %v2329, 32
    %v2386 = vpop.permute.xlu0 %2385
    %v2389 = vrot.slane %v2329, 5
    %v2390 = vrot.slane %v2333, 5
    %v2391 = vsel %vm621, %v2389, %v2390
    %2393 = vrot.lane.b32.xlu0 %v2391, 96
    %v2394 = vpop.permute.xlu0 %2393
    %2396 = vrot.lane.b32.xlu0 %v2391, 64
    %v2397 = vpop.permute.xlu0 %2396
    %2399 = vrot.lane.b32.xlu0 %v2391, 32
    %v2400 = vpop.permute.xlu0 %2399
    %2403 = vrot.lane.b32.xlu0 %v2331, 96
    %v2404 = vpop.permute.xlu0 %2403
    %2406 = vrot.lane.b32.xlu0 %v2331, 64
    %v2407 = vpop.permute.xlu0 %2406
    %2409 = vrot.lane.b32.xlu0 %v2331, 32
    %v2410 = vpop.permute.xlu0 %2409
    %v2413 = vrot.slane %v2331, 5
    %v2414 = vrot.slane %v2335, 5
    %v2415 = vsel %vm621, %v2413, %v2414
    %2417 = vrot.lane.b32.xlu0 %v2415, 96
    %v2418 = vpop.permute.xlu0 %2417
    %2420 = vrot.lane.b32.xlu0 %v2415, 64
    %v2421 = vpop.permute.xlu0 %2420
    %2423 = vrot.lane.b32.xlu0 %v2415, 32
    %v2424 = vpop.permute.xlu0 %2423
    %2427 = vrot.lane.b32.xlu0 %v2372, 96
    %v2428 = vpop.permute.xlu0 %2427
    %2430 = vrot.lane.b32.xlu0 %v2372, 64
    %v2431 = vpop.permute.xlu0 %2430
    %2433 = vrot.lane.b32.xlu0 %v2372, 32
    %v2434 = vpop.permute.xlu0 %2433
    %v2437 = vrot.slane %v2372, 5
    %v2438 = vrot.slane %v2375, 5
    %v2439 = vsel %vm621, %v2437, %v2438
    %2441 = vrot.lane.b32.xlu0 %v2439, 96
    %v2442 = vpop.permute.xlu0 %2441
    %2444 = vrot.lane.b32.xlu0 %v2439, 64
    %v2445 = vpop.permute.xlu0 %2444
    %2447 = vrot.lane.b32.xlu0 %v2439, 32
    %v2448 = vpop.permute.xlu0 %2447
    %v2450 = vpack.c.bf16 %v2329, %v2329
    %v2451 = vpack.c.bf16 %v2380, %v2380
    %v2452 = vpack.c.bf16 %v2383, %v2383
    %v2453 = vpack.c.bf16 %v2386, %v2386
    %v2454 = vpack.c.bf16 %v2391, %v2391
    %v2455 = vpack.c.bf16 %v2394, %v2394
    %v2456 = vpack.c.bf16 %v2397, %v2397
    %v2457 = vpack.c.bf16 %v2400, %v2400
    %v2458 = vpack.c.bf16 %v2331, %v2331
    %v2459 = vpack.c.bf16 %v2404, %v2404
    %v2460 = vpack.c.bf16 %v2407, %v2407
    %v2461 = vpack.c.bf16 %v2410, %v2410
    %v2462 = vpack.c.bf16 %v2415, %v2415
    %v2463 = vpack.c.bf16 %v2418, %v2418
    %v2464 = vpack.c.bf16 %v2421, %v2421
    %v2465 = vpack.c.bf16 %v2424, %v2424
    %v2467 = vsel %vm699, %v2450, 0
    %v2470 = vsel %vm699, %v2458, 0
    %2472 = vmatprep.subr.bf16.mxu0 0
    %2473 = vmatpush1.bf16.xpose.msra.mxu0 0
    %2474 = vmatprep.subr.bf16.mxu0 0
    %2475 = vmatpush1.bf16.xpose.msra.mxu0 0
    %2476 = vmatprep.subr.bf16.mxu0 0
    %2477 = vmatpush1.bf16.xpose.msra.mxu0 0
    %2478 = vmatprep.subr.bf16.mxu0 0
    %2479 = vmatpush1.bf16.xpose.msra.mxu0 0
    %2480 = vmatprep.subr.bf16.mxu0 0
    %2481 = vmatpush1.bf16.xpose.msra.mxu0 0
    %2482 = vmatprep.subr.bf16.mxu0 0
    %2483 = vmatpush1.bf16.xpose.msra.mxu0 0
    %2484 = vmatprep.subr.bf16.mxu0 0
    %2485 = vmatpush1.bf16.xpose.msra.mxu0 0
    %2486 = vmatprep.subr.bf16.mxu0 0
    %2487 = vmatpush1.bf16.xpose.msra.mxu0 %v2470
    %2488 = vmatprep.subr.bf16.mxu0 0
    %2489 = vmatpush2.bf16.xpose.msra.mxu0 0
    %2490 = vmatprep.subr.bf16.mxu0 0
    %2491 = vmatpush2.bf16.xpose.msra.mxu0 0
    %2492 = vmatprep.subr.bf16.mxu0 0
    %2493 = vmatpush2.bf16.xpose.msra.mxu0 0
    %2494 = vmatprep.subr.bf16.mxu0 0
    %2495 = vmatpush2.bf16.xpose.msra.mxu0 0
    %2496 = vmatprep.subr.bf16.mxu0 0
    %2497 = vmatpush2.bf16.xpose.msra.mxu0 0
    %2498 = vmatprep.subr.bf16.mxu0 0
    %2499 = vmatpush2.bf16.xpose.msra.mxu0 0
    %2500 = vmatprep.subr.bf16.mxu0 0
    %2501 = vmatpush2.bf16.xpose.msra.mxu0 0
    %2502 = vmatprep.subr.bf16.mxu0 0
    %2503 = vmatpush2.bf16.xpose.msra.mxu0 0
    %2504 = vmatprep.mubr.bf16.mxu0 0
    %2505 = vmatmul.mubr.bf16.gmra.mxu0 %v2467
    %v2506 = vpop.f32.mrf.mxu0
    %v2507 = vadd.f32 0.0, %v2506
    %v2508 = vpop.f32.mrf.mxu0
    %v2509 = vpop.f32.mrf.mxu0
    %v2510 = vpop.f32.mrf.mxu0
    %2511 = vdwg.mxu0
    %v2513 = vsel %vm699, %v2451, 0
    %v2516 = vsel %vm699, %v2459, 0
    %2518 = vmatprep.subr.bf16.mxu0 0
    %2519 = vmatpush1.bf16.xpose.msra.mxu0 0
    %2520 = vmatprep.subr.bf16.mxu0 0
    %2521 = vmatpush1.bf16.xpose.msra.mxu0 0
    %2522 = vmatprep.subr.bf16.mxu0 0
    %2523 = vmatpush1.bf16.xpose.msra.mxu0 0
    %2524 = vmatprep.subr.bf16.mxu0 0
    %2525 = vmatpush1.bf16.xpose.msra.mxu0 0
    %2526 = vmatprep.subr.bf16.mxu0 0
    %2527 = vmatpush1.bf16.xpose.msra.mxu0 0
    %2528 = vmatprep.subr.bf16.mxu0 0
    %2529 = vmatpush1.bf16.xpose.msra.mxu0 0
    %2530 = vmatprep.subr.bf16.mxu0 0
    %2531 = vmatpush1.bf16.xpose.msra.mxu0 0
    %2532 = vmatprep.subr.bf16.mxu0 0
    %2533 = vmatpush1.bf16.xpose.msra.mxu0 %v2516
    %2534 = vmatprep.subr.bf16.mxu0 0
    %2535 = vmatpush2.bf16.xpose.msra.mxu0 0
    %2536 = vmatprep.subr.bf16.mxu0 0
    %2537 = vmatpush2.bf16.xpose.msra.mxu0 0
    %2538 = vmatprep.subr.bf16.mxu0 0
    %2539 = vmatpush2.bf16.xpose.msra.mxu0 0
    %2540 = vmatprep.subr.bf16.mxu0 0
    %2541 = vmatpush2.bf16.xpose.msra.mxu0 0
    %2542 = vmatprep.subr.bf16.mxu0 0
    %2543 = vmatpush2.bf16.xpose.msra.mxu0 0
    %2544 = vmatprep.subr.bf16.mxu0 0
    %2545 = vmatpush2.bf16.xpose.msra.mxu0 0
    %2546 = vmatprep.subr.bf16.mxu0 0
    %2547 = vmatpush2.bf16.xpose.msra.mxu0 0
    %2548 = vmatprep.subr.bf16.mxu0 0
    %2549 = vmatpush2.bf16.xpose.msra.mxu0 0
    %2550 = vmatprep.mubr.bf16.mxu0 0
    %2551 = vmatmul.mubr.bf16.gmra.mxu0 %v2513
    %v2552 = vpop.f32.mrf.mxu0
    %v2553 = vadd.f32 0.0, %v2552
    %v2554 = vpop.f32.mrf.mxu0
    %v2555 = vpop.f32.mrf.mxu0
    %v2556 = vpop.f32.mrf.mxu0
    %2557 = vdwg.mxu0
    %v2559 = vsel %vm699, %v2452, 0
    %v2562 = vsel %vm699, %v2460, 0
    %2564 = vmatprep.subr.bf16.mxu0 0
    %2565 = vmatpush1.bf16.xpose.msra.mxu0 0
    %2566 = vmatprep.subr.bf16.mxu0 0
    %2567 = vmatpush1.bf16.xpose.msra.mxu0 0
    %2568 = vmatprep.subr.bf16.mxu0 0
    %2569 = vmatpush1.bf16.xpose.msra.mxu0 0
    %2570 = vmatprep.subr.bf16.mxu0 0
    %2571 = vmatpush1.bf16.xpose.msra.mxu0 0
    %2572 = vmatprep.subr.bf16.mxu0 0
    %2573 = vmatpush1.bf16.xpose.msra.mxu0 0
    %2574 = vmatprep.subr.bf16.mxu0 0
    %2575 = vmatpush1.bf16.xpose.msra.mxu0 0
    %2576 = vmatprep.subr.bf16.mxu0 0
    %2577 = vmatpush1.bf16.xpose.msra.mxu0 0
    %2578 = vmatprep.subr.bf16.mxu0 0
    %2579 = vmatpush1.bf16.xpose.msra.mxu0 %v2562
    %2580 = vmatprep.subr.bf16.mxu0 0
    %2581 = vmatpush2.bf16.xpose.msra.mxu0 0
    %2582 = vmatprep.subr.bf16.mxu0 0
    %2583 = vmatpush2.bf16.xpose.msra.mxu0 0
    %2584 = vmatprep.subr.bf16.mxu0 0
    %2585 = vmatpush2.bf16.xpose.msra.mxu0 0
    %2586 = vmatprep.subr.bf16.mxu0 0
    %2587 = vmatpush2.bf16.xpose.msra.mxu0 0
    %2588 = vmatprep.subr.bf16.mxu0 0
    %2589 = vmatpush2.bf16.xpose.msra.mxu0 0
    %2590 = vmatprep.subr.bf16.mxu0 0
    %2591 = vmatpush2.bf16.xpose.msra.mxu0 0
    %2592 = vmatprep.subr.bf16.mxu0 0
    %2593 = vmatpush2.bf16.xpose.msra.mxu0 0
    %2594 = vmatprep.subr.bf16.mxu0 0
    %2595 = vmatpush2.bf16.xpose.msra.mxu0 0
    %2596 = vmatprep.mubr.bf16.mxu0 0
    %2597 = vmatmul.mubr.bf16.gmra.mxu0 %v2559
    %v2598 = vpop.f32.mrf.mxu0
    %v2599 = vadd.f32 0.0, %v2598
    %v2600 = vpop.f32.mrf.mxu0
    %v2601 = vpop.f32.mrf.mxu0
    %v2602 = vpop.f32.mrf.mxu0
    %2603 = vdwg.mxu0
    %v2605 = vsel %vm699, %v2453, 0
    %v2608 = vsel %vm699, %v2461, 0
    %2610 = vmatprep.subr.bf16.mxu0 0
    %2611 = vmatpush1.bf16.xpose.msra.mxu0 0
    %2612 = vmatprep.subr.bf16.mxu0 0
    %2613 = vmatpush1.bf16.xpose.msra.mxu0 0
    %2614 = vmatprep.subr.bf16.mxu0 0
    %2615 = vmatpush1.bf16.xpose.msra.mxu0 0
    %2616 = vmatprep.subr.bf16.mxu0 0
    %2617 = vmatpush1.bf16.xpose.msra.mxu0 0
    %2618 = vmatprep.subr.bf16.mxu0 0
    %2619 = vmatpush1.bf16.xpose.msra.mxu0 0
    %2620 = vmatprep.subr.bf16.mxu0 0
    %2621 = vmatpush1.bf16.xpose.msra.mxu0 0
    %2622 = vmatprep.subr.bf16.mxu0 0
    %2623 = vmatpush1.bf16.xpose.msra.mxu0 0
    %2624 = vmatprep.subr.bf16.mxu0 0
    %2625 = vmatpush1.bf16.xpose.msra.mxu0 %v2608
    %2626 = vmatprep.subr.bf16.mxu0 0
    %2627 = vmatpush2.bf16.xpose.msra.mxu0 0
    %2628 = vmatprep.subr.bf16.mxu0 0
    %2629 = vmatpush2.bf16.xpose.msra.mxu0 0
    %2630 = vmatprep.subr.bf16.mxu0 0
    %2631 = vmatpush2.bf16.xpose.msra.mxu0 0
    %2632 = vmatprep.subr.bf16.mxu0 0
    %2633 = vmatpush2.bf16.xpose.msra.mxu0 0
    %2634 = vmatprep.subr.bf16.mxu0 0
    %2635 = vmatpush2.bf16.xpose.msra.mxu0 0
    %2636 = vmatprep.subr.bf16.mxu0 0
    %2637 = vmatpush2.bf16.xpose.msra.mxu0 0
    %2638 = vmatprep.subr.bf16.mxu0 0
    %2639 = vmatpush2.bf16.xpose.msra.mxu0 0
    %2640 = vmatprep.subr.bf16.mxu0 0
    %2641 = vmatpush2.bf16.xpose.msra.mxu0 0
    %2642 = vmatprep.mubr.bf16.mxu0 0
    %2643 = vmatmul.mubr.bf16.gmra.mxu0 %v2605
    %v2644 = vpop.f32.mrf.mxu0
    %v2645 = vadd.f32 0.0, %v2644
    %v2646 = vpop.f32.mrf.mxu0
    %v2647 = vpop.f32.mrf.mxu0
    %v2648 = vpop.f32.mrf.mxu0
    %2649 = vdwg.mxu0
    %v2651 = vsel %vm699, %v2454, 0
    %v2654 = vsel %vm699, %v2462, 0
    %2656 = vmatprep.subr.bf16.mxu0 0
    %2657 = vmatpush1.bf16.xpose.msra.mxu0 0
    %2658 = vmatprep.subr.bf16.mxu0 0
    %2659 = vmatpush1.bf16.xpose.msra.mxu0 0
    %2660 = vmatprep.subr.bf16.mxu0 0
    %2661 = vmatpush1.bf16.xpose.msra.mxu0 0
    %2662 = vmatprep.subr.bf16.mxu0 0
    %2663 = vmatpush1.bf16.xpose.msra.mxu0 0
    %2664 = vmatprep.subr.bf16.mxu0 0
    %2665 = vmatpush1.bf16.xpose.msra.mxu0 0
    %2666 = vmatprep.subr.bf16.mxu0 0
    %2667 = vmatpush1.bf16.xpose.msra.mxu0 0
    %2668 = vmatprep.subr.bf16.mxu0 0
    %2669 = vmatpush1.bf16.xpose.msra.mxu0 0
    %2670 = vmatprep.subr.bf16.mxu0 0
    %2671 = vmatpush1.bf16.xpose.msra.mxu0 %v2654
    %2672 = vmatprep.subr.bf16.mxu0 0
    %2673 = vmatpush2.bf16.xpose.msra.mxu0 0
    %2674 = vmatprep.subr.bf16.mxu0 0
    %2675 = vmatpush2.bf16.xpose.msra.mxu0 0
    %2676 = vmatprep.subr.bf16.mxu0 0
    %2677 = vmatpush2.bf16.xpose.msra.mxu0 0
    %2678 = vmatprep.subr.bf16.mxu0 0
    %2679 = vmatpush2.bf16.xpose.msra.mxu0 0
    %2680 = vmatprep.subr.bf16.mxu0 0
    %2681 = vmatpush2.bf16.xpose.msra.mxu0 0
    %2682 = vmatprep.subr.bf16.mxu0 0
    %2683 = vmatpush2.bf16.xpose.msra.mxu0 0
    %2684 = vmatprep.subr.bf16.mxu0 0
    %2685 = vmatpush2.bf16.xpose.msra.mxu0 0
    %2686 = vmatprep.subr.bf16.mxu0 0
    %2687 = vmatpush2.bf16.xpose.msra.mxu0 0
    %2688 = vmatprep.mubr.bf16.mxu0 0
    %2689 = vmatmul.mubr.bf16.gmra.mxu0 %v2651
    %v2690 = vpop.f32.mrf.mxu0
    %v2691 = vadd.f32 0.0, %v2690
    %v2692 = vpop.f32.mrf.mxu0
    %v2693 = vpop.f32.mrf.mxu0
    %v2694 = vpop.f32.mrf.mxu0
    %2695 = vdwg.mxu0
    %v2697 = vsel %vm699, %v2455, 0
    %v2700 = vsel %vm699, %v2463, 0
    %2702 = vmatprep.subr.bf16.mxu0 0
    %2703 = vmatpush1.bf16.xpose.msra.mxu0 0
    %2704 = vmatprep.subr.bf16.mxu0 0
    %2705 = vmatpush1.bf16.xpose.msra.mxu0 0
    %2706 = vmatprep.subr.bf16.mxu0 0
    %2707 = vmatpush1.bf16.xpose.msra.mxu0 0
    %2708 = vmatprep.subr.bf16.mxu0 0
    %2709 = vmatpush1.bf16.xpose.msra.mxu0 0
    %2710 = vmatprep.subr.bf16.mxu0 0
    %2711 = vmatpush1.bf16.xpose.msra.mxu0 0
    %2712 = vmatprep.subr.bf16.mxu0 0
    %2713 = vmatpush1.bf16.xpose.msra.mxu0 0
    %2714 = vmatprep.subr.bf16.mxu0 0
    %2715 = vmatpush1.bf16.xpose.msra.mxu0 0
    %2716 = vmatprep.subr.bf16.mxu0 0
    %2717 = vmatpush1.bf16.xpose.msra.mxu0 %v2700
    %2718 = vmatprep.subr.bf16.mxu0 0
    %2719 = vmatpush2.bf16.xpose.msra.mxu0 0
    %2720 = vmatprep.subr.bf16.mxu0 0
    %2721 = vmatpush2.bf16.xpose.msra.mxu0 0
    %2722 = vmatprep.subr.bf16.mxu0 0
    %2723 = vmatpush2.bf16.xpose.msra.mxu0 0
    %2724 = vmatprep.subr.bf16.mxu0 0
    %2725 = vmatpush2.bf16.xpose.msra.mxu0 0
    %2726 = vmatprep.subr.bf16.mxu0 0
    %2727 = vmatpush2.bf16.xpose.msra.mxu0 0
    %2728 = vmatprep.subr.bf16.mxu0 0
    %2729 = vmatpush2.bf16.xpose.msra.mxu0 0
    %2730 = vmatprep.subr.bf16.mxu0 0
    %2731 = vmatpush2.bf16.xpose.msra.mxu0 0
    %2732 = vmatprep.subr.bf16.mxu0 0
    %2733 = vmatpush2.bf16.xpose.msra.mxu0 0
    %2734 = vmatprep.mubr.bf16.mxu0 0
    %2735 = vmatmul.mubr.bf16.gmra.mxu0 %v2697
    %v2736 = vpop.f32.mrf.mxu0
    %v2737 = vadd.f32 0.0, %v2736
    %v2738 = vpop.f32.mrf.mxu0
    %v2739 = vpop.f32.mrf.mxu0
    %v2740 = vpop.f32.mrf.mxu0
    %2741 = vdwg.mxu0
    %v2743 = vsel %vm699, %v2456, 0
    %v2746 = vsel %vm699, %v2464, 0
    %2748 = vmatprep.subr.bf16.mxu0 0
    %2749 = vmatpush1.bf16.xpose.msra.mxu0 0
    %2750 = vmatprep.subr.bf16.mxu0 0
    %2751 = vmatpush1.bf16.xpose.msra.mxu0 0
    %2752 = vmatprep.subr.bf16.mxu0 0
    %2753 = vmatpush1.bf16.xpose.msra.mxu0 0
    %2754 = vmatprep.subr.bf16.mxu0 0
    %2755 = vmatpush1.bf16.xpose.msra.mxu0 0
    %2756 = vmatprep.subr.bf16.mxu0 0
    %2757 = vmatpush1.bf16.xpose.msra.mxu0 0
    %2758 = vmatprep.subr.bf16.mxu0 0
    %2759 = vmatpush1.bf16.xpose.msra.mxu0 0
    %2760 = vmatprep.subr.bf16.mxu0 0
    %2761 = vmatpush1.bf16.xpose.msra.mxu0 0
    %2762 = vmatprep.subr.bf16.mxu0 0
    %2763 = vmatpush1.bf16.xpose.msra.mxu0 %v2746
    %2764 = vmatprep.subr.bf16.mxu0 0
    %2765 = vmatpush2.bf16.xpose.msra.mxu0 0
    %2766 = vmatprep.subr.bf16.mxu0 0
    %2767 = vmatpush2.bf16.xpose.msra.mxu0 0
    %2768 = vmatprep.subr.bf16.mxu0 0
    %2769 = vmatpush2.bf16.xpose.msra.mxu0 0
    %2770 = vmatprep.subr.bf16.mxu0 0
    %2771 = vmatpush2.bf16.xpose.msra.mxu0 0
    %2772 = vmatprep.subr.bf16.mxu0 0
    %2773 = vmatpush2.bf16.xpose.msra.mxu0 0
    %2774 = vmatprep.subr.bf16.mxu0 0
    %2775 = vmatpush2.bf16.xpose.msra.mxu0 0
    %2776 = vmatprep.subr.bf16.mxu0 0
    %2777 = vmatpush2.bf16.xpose.msra.mxu0 0
    %2778 = vmatprep.subr.bf16.mxu0 0
    %2779 = vmatpush2.bf16.xpose.msra.mxu0 0
    %2780 = vmatprep.mubr.bf16.mxu0 0
    %2781 = vmatmul.mubr.bf16.gmra.mxu0 %v2743
    %v2782 = vpop.f32.mrf.mxu0
    %v2783 = vadd.f32 0.0, %v2782
    %v2784 = vpop.f32.mrf.mxu0
    %v2785 = vpop.f32.mrf.mxu0
    %v2786 = vpop.f32.mrf.mxu0
    %2787 = vdwg.mxu0
    %v2789 = vsel %vm699, %v2457, 0
    %v2792 = vsel %vm699, %v2465, 0
    %2794 = vmatprep.subr.bf16.mxu0 0
    %2795 = vmatpush1.bf16.xpose.msra.mxu0 0
    %2796 = vmatprep.subr.bf16.mxu0 0
    %2797 = vmatpush1.bf16.xpose.msra.mxu0 0
    %2798 = vmatprep.subr.bf16.mxu0 0
    %2799 = vmatpush1.bf16.xpose.msra.mxu0 0
    %2800 = vmatprep.subr.bf16.mxu0 0
    %2801 = vmatpush1.bf16.xpose.msra.mxu0 0
    %2802 = vmatprep.subr.bf16.mxu0 0
    %2803 = vmatpush1.bf16.xpose.msra.mxu0 0
    %2804 = vmatprep.subr.bf16.mxu0 0
    %2805 = vmatpush1.bf16.xpose.msra.mxu0 0
    %2806 = vmatprep.subr.bf16.mxu0 0
    %2807 = vmatpush1.bf16.xpose.msra.mxu0 0
    %2808 = vmatprep.subr.bf16.mxu0 0
    %2809 = vmatpush1.bf16.xpose.msra.mxu0 %v2792
    %2810 = vmatprep.subr.bf16.mxu0 0
    %2811 = vmatpush2.bf16.xpose.msra.mxu0 0
    %2812 = vmatprep.subr.bf16.mxu0 0
    %2813 = vmatpush2.bf16.xpose.msra.mxu0 0
    %2814 = vmatprep.subr.bf16.mxu0 0
    %2815 = vmatpush2.bf16.xpose.msra.mxu0 0
    %2816 = vmatprep.subr.bf16.mxu0 0
    %2817 = vmatpush2.bf16.xpose.msra.mxu0 0
    %2818 = vmatprep.subr.bf16.mxu0 0
    %2819 = vmatpush2.bf16.xpose.msra.mxu0 0
    %2820 = vmatprep.subr.bf16.mxu0 0
    %2821 = vmatpush2.bf16.xpose.msra.mxu0 0
    %2822 = vmatprep.subr.bf16.mxu0 0
    %2823 = vmatpush2.bf16.xpose.msra.mxu0 0
    %2824 = vmatprep.subr.bf16.mxu0 0
    %2825 = vmatpush2.bf16.xpose.msra.mxu0 0
    %2826 = vmatprep.mubr.bf16.mxu0 0
    %2827 = vmatmul.mubr.bf16.gmra.mxu0 %v2789
    %v2828 = vpop.f32.mrf.mxu0
    %v2829 = vadd.f32 0.0, %v2828
    %v2830 = vpop.f32.mrf.mxu0
    %v2831 = vpop.f32.mrf.mxu0
    %v2832 = vpop.f32.mrf.mxu0
    %2833 = vdwg.mxu0
    %v2834 = vsel %vm1068, %v2507, -inf
    %2835 = vmax.xlane.f32.xlu0 %v2834
    %v2836 = vpop.xlane.xlu0 %2835
    %v2837 = vsel %vm1068, %v2553, -inf
    %2838 = vmax.xlane.f32.xlu0 %v2837
    %v2839 = vpop.xlane.xlu0 %2838
    %v2840 = vsel %vm1068, %v2599, -inf
    %2841 = vmax.xlane.f32.xlu0 %v2840
    %v2842 = vpop.xlane.xlu0 %2841
    %v2843 = vsel %vm1068, %v2645, -inf
    %2844 = vmax.xlane.f32.xlu0 %v2843
    %v2845 = vpop.xlane.xlu0 %2844
    %v2846 = vsel %vm1068, %v2691, -inf
    %2847 = vmax.xlane.f32.xlu0 %v2846
    %v2848 = vpop.xlane.xlu0 %2847
    %v2849 = vsel %vm1068, %v2737, -inf
    %2850 = vmax.xlane.f32.xlu0 %v2849
    %v2851 = vpop.xlane.xlu0 %2850
    %v2852 = vsel %vm1068, %v2783, -inf
    %2853 = vmax.xlane.f32.xlu0 %v2852
    %v2854 = vpop.xlane.xlu0 %2853
    %v2855 = vsel %vm1068, %v2829, -inf
    %2856 = vmax.xlane.f32.xlu0 %v2855
    %v2857 = vpop.xlane.xlu0 %2856
    %v2858 = vsub.f32 %v2507, %v2836
    %v2859 = vsub.f32 %v2553, %v2839
    %v2860 = vsub.f32 %v2599, %v2842
    %v2861 = vsub.f32 %v2645, %v2845
    %v2862 = vsub.f32 %v2691, %v2848
    %v2863 = vsub.f32 %v2737, %v2851
    %v2864 = vsub.f32 %v2783, %v2854
    %v2865 = vsub.f32 %v2829, %v2857
    %v2866 = vmul.f32 %v2858, 1.442695
    %v2867 = vpow.pop %v2866
    %v2868 = vmul.f32 %v2859, 1.442695
    %v2869 = vpow.pop %v2868
    %v2870 = vmul.f32 %v2860, 1.442695
    %v2871 = vpow.pop %v2870
    %v2872 = vmul.f32 %v2861, 1.442695
    %v2873 = vpow.pop %v2872
    %v2874 = vmul.f32 %v2862, 1.442695
    %v2875 = vpow.pop %v2874
    %v2876 = vmul.f32 %v2863, 1.442695
    %v2877 = vpow.pop %v2876
    %v2878 = vmul.f32 %v2864, 1.442695
    %v2879 = vpow.pop %v2878
    %v2880 = vmul.f32 %v2865, 1.442695
    %v2881 = vpow.pop %v2880
    %v2882 = vsel %vm1068, %v2867, 0.0
    %2883 = vadd.xlane.f32.xlu0 %v2882
    %v2884 = vpop.xlane.xlu0 %2883
    %v2885 = vsel %vm1068, %v2869, 0.0
    %2886 = vadd.xlane.f32.xlu0 %v2885
    %v2887 = vpop.xlane.xlu0 %2886
    %v2888 = vsel %vm1068, %v2871, 0.0
    %2889 = vadd.xlane.f32.xlu0 %v2888
    %v2890 = vpop.xlane.xlu0 %2889
    %v2891 = vsel %vm1068, %v2873, 0.0
    %2892 = vadd.xlane.f32.xlu0 %v2891
    %v2893 = vpop.xlane.xlu0 %2892
    %v2894 = vsel %vm1068, %v2875, 0.0
    %2895 = vadd.xlane.f32.xlu0 %v2894
    %v2896 = vpop.xlane.xlu0 %2895
    %v2897 = vsel %vm1068, %v2877, 0.0
    %2898 = vadd.xlane.f32.xlu0 %v2897
    %v2899 = vpop.xlane.xlu0 %2898
    %v2900 = vsel %vm1068, %v2879, 0.0
    %2901 = vadd.xlane.f32.xlu0 %v2900
    %v2902 = vpop.xlane.xlu0 %2901
    %v2903 = vsel %vm1068, %v2881, 0.0
    %2904 = vadd.xlane.f32.xlu0 %v2903
    %v2905 = vpop.xlane.xlu0 %2904
    %v2906 = vrcp.pop %v2884
    %v2907 = vmul.f32 %v2867, %v2906
    %v2908 = vrcp.pop %v2887
    %v2909 = vmul.f32 %v2869, %v2908
    %v2910 = vrcp.pop %v2890
    %v2911 = vmul.f32 %v2871, %v2910
    %v2912 = vrcp.pop %v2893
    %v2913 = vmul.f32 %v2873, %v2912
    %v2914 = vrcp.pop %v2896
    %v2915 = vmul.f32 %v2875, %v2914
    %v2916 = vrcp.pop %v2899
    %v2917 = vmul.f32 %v2877, %v2916
    %v2918 = vrcp.pop %v2902
    %v2919 = vmul.f32 %v2879, %v2918
    %v2920 = vrcp.pop %v2905
    %v2921 = vmul.f32 %v2881, %v2920
    %v2922 = vpack.c.bf16 %v2907, %v2907
    %v2923 = vpack.c.bf16 %v2909, %v2909
    %v2924 = vpack.c.bf16 %v2911, %v2911
    %v2925 = vpack.c.bf16 %v2913, %v2913
    %v2926 = vpack.c.bf16 %v2915, %v2915
    %v2927 = vpack.c.bf16 %v2917, %v2917
    %v2928 = vpack.c.bf16 %v2919, %v2919
    %v2929 = vpack.c.bf16 %v2921, %v2921
    %v2930 = vpack.c.bf16 %v2372, %v2372
    %v2931 = vpack.c.bf16 %v2428, %v2428
    %v2932 = vpack.c.bf16 %v2431, %v2431
    %v2933 = vpack.c.bf16 %v2434, %v2434
    %v2934 = vpack.c.bf16 %v2439, %v2439
    %v2935 = vpack.c.bf16 %v2442, %v2442
    %v2936 = vpack.c.bf16 %v2445, %v2445
    %v2937 = vpack.c.bf16 %v2448, %v2448
    %v2939 = vsel %vm1173, %v2922, 0
    %v2942 = vand.u32 %v2930, %v1178
    %2944 = vmatprep.subr.bf16.mxu0 0
    %2945 = vmatpush1.bf16.msra.mxu0 0
    %2946 = vmatprep.subr.bf16.mxu0 0
    %2947 = vmatpush1.bf16.msra.mxu0 0
    %2948 = vmatprep.subr.bf16.mxu0 0
    %2949 = vmatpush1.bf16.msra.mxu0 0
    %2950 = vmatprep.subr.bf16.mxu0 0
    %2951 = vmatpush1.bf16.msra.mxu0 0
    %2952 = vmatprep.subr.bf16.mxu0 0
    %2953 = vmatpush1.bf16.msra.mxu0 0
    %2954 = vmatprep.subr.bf16.mxu0 0
    %2955 = vmatpush1.bf16.msra.mxu0 0
    %2956 = vmatprep.subr.bf16.mxu0 0
    %2957 = vmatpush1.bf16.msra.mxu0 0
    %2958 = vmatprep.subr.bf16.mxu0 0
    %2959 = vmatpush1.bf16.msra.mxu0 %v2942
    %2960 = vmatprep.subr.bf16.mxu0 0
    %2961 = vmatpush2.bf16.msra.mxu0 0
    %2962 = vmatprep.subr.bf16.mxu0 0
    %2963 = vmatpush2.bf16.msra.mxu0 0
    %2964 = vmatprep.subr.bf16.mxu0 0
    %2965 = vmatpush2.bf16.msra.mxu0 0
    %2966 = vmatprep.subr.bf16.mxu0 0
    %2967 = vmatpush2.bf16.msra.mxu0 0
    %2968 = vmatprep.subr.bf16.mxu0 0
    %2969 = vmatpush2.bf16.msra.mxu0 0
    %2970 = vmatprep.subr.bf16.mxu0 0
    %2971 = vmatpush2.bf16.msra.mxu0 0
    %2972 = vmatprep.subr.bf16.mxu0 0
    %2973 = vmatpush2.bf16.msra.mxu0 0
    %2974 = vmatprep.subr.bf16.mxu0 0
    %2975 = vmatpush2.bf16.msra.mxu0 0
    %2976 = vmatprep.mubr.bf16.mxu0 0
    %2977 = vmatmul.mubr.bf16.gmra.mxu0 %v2939
    %v2978 = vpop.f32.mrf.mxu0
    %v2979 = vadd.f32 0.0, %v2978
    %v2980 = vpop.f32.mrf.mxu0
    %v2981 = vpop.f32.mrf.mxu0
    %v2982 = vpop.f32.mrf.mxu0
    %2983 = vdwg.mxu0
    %v2985 = vsel %vm1173, %v2923, 0
    %v2988 = vand.u32 %v2931, %v1178
    %2990 = vmatprep.subr.bf16.mxu0 0
    %2991 = vmatpush1.bf16.msra.mxu0 0
    %2992 = vmatprep.subr.bf16.mxu0 0
    %2993 = vmatpush1.bf16.msra.mxu0 0
    %2994 = vmatprep.subr.bf16.mxu0 0
    %2995 = vmatpush1.bf16.msra.mxu0 0
    %2996 = vmatprep.subr.bf16.mxu0 0
    %2997 = vmatpush1.bf16.msra.mxu0 0
    %2998 = vmatprep.subr.bf16.mxu0 0
    %2999 = vmatpush1.bf16.msra.mxu0 0
    %3000 = vmatprep.subr.bf16.mxu0 0
    %3001 = vmatpush1.bf16.msra.mxu0 0
    %3002 = vmatprep.subr.bf16.mxu0 0
    %3003 = vmatpush1.bf16.msra.mxu0 0
    %3004 = vmatprep.subr.bf16.mxu0 0
    %3005 = vmatpush1.bf16.msra.mxu0 %v2988
    %3006 = vmatprep.subr.bf16.mxu0 0
    %3007 = vmatpush2.bf16.msra.mxu0 0
    %3008 = vmatprep.subr.bf16.mxu0 0
    %3009 = vmatpush2.bf16.msra.mxu0 0
    %3010 = vmatprep.subr.bf16.mxu0 0
    %3011 = vmatpush2.bf16.msra.mxu0 0
    %3012 = vmatprep.subr.bf16.mxu0 0
    %3013 = vmatpush2.bf16.msra.mxu0 0
    %3014 = vmatprep.subr.bf16.mxu0 0
    %3015 = vmatpush2.bf16.msra.mxu0 0
    %3016 = vmatprep.subr.bf16.mxu0 0
    %3017 = vmatpush2.bf16.msra.mxu0 0
    %3018 = vmatprep.subr.bf16.mxu0 0
    %3019 = vmatpush2.bf16.msra.mxu0 0
    %3020 = vmatprep.subr.bf16.mxu0 0
    %3021 = vmatpush2.bf16.msra.mxu0 0
    %3022 = vmatprep.mubr.bf16.mxu0 0
    %3023 = vmatmul.mubr.bf16.gmra.mxu0 %v2985
    %v3024 = vpop.f32.mrf.mxu0
    %v3025 = vadd.f32 0.0, %v3024
    %v3026 = vpop.f32.mrf.mxu0
    %v3027 = vpop.f32.mrf.mxu0
    %v3028 = vpop.f32.mrf.mxu0
    %3029 = vdwg.mxu0
    %v3031 = vsel %vm1173, %v2924, 0
    %v3034 = vand.u32 %v2932, %v1178
    %3036 = vmatprep.subr.bf16.mxu0 0
    %3037 = vmatpush1.bf16.msra.mxu0 0
    %3038 = vmatprep.subr.bf16.mxu0 0
    %3039 = vmatpush1.bf16.msra.mxu0 0
    %3040 = vmatprep.subr.bf16.mxu0 0
    %3041 = vmatpush1.bf16.msra.mxu0 0
    %3042 = vmatprep.subr.bf16.mxu0 0
    %3043 = vmatpush1.bf16.msra.mxu0 0
    %3044 = vmatprep.subr.bf16.mxu0 0
    %3045 = vmatpush1.bf16.msra.mxu0 0
    %3046 = vmatprep.subr.bf16.mxu0 0
    %3047 = vmatpush1.bf16.msra.mxu0 0
    %3048 = vmatprep.subr.bf16.mxu0 0
    %3049 = vmatpush1.bf16.msra.mxu0 0
    %3050 = vmatprep.subr.bf16.mxu0 0
    %3051 = vmatpush1.bf16.msra.mxu0 %v3034
    %3052 = vmatprep.subr.bf16.mxu0 0
    %3053 = vmatpush2.bf16.msra.mxu0 0
    %3054 = vmatprep.subr.bf16.mxu0 0
    %3055 = vmatpush2.bf16.msra.mxu0 0
    %3056 = vmatprep.subr.bf16.mxu0 0
    %3057 = vmatpush2.bf16.msra.mxu0 0
    %3058 = vmatprep.subr.bf16.mxu0 0
    %3059 = vmatpush2.bf16.msra.mxu0 0
    %3060 = vmatprep.subr.bf16.mxu0 0
    %3061 = vmatpush2.bf16.msra.mxu0 0
    %3062 = vmatprep.subr.bf16.mxu0 0
    %3063 = vmatpush2.bf16.msra.mxu0 0
    %3064 = vmatprep.subr.bf16.mxu0 0
    %3065 = vmatpush2.bf16.msra.mxu0 0
    %3066 = vmatprep.subr.bf16.mxu0 0
    %3067 = vmatpush2.bf16.msra.mxu0 0
    %3068 = vmatprep.mubr.bf16.mxu0 0
    %3069 = vmatmul.mubr.bf16.gmra.mxu0 %v3031
    %v3070 = vpop.f32.mrf.mxu0
    %v3071 = vadd.f32 0.0, %v3070
    %v3072 = vpop.f32.mrf.mxu0
    %v3073 = vpop.f32.mrf.mxu0
    %v3074 = vpop.f32.mrf.mxu0
    %3075 = vdwg.mxu0
    %v3077 = vsel %vm1173, %v2925, 0
    %v3080 = vand.u32 %v2933, %v1178
    %3082 = vmatprep.subr.bf16.mxu0 0
    %3083 = vmatpush1.bf16.msra.mxu0 0
    %3084 = vmatprep.subr.bf16.mxu0 0
    %3085 = vmatpush1.bf16.msra.mxu0 0
    %3086 = vmatprep.subr.bf16.mxu0 0
    %3087 = vmatpush1.bf16.msra.mxu0 0
    %3088 = vmatprep.subr.bf16.mxu0 0
    %3089 = vmatpush1.bf16.msra.mxu0 0
    %3090 = vmatprep.subr.bf16.mxu0 0
    %3091 = vmatpush1.bf16.msra.mxu0 0
    %3092 = vmatprep.subr.bf16.mxu0 0
    %3093 = vmatpush1.bf16.msra.mxu0 0
    %3094 = vmatprep.subr.bf16.mxu0 0
    %3095 = vmatpush1.bf16.msra.mxu0 0
    %3096 = vmatprep.subr.bf16.mxu0 0
    %3097 = vmatpush1.bf16.msra.mxu0 %v3080
    %3098 = vmatprep.subr.bf16.mxu0 0
    %3099 = vmatpush2.bf16.msra.mxu0 0
    %3100 = vmatprep.subr.bf16.mxu0 0
    %3101 = vmatpush2.bf16.msra.mxu0 0
    %3102 = vmatprep.subr.bf16.mxu0 0
    %3103 = vmatpush2.bf16.msra.mxu0 0
    %3104 = vmatprep.subr.bf16.mxu0 0
    %3105 = vmatpush2.bf16.msra.mxu0 0
    %3106 = vmatprep.subr.bf16.mxu0 0
    %3107 = vmatpush2.bf16.msra.mxu0 0
    %3108 = vmatprep.subr.bf16.mxu0 0
    %3109 = vmatpush2.bf16.msra.mxu0 0
    %3110 = vmatprep.subr.bf16.mxu0 0
    %3111 = vmatpush2.bf16.msra.mxu0 0
    %3112 = vmatprep.subr.bf16.mxu0 0
    %3113 = vmatpush2.bf16.msra.mxu0 0
    %3114 = vmatprep.mubr.bf16.mxu0 0
    %3115 = vmatmul.mubr.bf16.gmra.mxu0 %v3077
    %v3116 = vpop.f32.mrf.mxu0
    %v3117 = vadd.f32 0.0, %v3116
    %v3118 = vpop.f32.mrf.mxu0
    %v3119 = vpop.f32.mrf.mxu0
    %v3120 = vpop.f32.mrf.mxu0
    %3121 = vdwg.mxu0
    %v3123 = vsel %vm1173, %v2926, 0
    %v3126 = vand.u32 %v2934, %v1178
    %3128 = vmatprep.subr.bf16.mxu0 0
    %3129 = vmatpush1.bf16.msra.mxu0 0
    %3130 = vmatprep.subr.bf16.mxu0 0
    %3131 = vmatpush1.bf16.msra.mxu0 0
    %3132 = vmatprep.subr.bf16.mxu0 0
    %3133 = vmatpush1.bf16.msra.mxu0 0
    %3134 = vmatprep.subr.bf16.mxu0 0
    %3135 = vmatpush1.bf16.msra.mxu0 0
    %3136 = vmatprep.subr.bf16.mxu0 0
    %3137 = vmatpush1.bf16.msra.mxu0 0
    %3138 = vmatprep.subr.bf16.mxu0 0
    %3139 = vmatpush1.bf16.msra.mxu0 0
    %3140 = vmatprep.subr.bf16.mxu0 0
    %3141 = vmatpush1.bf16.msra.mxu0 0
    %3142 = vmatprep.subr.bf16.mxu0 0
    %3143 = vmatpush1.bf16.msra.mxu0 %v3126
    %3144 = vmatprep.subr.bf16.mxu0 0
    %3145 = vmatpush2.bf16.msra.mxu0 0
    %3146 = vmatprep.subr.bf16.mxu0 0
    %3147 = vmatpush2.bf16.msra.mxu0 0
    %3148 = vmatprep.subr.bf16.mxu0 0
    %3149 = vmatpush2.bf16.msra.mxu0 0
    %3150 = vmatprep.subr.bf16.mxu0 0
    %3151 = vmatpush2.bf16.msra.mxu0 0
    %3152 = vmatprep.subr.bf16.mxu0 0
    %3153 = vmatpush2.bf16.msra.mxu0 0
    %3154 = vmatprep.subr.bf16.mxu0 0
    %3155 = vmatpush2.bf16.msra.mxu0 0
    %3156 = vmatprep.subr.bf16.mxu0 0
    %3157 = vmatpush2.bf16.msra.mxu0 0
    %3158 = vmatprep.subr.bf16.mxu0 0
    %3159 = vmatpush2.bf16.msra.mxu0 0
    %3160 = vmatprep.mubr.bf16.mxu0 0
    %3161 = vmatmul.mubr.bf16.gmra.mxu0 %v3123
    %v3162 = vpop.f32.mrf.mxu0
    %v3163 = vadd.f32 0.0, %v3162
    %v3164 = vpop.f32.mrf.mxu0
    %v3165 = vpop.f32.mrf.mxu0
    %v3166 = vpop.f32.mrf.mxu0
    %3167 = vdwg.mxu0
    %v3169 = vsel %vm1173, %v2927, 0
    %v3172 = vand.u32 %v2935, %v1178
    %3174 = vmatprep.subr.bf16.mxu0 0
    %3175 = vmatpush1.bf16.msra.mxu0 0
    %3176 = vmatprep.subr.bf16.mxu0 0
    %3177 = vmatpush1.bf16.msra.mxu0 0
    %3178 = vmatprep.subr.bf16.mxu0 0
    %3179 = vmatpush1.bf16.msra.mxu0 0
    %3180 = vmatprep.subr.bf16.mxu0 0
    %3181 = vmatpush1.bf16.msra.mxu0 0
    %3182 = vmatprep.subr.bf16.mxu0 0
    %3183 = vmatpush1.bf16.msra.mxu0 0
    %3184 = vmatprep.subr.bf16.mxu0 0
    %3185 = vmatpush1.bf16.msra.mxu0 0
    %3186 = vmatprep.subr.bf16.mxu0 0
    %3187 = vmatpush1.bf16.msra.mxu0 0
    %3188 = vmatprep.subr.bf16.mxu0 0
    %3189 = vmatpush1.bf16.msra.mxu0 %v3172
    %3190 = vmatprep.subr.bf16.mxu0 0
    %3191 = vmatpush2.bf16.msra.mxu0 0
    %3192 = vmatprep.subr.bf16.mxu0 0
    %3193 = vmatpush2.bf16.msra.mxu0 0
    %3194 = vmatprep.subr.bf16.mxu0 0
    %3195 = vmatpush2.bf16.msra.mxu0 0
    %3196 = vmatprep.subr.bf16.mxu0 0
    %3197 = vmatpush2.bf16.msra.mxu0 0
    %3198 = vmatprep.subr.bf16.mxu0 0
    %3199 = vmatpush2.bf16.msra.mxu0 0
    %3200 = vmatprep.subr.bf16.mxu0 0
    %3201 = vmatpush2.bf16.msra.mxu0 0
    %3202 = vmatprep.subr.bf16.mxu0 0
    %3203 = vmatpush2.bf16.msra.mxu0 0
    %3204 = vmatprep.subr.bf16.mxu0 0
    %3205 = vmatpush2.bf16.msra.mxu0 0
    %3206 = vmatprep.mubr.bf16.mxu0 0
    %3207 = vmatmul.mubr.bf16.gmra.mxu0 %v3169
    %v3208 = vpop.f32.mrf.mxu0
    %v3209 = vadd.f32 0.0, %v3208
    %v3210 = vpop.f32.mrf.mxu0
    %v3211 = vpop.f32.mrf.mxu0
    %v3212 = vpop.f32.mrf.mxu0
    %3213 = vdwg.mxu0
    %v3215 = vsel %vm1173, %v2928, 0
    %v3218 = vand.u32 %v2936, %v1178
    %3220 = vmatprep.subr.bf16.mxu0 0
    %3221 = vmatpush1.bf16.msra.mxu0 0
    %3222 = vmatprep.subr.bf16.mxu0 0
    %3223 = vmatpush1.bf16.msra.mxu0 0
    %3224 = vmatprep.subr.bf16.mxu0 0
    %3225 = vmatpush1.bf16.msra.mxu0 0
    %3226 = vmatprep.subr.bf16.mxu0 0
    %3227 = vmatpush1.bf16.msra.mxu0 0
    %3228 = vmatprep.subr.bf16.mxu0 0
    %3229 = vmatpush1.bf16.msra.mxu0 0
    %3230 = vmatprep.subr.bf16.mxu0 0
    %3231 = vmatpush1.bf16.msra.mxu0 0
    %3232 = vmatprep.subr.bf16.mxu0 0
    %3233 = vmatpush1.bf16.msra.mxu0 0
    %3234 = vmatprep.subr.bf16.mxu0 0
    %3235 = vmatpush1.bf16.msra.mxu0 %v3218
    %3236 = vmatprep.subr.bf16.mxu0 0
    %3237 = vmatpush2.bf16.msra.mxu0 0
    %3238 = vmatprep.subr.bf16.mxu0 0
    %3239 = vmatpush2.bf16.msra.mxu0 0
    %3240 = vmatprep.subr.bf16.mxu0 0
    %3241 = vmatpush2.bf16.msra.mxu0 0
    %3242 = vmatprep.subr.bf16.mxu0 0
    %3243 = vmatpush2.bf16.msra.mxu0 0
    %3244 = vmatprep.subr.bf16.mxu0 0
    %3245 = vmatpush2.bf16.msra.mxu0 0
    %3246 = vmatprep.subr.bf16.mxu0 0
    %3247 = vmatpush2.bf16.msra.mxu0 0
    %3248 = vmatprep.subr.bf16.mxu0 0
    %3249 = vmatpush2.bf16.msra.mxu0 0
    %3250 = vmatprep.subr.bf16.mxu0 0
    %3251 = vmatpush2.bf16.msra.mxu0 0
    %3252 = vmatprep.mubr.bf16.mxu0 0
    %3253 = vmatmul.mubr.bf16.gmra.mxu0 %v3215
    %v3254 = vpop.f32.mrf.mxu0
    %v3255 = vadd.f32 0.0, %v3254
    %v3256 = vpop.f32.mrf.mxu0
    %v3257 = vpop.f32.mrf.mxu0
    %v3258 = vpop.f32.mrf.mxu0
    %3259 = vdwg.mxu0
    %v3261 = vsel %vm1173, %v2929, 0
    %v3264 = vand.u32 %v2937, %v1178
    %3266 = vmatprep.subr.bf16.mxu0 0
    %3267 = vmatpush1.bf16.msra.mxu0 0
    %3268 = vmatprep.subr.bf16.mxu0 0
    %3269 = vmatpush1.bf16.msra.mxu0 0
    %3270 = vmatprep.subr.bf16.mxu0 0
    %3271 = vmatpush1.bf16.msra.mxu0 0
    %3272 = vmatprep.subr.bf16.mxu0 0
    %3273 = vmatpush1.bf16.msra.mxu0 0
    %3274 = vmatprep.subr.bf16.mxu0 0
    %3275 = vmatpush1.bf16.msra.mxu0 0
    %3276 = vmatprep.subr.bf16.mxu0 0
    %3277 = vmatpush1.bf16.msra.mxu0 0
    %3278 = vmatprep.subr.bf16.mxu0 0
    %3279 = vmatpush1.bf16.msra.mxu0 0
    %3280 = vmatprep.subr.bf16.mxu0 0
    %3281 = vmatpush1.bf16.msra.mxu0 %v3264
    %3282 = vmatprep.subr.bf16.mxu0 0
    %3283 = vmatpush2.bf16.msra.mxu0 0
    %3284 = vmatprep.subr.bf16.mxu0 0
    %3285 = vmatpush2.bf16.msra.mxu0 0
    %3286 = vmatprep.subr.bf16.mxu0 0
    %3287 = vmatpush2.bf16.msra.mxu0 0
    %3288 = vmatprep.subr.bf16.mxu0 0
    %3289 = vmatpush2.bf16.msra.mxu0 0
    %3290 = vmatprep.subr.bf16.mxu0 0
    %3291 = vmatpush2.bf16.msra.mxu0 0
    %3292 = vmatprep.subr.bf16.mxu0 0
    %3293 = vmatpush2.bf16.msra.mxu0 0
    %3294 = vmatprep.subr.bf16.mxu0 0
    %3295 = vmatpush2.bf16.msra.mxu0 0
    %3296 = vmatprep.subr.bf16.mxu0 0
    %3297 = vmatpush2.bf16.msra.mxu0 0
    %3298 = vmatprep.mubr.bf16.mxu0 0
    %3299 = vmatmul.mubr.bf16.gmra.mxu0 %v3261
    %v3300 = vpop.f32.mrf.mxu0
    %v3301 = vadd.f32 0.0, %v3300
    %v3302 = vpop.f32.mrf.mxu0
    %v3303 = vpop.f32.mrf.mxu0
    %v3304 = vpop.f32.mrf.mxu0
    %3305 = vdwg.mxu0
    %3306 = vst.msk [vmem:[#allocation2] sm:$0x1f] %vm1544, %v2979
    %3308 = vrot.lane.b32.xlu0 %v3025, 32
    %v3309 = vpop.permute.xlu0 %3308
    %3311 = vst.msk [vmem:[#allocation2] sm:$0x1f] %vm1550, %v3309
    %3313 = vrot.lane.b32.xlu0 %v3071, 64
    %v3314 = vpop.permute.xlu0 %3313
    %3316 = vst.msk [vmem:[#allocation2] sm:$0x1f] %vm1556, %v3314
    %3318 = vrot.lane.b32.xlu0 %v3117, 96
    %v3319 = vpop.permute.xlu0 %3318
    %3321 = vst.msk [vmem:[#allocation2] sm:$0x1f] %vm1562, %v3319
    %3322 = vst.msk [vmem:[#allocation2 + $0x5] sm:$0x1f] %vm1544, %v3163
    %3324 = vrot.lane.b32.xlu0 %v3209, 32
    %v3325 = vpop.permute.xlu0 %3324
    %3327 = vst.msk [vmem:[#allocation2 + $0x5] sm:$0x1f] %vm1550, %v3325
    %3329 = vrot.lane.b32.xlu0 %v3255, 64
    %v3330 = vpop.permute.xlu0 %3329
    %3332 = vst.msk [vmem:[#allocation2 + $0x5] sm:$0x1f] %vm1556, %v3330
    %3334 = vrot.lane.b32.xlu0 %v3301, 96
    %v3335 = vpop.permute.xlu0 %3334
    %3337 = vst.msk [vmem:[#allocation2 + $0x5] sm:$0x1f] %vm1562, %v3335
    %v3338 = vld [vmem:[#allocation2] sm:$0xff]
    %v3339 = vld [vmem:[#allocation2 + $0x8] sm:$0x3]
    %v3340 = vpack.c.bf16 %v3339, %v3338
    %s3341 = scalar_lea.vmem [#allocation8], 64
    %v3342 = vld [vmem:[%s3341] sm:$0xf]
    %v3343 = vld [vmem:[%s3341 + $0x4] sm:$0xf]
    %v3344 = vld [vmem:[%s3341 + $0x8] sm:$0xf]
    %v3345 = vld [vmem:[%s3341 + $0xc] sm:$0xf]
    %v3346 = vld [vmem:[%s3341 + $0x10] sm:$0xf]
    %v3347 = vld [vmem:[%s3341 + $0x14] sm:$0xf]
    %v3348 = vld [vmem:[%s3341 + $0x18] sm:$0xf]
    %v3349 = vld [vmem:[%s3341 + $0x1c] sm:$0xf]
    %v3350 = vld [vmem:[%s3341 + $0x20] sm:$0xf]
    %v3351 = vld [vmem:[%s3341 + $0x24] sm:$0xf]
    %v3352 = vld [vmem:[%s3341 + $0x28] sm:$0xf]
    %v3353 = vld [vmem:[%s3341 + $0x2c] sm:$0xf]
    %v3354 = vld [vmem:[%s3341 + $0x30] sm:$0xf]
    %v3355 = vld [vmem:[%s3341 + $0x34] sm:$0xf]
    %v3356 = vld [vmem:[%s3341 + $0x38] sm:$0xf]
    %v3357 = vld [vmem:[%s3341 + $0x3c] sm:$0xf]
    %v3374 = vunpack.c.l.b16 %v3342
    %v3375 = vunpack.c.l.b16 %v3343
    %v3376 = vunpack.c.l.b16 %v3344
    %v3377 = vunpack.c.l.b16 %v3345
    %v3378 = vunpack.c.l.b16 %v3346
    %v3379 = vunpack.c.l.b16 %v3347
    %v3380 = vunpack.c.l.b16 %v3348
    %v3381 = vunpack.c.l.b16 %v3349
    %v3382 = vunpack.c.l.b16 %v3350
    %v3383 = vunpack.c.l.b16 %v3351
    %v3384 = vunpack.c.l.b16 %v3352
    %v3385 = vunpack.c.l.b16 %v3353
    %v3386 = vunpack.c.l.b16 %v3354
    %v3387 = vunpack.c.l.b16 %v3355
    %v3388 = vunpack.c.l.b16 %v3356
    %v3389 = vunpack.c.l.b16 %v3357
    %v3390 = vpack.c.b16 %v3375, %v3374
    %v3391 = vpack.c.b16 %v3377, %v3376
    %v3392 = vpack.c.b16 %v3379, %v3378
    %v3393 = vpack.c.b16 %v3381, %v3380
    %v3394 = vpack.c.b16 %v3383, %v3382
    %v3395 = vpack.c.b16 %v3385, %v3384
    %v3396 = vpack.c.b16 %v3387, %v3386
    %v3397 = vpack.c.b16 %v3389, %v3388
    %3406 = vmatprep.subr.bf16.mxu0 0
    %3407 = vmatpush1.bf16.msra.mxu0 %v3397
    %3408 = vmatprep.subr.bf16.mxu0 0
    %3409 = vmatpush1.bf16.msra.mxu0 %v3396
    %3410 = vmatprep.subr.bf16.mxu0 0
    %3411 = vmatpush1.bf16.msra.mxu0 %v3395
    %3412 = vmatprep.subr.bf16.mxu0 0
    %3413 = vmatpush1.bf16.msra.mxu0 %v3394
    %3414 = vmatprep.subr.bf16.mxu0 0
    %3415 = vmatpush1.bf16.msra.mxu0 %v3393
    %3416 = vmatprep.subr.bf16.mxu0 0
    %3417 = vmatpush1.bf16.msra.mxu0 %v3392
    %3418 = vmatprep.subr.bf16.mxu0 0
    %3419 = vmatpush1.bf16.msra.mxu0 %v3391
    %3420 = vmatprep.subr.bf16.mxu0 0
    %3421 = vmatpush1.bf16.msra.mxu0 %v3390
    %3422 = vmatprep.subr.bf16.mxu0 0
    %3423 = vmatpush2.bf16.msra.mxu0 0
    %3424 = vmatprep.subr.bf16.mxu0 0
    %3425 = vmatpush2.bf16.msra.mxu0 0
    %3426 = vmatprep.subr.bf16.mxu0 0
    %3427 = vmatpush2.bf16.msra.mxu0 0
    %3428 = vmatprep.subr.bf16.mxu0 0
    %3429 = vmatpush2.bf16.msra.mxu0 0
    %3430 = vmatprep.subr.bf16.mxu0 0
    %3431 = vmatpush2.bf16.msra.mxu0 0
    %3432 = vmatprep.subr.bf16.mxu0 0
    %3433 = vmatpush2.bf16.msra.mxu0 0
    %3434 = vmatprep.subr.bf16.mxu0 0
    %3435 = vmatpush2.bf16.msra.mxu0 0
    %3436 = vmatprep.subr.bf16.mxu0 0
    %3437 = vmatpush2.bf16.msra.mxu0 0
    %3438 = vmatprep.mubr.bf16.mxu0 0
    %3439 = vmatmul.mubr.bf16.gmra.mxu0 %v3340
    %v3440 = vpop.f32.mrf.mxu0
    %v3441 = vadd.f32 %v2084, %v3440
    %v3442 = vpop.f32.mrf.mxu0
    %v3443 = vpop.f32.mrf.mxu0
    %v3444 = vadd.f32 %v2084, %v3443
    %v3445 = vpop.f32.mrf.mxu0
    %3446 = vdwg.mxu0
    %v3447 = vadd.f32 %v2076, %v3441
    %v3448 = vadd.f32 %v2077, %v3444
    %3449 = vadd.xlane.f32.xlu0 %v3447
    %v3450 = vpop.xlane.xlu0 %3449
    %v3451 = vsel %vm321, %v3448, 0.0
    %3452 = vadd.xlane.f32.xlu0 %v3451
    %v3453 = vpop.xlane.xlu0 %3452
    %v3454 = vmul.f32 %v3450, %v325
    %v3455 = vmul.f32 %v3453, %v325
    %v3456 = vsub.f32 %v3447, %v3454
    %v3457 = vsub.f32 %v3448, %v3455
    %v3458 = vmul.f32 %v3456, %v3456
    %v3459 = vmul.f32 %v3457, %v3457
    %3460 = vadd.xlane.f32.xlu0 %v3458
    %v3461 = vpop.xlane.xlu0 %3460
    %v3462 = vsel %vm321, %v3459, 0.0
    %3463 = vadd.xlane.f32.xlu0 %v3462
    %v3464 = vpop.xlane.xlu0 %3463
    %v3465 = vmul.f32 %v3461, %v325
    %v3466 = vmul.f32 %v3464, %v325
    %v3467 = vadd.f32 %v3465, 1e-06
    %v3468 = vadd.f32 %v3466, 1e-06
    %v3469 = vrsqrt.pop %v3467
    %v3470 = vrsqrt.pop %v3468
    %v3471 = vmul.f32 %v3456, %v3469
    %v3472 = vmul.f32 %v3457, %v3470
    %v3473 = vmul.f32 %v3471, %v2080
    %v3474 = vmul.f32 %v3472, %v2080
    %v3475 = vadd.f32 %v3473, %v2081
    %v3476 = vadd.f32 %v3474, %v2081
    %v3477 = vpack.c.bf16 %v3476, %v3475
    %s3478 = scalar_lea.vmem [#allocation10], 128
    %v3479 = vld [vmem:[%s3478] sm:$0xff]
    %v3480 = vld [vmem:[%s3478 + $0x8] sm:$0xff]
    %v3481 = vld [vmem:[%s3478 + $0x10] sm:$0xff]
    %v3482 = vld [vmem:[%s3478 + $0x18] sm:$0xff]
    %v3483 = vld [vmem:[%s3478 + $0x20] sm:$0xff]
    %v3484 = vld [vmem:[%s3478 + $0x28] sm:$0xff]
    %v3485 = vld [vmem:[%s3478 + $0x30] sm:$0xff]
    %v3486 = vld [vmem:[%s3478 + $0x38] sm:$0xff]
    %v3487 = vld [vmem:[%s3478 + $0x40] sm:$0xff]
    %v3488 = vld [vmem:[%s3478 + $0x48] sm:$0xff]
    %v3489 = vld [vmem:[%s3478 + $0x50] sm:$0xff]
    %v3490 = vld [vmem:[%s3478 + $0x58] sm:$0xff]
    %v3491 = vld [vmem:[%s3478 + $0x60] sm:$0xff]
    %v3492 = vld [vmem:[%s3478 + $0x68] sm:$0xff]
    %v3493 = vld [vmem:[%s3478 + $0x70] sm:$0xff]
    %v3494 = vld [vmem:[%s3478 + $0x78] sm:$0xff]
    %v3496 = vlaneseq
    %v3497 = vshrl.u32 %v3496, 7
    %v3498 = vsub.s32 0, %v3497
    %v3499 = vrot.slane %v2086, %v3498
    %v3500 = vlaneseq
    %v3501 = vshrl.u32 %v3500, 7
    %v3502 = vsub.s32 1, %v3501
    %v3503 = vrot.slane %v2086, %v3502
    %v3522 = vunpack.c.l.b16 %v3479
    %v3523 = vunpack.c.h.b16 %v3479
    %v3524 = vunpack.c.l.b16 %v3480
    %v3525 = vunpack.c.h.b16 %v3480
    %v3526 = vunpack.c.l.b16 %v3481
    %v3527 = vunpack.c.h.b16 %v3481
    %v3528 = vunpack.c.l.b16 %v3482
    %v3529 = vunpack.c.h.b16 %v3482
    %v3530 = vunpack.c.l.b16 %v3483
    %v3531 = vunpack.c.h.b16 %v3483
    %v3532 = vunpack.c.l.b16 %v3484
    %v3533 = vunpack.c.h.b16 %v3484
    %v3534 = vunpack.c.l.b16 %v3485
    %v3535 = vunpack.c.h.b16 %v3485
    %v3536 = vunpack.c.l.b16 %v3486
    %v3537 = vunpack.c.h.b16 %v3486
    %v3538 = vunpack.c.l.b16 %v3487
    %v3539 = vunpack.c.h.b16 %v3487
    %v3540 = vunpack.c.l.b16 %v3488
    %v3541 = vunpack.c.h.b16 %v3488
    %v3542 = vunpack.c.l.b16 %v3489
    %v3543 = vunpack.c.h.b16 %v3489
    %v3544 = vunpack.c.l.b16 %v3490
    %v3545 = vunpack.c.h.b16 %v3490
    %v3546 = vunpack.c.l.b16 %v3491
    %v3547 = vunpack.c.h.b16 %v3491
    %v3548 = vunpack.c.l.b16 %v3492
    %v3549 = vunpack.c.h.b16 %v3492
    %v3550 = vunpack.c.l.b16 %v3493
    %v3551 = vunpack.c.h.b16 %v3493
    %v3552 = vunpack.c.l.b16 %v3494
    %v3553 = vunpack.c.h.b16 %v3494
    %v3554 = vpack.c.b16 %v3524, %v3522
    %v3555 = vpack.c.b16 %v3525, %v3523
    %v3556 = vpack.c.b16 %v3528, %v3526
    %v3557 = vpack.c.b16 %v3529, %v3527
    %v3558 = vpack.c.b16 %v3532, %v3530
    %v3559 = vpack.c.b16 %v3533, %v3531
    %v3560 = vpack.c.b16 %v3536, %v3534
    %v3561 = vpack.c.b16 %v3537, %v3535
    %v3562 = vpack.c.b16 %v3540, %v3538
    %v3563 = vpack.c.b16 %v3541, %v3539
    %v3564 = vpack.c.b16 %v3544, %v3542
    %v3565 = vpack.c.b16 %v3545, %v3543
    %v3566 = vpack.c.b16 %v3548, %v3546
    %v3567 = vpack.c.b16 %v3549, %v3547
    %v3568 = vpack.c.b16 %v3552, %v3550
    %v3569 = vpack.c.b16 %v3553, %v3551
    %3586 = vmatprep.subr.bf16.mxu0 %v3569
    %3587 = vmatpush1.bf16.msra.mxu0 %v3568
    %3588 = vmatprep.subr.bf16.mxu0 %v3567
    %3589 = vmatpush1.bf16.msra.mxu0 %v3566
    %3590 = vmatprep.subr.bf16.mxu0 %v3565
    %3591 = vmatpush1.bf16.msra.mxu0 %v3564
    %3592 = vmatprep.subr.bf16.mxu0 %v3563
    %3593 = vmatpush1.bf16.msra.mxu0 %v3562
    %3594 = vmatprep.subr.bf16.mxu0 %v3561
    %3595 = vmatpush1.bf16.msra.mxu0 %v3560
    %3596 = vmatprep.subr.bf16.mxu0 %v3559
    %3597 = vmatpush1.bf16.msra.mxu0 %v3558
    %3598 = vmatprep.subr.bf16.mxu0 %v3557
    %3599 = vmatpush1.bf16.msra.mxu0 %v3556
    %3600 = vmatprep.subr.bf16.mxu0 %v3555
    %3601 = vmatpush1.bf16.msra.mxu0 %v3554
    %3602 = vmatprep.subr.bf16.mxu0 0
    %3603 = vmatpush2.bf16.msra.mxu0 0
    %3604 = vmatprep.subr.bf16.mxu0 0
    %3605 = vmatpush2.bf16.msra.mxu0 0
    %3606 = vmatprep.subr.bf16.mxu0 0
    %3607 = vmatpush2.bf16.msra.mxu0 0
    %3608 = vmatprep.subr.bf16.mxu0 0
    %3609 = vmatpush2.bf16.msra.mxu0 0
    %3610 = vmatprep.subr.bf16.mxu0 0
    %3611 = vmatpush2.bf16.msra.mxu0 0
    %3612 = vmatprep.subr.bf16.mxu0 0
    %3613 = vmatpush2.bf16.msra.mxu0 0
    %3614 = vmatprep.subr.bf16.mxu0 0
    %3615 = vmatpush2.bf16.msra.mxu0 0
    %3616 = vmatprep.subr.bf16.mxu0 0
    %3617 = vmatpush2.bf16.msra.mxu0 0
    %3618 = vmatprep.mubr.bf16.mxu0 0
    %3619 = vmatmul.mubr.bf16.gmra.mxu0 %v3477
    %v3620 = vpop.f32.mrf.mxu0
    %v3621 = vadd.f32 %v3499, %v3620
    %v3622 = vpop.f32.mrf.mxu0
    %v3623 = vadd.f32 %v3503, %v3622
    %v3624 = vpop.f32.mrf.mxu0
    %v3625 = vadd.f32 %v3499, %v3624
    %v3626 = vpop.f32.mrf.mxu0
    %v3627 = vadd.f32 %v3503, %v3626
    %3628 = vdwg.mxu0
    %v3629 = vmul.f32 %v3621, %v3621
    %v3630 = vmul.f32 %v3623, %v3623
    %v3631 = vmul.f32 %v3625, %v3625
    %v3632 = vmul.f32 %v3627, %v3627
    %v3633 = vmul.f32 %v3621, %v3629
    %v3634 = vmul.f32 %v3623, %v3630
    %v3635 = vmul.f32 %v3625, %v3631
    %v3636 = vmul.f32 %v3627, %v3632
    %v3637 = vmul.f32 %v3633, 0.044715
    %v3638 = vmul.f32 %v3634, 0.044715
    %v3639 = vmul.f32 %v3635, 0.044715
    %v3640 = vmul.f32 %v3636, 0.044715
    %v3641 = vadd.f32 %v3621, %v3637
    %v3642 = vadd.f32 %v3623, %v3638
    %v3643 = vadd.f32 %v3625, %v3639
    %v3644 = vadd.f32 %v3627, %v3640
    %v3645 = vmul.f32 %v3641, 0.7978846
    %v3646 = vmul.f32 %v3642, 0.7978846
    %v3647 = vmul.f32 %v3643, 0.7978846
    %v3648 = vmul.f32 %v3644, 0.7978846
    %v3649 = vtanh.pop %v3645
    %v3650 = vtanh.pop %v3646
    %v3651 = vtanh.pop %v3647
    %v3652 = vtanh.pop %v3648
    %v3653 = vadd.f32 %v3649, 1.0
    %v3654 = vadd.f32 %v3650, 1.0
    %v3655 = vadd.f32 %v3651, 1.0
    %v3656 = vadd.f32 %v3652, 1.0
    %v3657 = vmul.f32 %v3653, 0.5
    %v3658 = vmul.f32 %v3654, 0.5
    %v3659 = vmul.f32 %v3655, 0.5
    %v3660 = vmul.f32 %v3656, 0.5
    %v3661 = vmul.f32 %v3621, %v3657
    %v3662 = vmul.f32 %v3623, %v3658
    %v3663 = vmul.f32 %v3625, %v3659
    %v3664 = vmul.f32 %v3627, %v3660
    %v3665 = vpack.c.bf16 %v3663, %v3661
    %v3666 = vpack.c.bf16 %v3664, %v3662
    %s3667 = scalar_lea.vmem [#allocation11], 128
    %v3668 = vld [vmem:[%s3667] sm:$0xf]
    %v3669 = vld [vmem:[%s3667 + $0x4] sm:$0xf]
    %v3670 = vld [vmem:[%s3667 + $0x8] sm:$0xf]
    %v3671 = vld [vmem:[%s3667 + $0xc] sm:$0xf]
    %v3672 = vld [vmem:[%s3667 + $0x10] sm:$0xf]
    %v3673 = vld [vmem:[%s3667 + $0x14] sm:$0xf]
    %v3674 = vld [vmem:[%s3667 + $0x18] sm:$0xf]
    %v3675 = vld [vmem:[%s3667 + $0x1c] sm:$0xf]
    %v3676 = vld [vmem:[%s3667 + $0x20] sm:$0xf]
    %v3677 = vld [vmem:[%s3667 + $0x24] sm:$0xf]
    %v3678 = vld [vmem:[%s3667 + $0x28] sm:$0xf]
    %v3679 = vld [vmem:[%s3667 + $0x2c] sm:$0xf]
    %v3680 = vld [vmem:[%s3667 + $0x30] sm:$0xf]
    %v3681 = vld [vmem:[%s3667 + $0x34] sm:$0xf]
    %v3682 = vld [vmem:[%s3667 + $0x38] sm:$0xf]
    %v3683 = vld [vmem:[%s3667 + $0x3c] sm:$0xf]
    %v3684 = vld [vmem:[%s3667 + $0x40] sm:$0xf]
    %v3685 = vld [vmem:[%s3667 + $0x44] sm:$0xf]
    %v3686 = vld [vmem:[%s3667 + $0x48] sm:$0xf]
    %v3687 = vld [vmem:[%s3667 + $0x4c] sm:$0xf]
    %v3688 = vld [vmem:[%s3667 + $0x50] sm:$0xf]
    %v3689 = vld [vmem:[%s3667 + $0x54] sm:$0xf]
    %v3690 = vld [vmem:[%s3667 + $0x58] sm:$0xf]
    %v3691 = vld [vmem:[%s3667 + $0x5c] sm:$0xf]
    %v3692 = vld [vmem:[%s3667 + $0x60] sm:$0xf]
    %v3693 = vld [vmem:[%s3667 + $0x64] sm:$0xf]
    %v3694 = vld [vmem:[%s3667 + $0x68] sm:$0xf]
    %v3695 = vld [vmem:[%s3667 + $0x6c] sm:$0xf]
    %v3696 = vld [vmem:[%s3667 + $0x70] sm:$0xf]
    %v3697 = vld [vmem:[%s3667 + $0x74] sm:$0xf]
    %v3698 = vld [vmem:[%s3667 + $0x78] sm:$0xf]
    %v3699 = vld [vmem:[%s3667 + $0x7c] sm:$0xf]
    %v3732 = vunpack.c.l.b16 %v3668
    %v3733 = vunpack.c.l.b16 %v3669
    %v3734 = vunpack.c.l.b16 %v3670
    %v3735 = vunpack.c.l.b16 %v3671
    %v3736 = vunpack.c.l.b16 %v3672
    %v3737 = vunpack.c.l.b16 %v3673
    %v3738 = vunpack.c.l.b16 %v3674
    %v3739 = vunpack.c.l.b16 %v3675
    %v3740 = vunpack.c.l.b16 %v3676
    %v3741 = vunpack.c.l.b16 %v3677
    %v3742 = vunpack.c.l.b16 %v3678
    %v3743 = vunpack.c.l.b16 %v3679
    %v3744 = vunpack.c.l.b16 %v3680
    %v3745 = vunpack.c.l.b16 %v3681
    %v3746 = vunpack.c.l.b16 %v3682
    %v3747 = vunpack.c.l.b16 %v3683
    %v3748 = vunpack.c.l.b16 %v3684
    %v3749 = vunpack.c.l.b16 %v3685
    %v3750 = vunpack.c.l.b16 %v3686
    %v3751 = vunpack.c.l.b16 %v3687
    %v3752 = vunpack.c.l.b16 %v3688
    %v3753 = vunpack.c.l.b16 %v3689
    %v3754 = vunpack.c.l.b16 %v3690
    %v3755 = vunpack.c.l.b16 %v3691
    %v3756 = vunpack.c.l.b16 %v3692
    %v3757 = vunpack.c.l.b16 %v3693
    %v3758 = vunpack.c.l.b16 %v3694
    %v3759 = vunpack.c.l.b16 %v3695
    %v3760 = vunpack.c.l.b16 %v3696
    %v3761 = vunpack.c.l.b16 %v3697
    %v3762 = vunpack.c.l.b16 %v3698
    %v3763 = vunpack.c.l.b16 %v3699
    %v3764 = vpack.c.b16 %v3733, %v3732
    %v3765 = vpack.c.b16 %v3735, %v3734
    %v3766 = vpack.c.b16 %v3737, %v3736
    %v3767 = vpack.c.b16 %v3739, %v3738
    %v3768 = vpack.c.b16 %v3741, %v3740
    %v3769 = vpack.c.b16 %v3743, %v3742
    %v3770 = vpack.c.b16 %v3745, %v3744
    %v3771 = vpack.c.b16 %v3747, %v3746
    %v3772 = vpack.c.b16 %v3749, %v3748
    %v3773 = vpack.c.b16 %v3751, %v3750
    %v3774 = vpack.c.b16 %v3753, %v3752
    %v3775 = vpack.c.b16 %v3755, %v3754
    %v3776 = vpack.c.b16 %v3757, %v3756
    %v3777 = vpack.c.b16 %v3759, %v3758
    %v3778 = vpack.c.b16 %v3761, %v3760
    %v3779 = vpack.c.b16 %v3763, %v3762
    %3796 = vmatprep.subr.bf16.mxu0 0
    %3797 = vmatpush1.bf16.msra.mxu0 %v3771
    %3798 = vmatprep.subr.bf16.mxu0 0
    %3799 = vmatpush1.bf16.msra.mxu0 %v3770
    %3800 = vmatprep.subr.bf16.mxu0 0
    %3801 = vmatpush1.bf16.msra.mxu0 %v3769
    %3802 = vmatprep.subr.bf16.mxu0 0
    %3803 = vmatpush1.bf16.msra.mxu0 %v3768
    %3804 = vmatprep.subr.bf16.mxu0 0
    %3805 = vmatpush1.bf16.msra.mxu0 %v3767
    %3806 = vmatprep.subr.bf16.mxu0 0
    %3807 = vmatpush1.bf16.msra.mxu0 %v3766
    %3808 = vmatprep.subr.bf16.mxu0 0
    %3809 = vmatpush1.bf16.msra.mxu0 %v3765
    %3810 = vmatprep.subr.bf16.mxu0 0
    %3811 = vmatpush1.bf16.msra.mxu0 %v3764
    %3812 = vmatprep.subr.bf16.mxu0 0
    %3813 = vmatpush2.bf16.msra.mxu0 %v3779
    %3814 = vmatprep.subr.bf16.mxu0 0
    %3815 = vmatpush2.bf16.msra.mxu0 %v3778
    %3816 = vmatprep.subr.bf16.mxu0 0
    %3817 = vmatpush2.bf16.msra.mxu0 %v3777
    %3818 = vmatprep.subr.bf16.mxu0 0
    %3819 = vmatpush2.bf16.msra.mxu0 %v3776
    %3820 = vmatprep.subr.bf16.mxu0 0
    %3821 = vmatpush2.bf16.msra.mxu0 %v3775
    %3822 = vmatprep.subr.bf16.mxu0 0
    %3823 = vmatpush2.bf16.msra.mxu0 %v3774
    %3824 = vmatprep.subr.bf16.mxu0 0
    %3825 = vmatpush2.bf16.msra.mxu0 %v3773
    %3826 = vmatprep.subr.bf16.mxu0 0
    %3827 = vmatpush2.bf16.msra.mxu0 %v3772
    %3828 = vmatprep.mubr.bf16.mxu0 %v3666
    %3829 = vmatmul.mubr.bf16.gmra.mxu0 %v3665
    %v3830 = vpop.f32.mrf.mxu0
    %v3831 = vadd.f32 %v2087, %v3830
    %v3832 = vpop.f32.mrf.mxu0
    %v3833 = vpop.f32.mrf.mxu0
    %v3834 = vadd.f32 %v2087, %v3833
    %v3835 = vpop.f32.mrf.mxu0
    %3836 = vdwg.mxu0
    %v3837 = vadd.f32 %v3447, %v3831
    %v3838 = vadd.f32 %v3448, %v3834
    %v3839 = vld [vmem:[#allocation13 + $0x7] ss:$0 sm:$0xff]
    %v3840 = vld [vmem:[#allocation13 + $0x18] ss:$0 sm:$0xff]
    %3841 = vadd.xlane.f32.xlu0 %v3837
    %v3842 = vpop.xlane.xlu0 %3841
    %v3843 = vsel %vm321, %v3838, 0.0
    %3844 = vadd.xlane.f32.xlu0 %v3843
    %v3845 = vpop.xlane.xlu0 %3844
    %v3846 = vmul.f32 %v3842, %v325
    %v3847 = vmul.f32 %v3845, %v325
    %v3848 = vsub.f32 %v3837, %v3846
    %v3849 = vsub.f32 %v3838, %v3847
    %v3850 = vmul.f32 %v3848, %v3848
    %v3851 = vmul.f32 %v3849, %v3849
    %3852 = vadd.xlane.f32.xlu0 %v3850
    %v3853 = vpop.xlane.xlu0 %3852
    %v3854 = vsel %vm321, %v3851, 0.0
    %3855 = vadd.xlane.f32.xlu0 %v3854
    %v3856 = vpop.xlane.xlu0 %3855
    %v3857 = vmul.f32 %v3853, %v325
    %v3858 = vmul.f32 %v3856, %v325
    %v3859 = vadd.f32 %v3857, 1e-06
    %v3860 = vadd.f32 %v3858, 1e-06
    %v3861 = vrsqrt.pop %v3859
    %v3862 = vrsqrt.pop %v3860
    %v3863 = vmul.f32 %v3848, %v3861
    %v3864 = vmul.f32 %v3849, %v3862
    %v3865 = vmul.f32 %v3863, %v3839
    %v3866 = vmul.f32 %v3864, %v3839
    %v3867 = vadd.f32 %v3865, %v3840
    %v3868 = vadd.f32 %v3866, %v3840
    %3869 = vst [vmem:[%s7] sm:$0xff] %v3867
    %3870 = vst [vmem:[%s7 + $0x8] sm:$0x3] %v3868
    // Predicated region
    $region58: #{tpu_custom_call.1} parent=1 // pred_check
      _
    $region59: #{tpu_custom_call.1} parent=1 // pred_check_branch
      %3872 = sbr.rel (0) target = $region61
    $region60: #{tpu_custom_call.1} parent=1 // pred_region
      _
    $region61: #{tpu_custom_call.1} parent=1 // pred_fallthru
      _
    // Predicated region
    $region62: #{tpu_custom_call.1} parent=1 // pred_check
      _
    $region63: #{tpu_custom_call.1} parent=1 // pred_check_branch
      %3874 = sbr.rel (0) target = $region65
    $region64: #{tpu_custom_call.1} parent=1 // pred_region
      _
    $region65: #{tpu_custom_call.1} parent=1 // pred_fallthru
      _
    %3875 = vsyncpa [#allocation4], 1
    %3876 = vsyncpa [#allocation6], 1
    %3877 = vsyncpa [#allocation9], 1
    %3878 = vsyncpa [#allocation12], 1

</llo_original>
